<compile_context>
chip_gen: v7x
topology: tpu7x:2x2x1
jax: 0.10.0
libtpu: 0.0.40
codegen_flags: <defaults>
</compile_context>

<pallas_src>
import functools

import jax
import jax.numpy as jnp
from jax.experimental import pallas as pl
from jax.experimental.pallas import tpu as pltpu

EPS = 1e-3  # matches nn.BatchNorm2d(chann, eps=0.001)


# ---------------------------------------------------------------------------
# Hardware-aware sizing (Python-level, trace time).
# ---------------------------------------------------------------------------
def _vmem_capacity_bytes():
    try:
        return int(pltpu.get_tpu_info().vmem_capacity_bytes)
    except Exception:
        return 64 << 20          # v7x-safe fallback


def _vmem_limit_bytes():
    cap = _vmem_capacity_bytes()
    # >=16 MiB compiler headroom: 48 MiB on v7x (64 MiB VMEM), 112 MiB on
    # v5e/v6e (128 MiB VMEM).
    return int(min(max(cap - (16 << 20), 32 << 20), 112 << 20))


def _pick_tile_h(H, W, Cp, dil, vmem_limit):
    """Largest divisor of H whose per-step working set fits the VMEM budget."""
    row_bytes = W * Cp * 2                       # one bf16 activation row
    budget = int(vmem_limit * 0.6)
    max_th = max(min(H, budget // (12 * row_bytes)), 1)
    for cand in range(min(H, max_th), 0, -1):
        if H % cand == 0 and cand >= min(dil, H):
            return cand
    return H


def _pick_rows(total, Cp, vmem_limit):
    """Row-block size for the flat elementwise stage-3 kernel."""
    per_row = Cp * 20            # bf16 in/in/out double-buffered + f32 temps
    cap = max(8, min(total, (vmem_limit // 2) // per_row, 8192))
    for r in range(cap, 0, -1):
        if total % r == 0 and (r % 8 == 0 or r == total):
            return r
    return total


# ---------------------------------------------------------------------------
# In-kernel helpers.
# ---------------------------------------------------------------------------
def _conv3_h(xp, w, dil):
    """3-tap 'same' conv along H.  xp: (rows+2*dil, W, Cp) bf16 halo-padded
    strip; w: (3, Cp, Cp) bf16.  One accumulated MXU matmul per tap; leading-dim
    slices are tile-aligned (no relayout, no im2col concat)."""
    R2, W, Cp = xp.shape
    rows = R2 - 2 * dil
    acc = None
    for k in range(3):
        lhs = xp[k * dil:k * dil + rows].reshape(rows * W, Cp)
        r = jnp.dot(lhs, w[k], preferred_element_type=jnp.float32)
        acc = r if acc is None else acc + r
    return acc.reshape(rows, W, Cp)


def _conv3_w(t, w, dil):
    """3-tap 'same' zero-padded conv along W.  t: (R, W, Cp) f32; w: (3, Cp, Cp)
    bf16.  Shifted taps keep a lane-dense W-wide sublane extent (no W+2*dil
    buffers)."""
    R, W, Cp = t.shape
    tb = t.astype(jnp.bfloat16)
    z = jnp.zeros((R, dil, Cp), jnp.bfloat16)
    left = jnp.concatenate([z, tb[:, :W - dil, :]], axis=1)    # in[j - dil]
    right = jnp.concatenate([tb[:, dil:, :], z], axis=1)       # in[j + dil]
    acc = jnp.dot(left.reshape(R * W, Cp), w[0], preferred_element_type=jnp.float32)
    acc = acc + jnp.dot(tb.reshape(R * W, Cp), w[1], preferred_element_type=jnp.float32)
    acc = acc + jnp.dot(right.reshape(R * W, Cp), w[2], preferred_element_type=jnp.float32)
    return acc.reshape(R, W, Cp)


def _stats2(y):
    """(2, Cp) slab of per-channel [sum, sum-of-squares] from the f32 tile."""
    R, W, Cp = y.shape
    yf = y.reshape(R * W, Cp)
    s = jnp.sum(yf, axis=0, keepdims=True)
    ss = jnp.sum(yf * yf, axis=0, keepdims=True)
    return jnp.concatenate([s, ss], axis=0)


# ---------------------------------------------------------------------------
# Stage kernels.  Grid = (N, H // tH) for stages 1-2, flat rows for stage 3.
# ---------------------------------------------------------------------------
def _stage1_kernel(x_ref, xt_ref, xb_ref, w1_ref, b1_ref, w2_ref, y1_ref, s1_ref):
    # conv3x1_1 + bias + relu + conv1x3_1 (bias b2 folded into bn1).
    xp = jnp.concatenate([xt_ref[0], x_ref[0], xb_ref[0]], axis=0)  # (tH+2, W, Cp) bf16
    t = _conv3_h(xp, w1_ref[...], dil=1) + b1_ref[...]
    t = jnp.maximum(t, 0.0)
    y = _conv3_w(t, w2_ref[...], dil=1)
    y1_ref[0] = y.astype(y1_ref.dtype)
    s1_ref[0, 0] = _stats2(y)


def _stage2_kernel(y1_ref, yt_ref, yb_ref, a1_ref, c1_ref, w3_ref, b3_ref, w4_ref,
                   y2_ref, s2_ref, *, dil):
    # bn1(affine) + relu + dilated conv3x1_2 + bias + relu + dilated conv1x3_2.
    a1 = a1_ref[...]
    c1 = c1_ref[...]

    def bn_relu(v):
        return jnp.maximum(v.astype(jnp.float32) * a1 + c1, 0.0)

    h = pl.program_id(1)
    # Halo rows outside the image must be the conv's literal zero padding,
    # NOT bn_relu(0) -> zero them at the true top/bottom image boundary.
    m_top = (h > 0).astype(jnp.float32)
    m_bot = (h < pl.num_programs(1) - 1).astype(jnp.float32)
    top = (bn_relu(yt_ref[0]) * m_top).astype(jnp.bfloat16)
    bot = (bn_relu(yb_ref[0]) * m_bot).astype(jnp.bfloat16)
    mid = bn_relu(y1_ref[0]).astype(jnp.bfloat16)
    tp = jnp.concatenate([top, mid, bot], axis=0)               # (tH+2*dil, W, Cp)

    u = jnp.maximum(_conv3_h(tp, w3_ref[...], dil=dil) + b3_ref[...], 0.0)
    y = _conv3_w(u, w4_ref[...], dil=dil)                       # bias b4 folded into bn2
    y2_ref[0] = y.astype(y2_ref.dtype)
    s2_ref[0, 0] = _stats2(y)


def _stage3_kernel(y2_ref, x_ref, a2_ref, c2_ref, o_ref):
    # bn2(affine) + residual + relu, flat lane-dense elementwise.
    # TODO(synk): Dropout2d with p > 0 would need an in-kernel channel mask via
    # pltpu.prng_random_bits; dropprob == 0 here, matching the PyTorch skip.
    out = (y2_ref[...].astype(jnp.float32) * a2_ref[...] + c2_ref[...]
           + x_ref[...].astype(jnp.float32))
    o_ref[...] = jnp.maximum(out, 0.0).astype(o_ref.dtype)


# ---------------------------------------------------------------------------
# Host-side helpers (plain JAX).
# ---------------------------------------------------------------------------
def _fold_bn(stats, gamma, beta, count):
    """Fold one-pass batch stats + (gamma, beta) into per-channel scale/shift."""
    # TODO(synk): for very large N*H*W merge per-tile partials with Welford /
    # higher precision; f32 sum/sumsq can cancel at production resolutions.
    s = jnp.sum(stats[:, :, 0, :], axis=(0, 1))
    ss = jnp.sum(stats[:, :, 1, :], axis=(0, 1))
    mean = s / count
    var = jnp.maximum(ss / count - mean * mean, 0.0)
    scale = gamma[0] * jax.lax.rsqrt(var + EPS)
    shift = beta[0] - mean * scale
    return scale[None, :], shift[None, :]


def _h_halos(arr, tile_h, d):
    """Per-H-strip top/bottom halo rows, zero outside the image.
    arr: (N, H, W, Cp) -> two (N, Ht*d, W, Cp) arrays; strip h's halo rows live
    at rows [h*d, (h+1)*d).  Only 2*d/tile_h of the array is touched."""
    N, H, W, Cp = arr.shape
    Ht = H // tile_h
    a5 = arr.reshape(N, Ht, tile_h, W, Cp)
    z = jnp.zeros((N, 1, d, W, Cp), arr.dtype)
    top = jnp.concatenate([z, a5[:, :-1, tile_h - d:]], axis=1)
    bot = jnp.concatenate([a5[:, 1:, :d], z], axis=1)
    return top.reshape(N, Ht * d, W, Cp), bot.reshape(N, Ht * d, W, Cp)


# ---------------------------------------------------------------------------
# Wrapper (NCHW in / NCHW out, like the PyTorch module).
# ---------------------------------------------------------------------------
@functools.partial(jax.jit, static_argnames=("dilated", "tile_h"))
def non_bottleneck_1d_pallas(x_nchw, params, dilated, tile_h=None):
    N, C, H, W = x_nchw.shape
    Cp = ((C + 127) // 128) * 128          # lane-dense channel count
    d = int(dilated)

    vmem_limit = _vmem_limit_bytes()
    tH = int(tile_h) if tile_h is not None else _pick_tile_h(H, W, Cp, d, vmem_limit)
    assert H % tH == 0 and d <= tH, (H, tH, d)
    Ht = H // tH

    # NCHW -> NHWC, channel pad to Cp, bf16 in HBM (stages are memory-bound;
    # bf16 I/O halves traffic).  Padded channels stay exactly zero end-to-end.
    # TODO(synk): for C << 128 pack W into lanes instead of zero-padding
    # channels (production ERFNet uses C in {64, 128}).
    x = jnp.transpose(x_nchw, (0, 2, 3, 1))
    x = jnp.pad(x, ((0, 0), (0, 0), (0, 0), (0, Cp - C))).astype(jnp.bfloat16)

    def wpack(w):      # (3, Cin, Cout) -> (3, Cp, Cp) bf16 tap stack
        return jnp.pad(w, ((0, 0), (0, Cp - C), (0, Cp - C))).astype(jnp.bfloat16)

    def vpad(v):       # (1, C) -> (1, Cp) f32
        return jnp.pad(v, ((0, 0), (0, Cp - C))).astype(jnp.float32)

    w1, w2, w3, w4 = (wpack(params[k]) for k in ("w1", "w2", "w3", "w4"))
    b1, b3 = vpad(params["b1"]), vpad(params["b3"])
    # b2/b4 dropped: a per-channel bias right before BatchNorm is cancelled
    # exactly by the mean subtraction.
    g1, be1 = vpad(params["g1"]), vpad(params["be1"])
    g2, be2 = vpad(params["g2"]), vpad(params["be2"])

    act = jax.ShapeDtypeStruct((N, H, W, Cp), jnp.bfloat16)
    stt = jax.ShapeDtypeStruct((N, Ht, 2, Cp), jnp.float32)

    aspec = pl.BlockSpec((1, tH, W, Cp), lambda n, h: (n, h, 0, 0))
    wspec = pl.BlockSpec((3, Cp, Cp), lambda n, h: (0, 0, 0))      # resident
    vspec = pl.BlockSpec((1, Cp), lambda n, h: (0, 0))             # resident
    sspec = pl.BlockSpec((1, 1, 2, Cp), lambda n, h: (n, h, 0, 0))

    def hspec(hd):
        return pl.BlockSpec((1, hd, W, Cp), lambda n, h: (n, h, 0, 0))

    cparams = pltpu.CompilerParams(
        dimension_semantics=("parallel", "parallel"),   # batch x H-strips
        vmem_limit_bytes=vmem_limit)

    # ---- stage 1: conv3x1_1 + relu + conv1x3_1 (+ bn1 partial stats) -------
    x_top, x_bot = _h_halos(x, tH, 1)
    y1, s1 = pl.pallas_call(
        _stage1_kernel,
        grid=(N, Ht),
        in_specs=[aspec, hspec(1), hspec(1), wspec, vspec, wspec],
        out_specs=(aspec, sspec),
        out_shape=(act, stt),
        compiler_params=cparams,
    )(x, x_top, x_bot, w1, b1, w2)
    a1, c1 = _fold_bn(s1, g1, be1, N * H * W)

    # ---- stage 2: bn1 + relu + dil conv3x1_2 + relu + dil conv1x3_2 --------
    y1_top, y1_bot = _h_halos(y1, tH, d)
    y2, s2 = pl.pallas_call(
        functools.partial(_stage2_kernel, dil=d),
        grid=(N, Ht),
        in_specs=[aspec, hspec(d), hspec(d), vspec, vspec, wspec, vspec, wspec],
        out_specs=(aspec, sspec),
        out_shape=(act, stt),
        compiler_params=cparams,
    )(y1, y1_top, y1_bot, a1, c1, w3, b3, w4)
    a2, c2 = _fold_bn(s2, g2, be2, N * H * W)

    # ---- stage 3: bn2 + residual + relu (flat, lane-dense, aliased) --------
    total = N * H * W
    rows = _pick_rows(total, Cp, vmem_limit)
    fspec = pl.BlockSpec((rows, Cp), lambda i: (i, 0))
    fvspec = pl.BlockSpec((1, Cp), lambda i: (0, 0))
    outf = pl.pallas_call(
        _stage3_kernel,
        grid=(total // rows,),
        in_specs=[fspec, fspec, fvspec, fvspec],
        out_specs=fspec,
        out_shape=jax.ShapeDtypeStruct((total, Cp), jnp.bfloat16),
        input_output_aliases={0: 0},           # write back into y2's buffer
        compiler_params=pltpu.CompilerParams(
            dimension_semantics=("parallel",),
            vmem_limit_bytes=vmem_limit),
    )(y2.reshape(total, Cp), x.reshape(total, Cp), a2, c2)

    out = outf.reshape(N, H, W, Cp)[..., :C]
    return jnp.transpose(out, (0, 3, 1, 2)).astype(x_nchw.dtype)


# ---------------------------------------------------------------------------
# Deterministic parameter init (shapes follow non_bottleneck_1d.__init__).
# Conv weights stored as (3, Cin, Cout) == torch (Cout, Cin, k).transpose.
# ---------------------------------------------------------------------------
def init_params(key, chann):
    ks = jax.random.split(key, 12)

    def conv_w(k):
        return 0.2 * jax.random.normal(k, (3, chann, chann), jnp.float32)

    def vec(k, scale=0.1):
        return scale * jax.random.normal(k, (1, chann), jnp.float32)

    return dict(
        w1=conv_w(ks[0]), b1=vec(ks[1]),
        w2=conv_w(ks[2]), b2=vec(ks[3]),
        w3=conv_w(ks[4]), b3=vec(ks[5]),
        w4=conv_w(ks[6]), b4=vec(ks[7]),
        g1=1.0 + vec(ks[8]), be1=vec(ks[9]),
        g2=1.0 + vec(ks[10]), be2=vec(ks[11]),
    )


# ---------------------------------------------------------------------------
# Pure-JAX reference (NCHW, lax.conv) to validate conv/BN semantics.
# ---------------------------------------------------------------------------
def reference_forward(x, p, dilated):
    def conv(v, w, b, along_h, dil):
        wt = jnp.transpose(w, (2, 1, 0))  # (Cout, Cin, 3)
        if along_h:
            wt = wt[:, :, :, None]                      # (Cout, Cin, 3, 1)
            pad, rdil = ((dil, dil), (0, 0)), (dil, 1)
        else:
            wt = wt[:, :, None, :]                      # (Cout, Cin, 1, 3)
            pad, rdil = ((0, 0), (dil, dil)), (1, dil)
        out = jax.lax.conv_general_dilated(
            v, wt, window_strides=(1, 1), padding=pad, rhs_dilation=rdil,
            dimension_numbers=("NCHW", "OIHW", "NCHW"))
        return out + b.reshape(1, -1, 1, 1)

    def bn(v, g, be):
        mean = jnp.mean(v, axis=(0, 2, 3), keepdims=True)
        var = jnp.mean((v - mean) ** 2, axis=(0, 2, 3), keepdims=True)
        return (v - mean) * jax.lax.rsqrt(var + EPS) * g.reshape(1, -1, 1, 1) \
            + be.reshape(1, -1, 1, 1)

    out = jax.nn.relu(conv(x, p["w1"], p["b1"], True, 1))
    out = jax.nn.relu(bn(conv(out, p["w2"], p["b2"], False, 1), p["g1"], p["be1"]))
    out = jax.nn.relu(conv(out, p["w3"], p["b3"], True, dilated))
    out = bn(conv(out, p["w4"], p["b4"], False, dilated), p["g2"], p["be2"])
    return jax.nn.relu(out + x)


if __name__ == "__main__":
    N, C, H, W = 2, 8, 16, 16
    dilated = 2

    key = jax.random.PRNGKey(0)
    kx, kp = jax.random.split(key)
    x = jax.random.normal(kx, (N, C, H, W), jnp.float32)
    params = init_params(kp, C)

    ref = reference_forward(x, params, dilated)

    # Exercise both the multi-strip halo path (tile_h=8 -> 2 strips, dilated
    # halos of 2 rows) and the hardware-auto-sized path.
    for th in (8, None):
        out = non_bottleneck_1d_pallas(x, params, dilated=dilated, tile_h=th)
        out = jax.block_until_ready(out)
        assert out.shape == ref.shape == (N, C, H, W)
        err = float(jnp.max(jnp.abs(out - ref)))
        # bf16 activations/weights end-to-end (f32 MXU accumulation + f32 BN
        # stats); tolerance sized for bf16 storage error.
        assert jnp.allclose(out, ref, rtol=5e-2, atol=1e-1), \
            f"tile_h={th}: max abs diff {err}"

    print("KERNEL_OK")
</pallas_src>

<mosaic_0001>
module attributes {stable_mosaic.version = 11 : i64} {
  func.func @_stage1_kernel(%arg0: i32, %arg1: i32, %arg2: memref<1x8x16x128xbf16, #tpu.memory_space<vmem>>, %arg3: memref<1x1x16x128xbf16, #tpu.memory_space<vmem>>, %arg4: memref<1x1x16x128xbf16, #tpu.memory_space<vmem>>, %arg5: memref<3x128x128xbf16, #tpu.memory_space<vmem>>, %arg6: memref<1x128xf32, #tpu.memory_space<vmem>>, %arg7: memref<3x128x128xbf16, #tpu.memory_space<vmem>>, %arg8: memref<1x8x16x128xbf16, #tpu.memory_space<vmem>>, %arg9: memref<1x1x2x128xf32, #tpu.memory_space<vmem>>) attributes {dimension_semantics = [#tpu.dimension_semantics<parallel>, #tpu.dimension_semantics<parallel>], iteration_bounds = array<i64: 2, 2>, scalar_prefetch = 0 : i64, scratch_operands = 0 : i64, tpu.core_type = #tpu.core_type<tc>, window_params = [{transform_indices = @transform_0, window_bounds = array<i64: 1, 8, 16, 128>}, {transform_indices = @transform_1, window_bounds = array<i64: 1, 1, 16, 128>}, {transform_indices = @transform_2, window_bounds = array<i64: 1, 1, 16, 128>}, {pipeline_mode = #tpu.pipeline_mode<synchronous>, transform_indices = @transform_3, window_bounds = array<i64: 3, 128, 128>}, {pipeline_mode = #tpu.pipeline_mode<synchronous>, transform_indices = @transform_4, window_bounds = array<i64: 1, 128>}, {pipeline_mode = #tpu.pipeline_mode<synchronous>, transform_indices = @transform_5, window_bounds = array<i64: 3, 128, 128>}, {transform_indices = @transform_6, window_bounds = array<i64: 1, 8, 16, 128>}, {transform_indices = @transform_7, window_bounds = array<i64: 1, 1, 2, 128>}]} {
    %c0 = arith.constant 0 : index
    %c0_0 = arith.constant 0 : index
    %c0_1 = arith.constant 0 : index
    %c0_2 = arith.constant 0 : index
    %0 = vector.load %arg3[%c0, %c0_0, %c0_1, %c0_2] : memref<1x1x16x128xbf16, #tpu.memory_space<vmem>>, vector<1x1x16x128xbf16>
    %1 = vector.shape_cast %0 : vector<1x1x16x128xbf16> to vector<1x16x128xbf16>
    %c0_3 = arith.constant 0 : index
    %c0_4 = arith.constant 0 : index
    %c0_5 = arith.constant 0 : index
    %c0_6 = arith.constant 0 : index
    %2 = vector.load %arg2[%c0_3, %c0_4, %c0_5, %c0_6] : memref<1x8x16x128xbf16, #tpu.memory_space<vmem>>, vector<1x8x16x128xbf16>
    %3 = vector.shape_cast %2 : vector<1x8x16x128xbf16> to vector<8x16x128xbf16>
    %c0_7 = arith.constant 0 : index
    %c0_8 = arith.constant 0 : index
    %c0_9 = arith.constant 0 : index
    %c0_10 = arith.constant 0 : index
    %4 = vector.load %arg4[%c0_7, %c0_8, %c0_9, %c0_10] : memref<1x1x16x128xbf16, #tpu.memory_space<vmem>>, vector<1x1x16x128xbf16>
    %5 = vector.shape_cast %4 : vector<1x1x16x128xbf16> to vector<1x16x128xbf16>
    %6 = tpu.concatenate %1, %3, %5 in 0 : vector<1x16x128xbf16>, vector<8x16x128xbf16>, vector<1x16x128xbf16> -> vector<10x16x128xbf16>
    %c0_11 = arith.constant 0 : index
    %c0_12 = arith.constant 0 : index
    %c0_13 = arith.constant 0 : index
    %7 = vector.load %arg5[%c0_11, %c0_12, %c0_13] : memref<3x128x128xbf16, #tpu.memory_space<vmem>>, vector<3x128x128xbf16>
    %8 = vector.extract_strided_slice %6 {offsets = [0, 0, 0], sizes = [8, 16, 128], strides = [1, 1, 1]} : vector<10x16x128xbf16> to vector<8x16x128xbf16>
    %9 = vector.shape_cast %8 : vector<8x16x128xbf16> to vector<128x128xbf16>
    %10 = vector.extract_strided_slice %7 {offsets = [0, 0, 0], sizes = [1, 128, 128], strides = [1, 1, 1]} : vector<3x128x128xbf16> to vector<1x128x128xbf16>
    %11 = vector.shape_cast %10 : vector<1x128x128xbf16> to vector<128x128xbf16>
    %cst = arith.constant dense<0.000000e+00> : vector<128x128xf32>
    %12 = tpu.matmul %9, %11, %cst {dimension_numbers = #tpu.dot_dimension_numbers<[1], [0], [0], [1], [0, 0, 1, 1], [], []>} : vector<128x128xbf16>, vector<128x128xbf16>, vector<128x128xf32> -> vector<128x128xf32>
    %13 = vector.extract_strided_slice %6 {offsets = [1, 0, 0], sizes = [8, 16, 128], strides = [1, 1, 1]} : vector<10x16x128xbf16> to vector<8x16x128xbf16>
    %14 = vector.shape_cast %13 : vector<8x16x128xbf16> to vector<128x128xbf16>
    %15 = vector.extract_strided_slice %7 {offsets = [1, 0, 0], sizes = [1, 128, 128], strides = [1, 1, 1]} : vector<3x128x128xbf16> to vector<1x128x128xbf16>
    %16 = vector.shape_cast %15 : vector<1x128x128xbf16> to vector<128x128xbf16>
    %cst_14 = arith.constant dense<0.000000e+00> : vector<128x128xf32>
    %17 = tpu.matmul %14, %16, %cst_14 {dimension_numbers = #tpu.dot_dimension_numbers<[1], [0], [0], [1], [0, 0, 1, 1], [], []>} : vector<128x128xbf16>, vector<128x128xbf16>, vector<128x128xf32> -> vector<128x128xf32>
    %18 = arith.addf %12, %17 : vector<128x128xf32>
    %19 = vector.extract_strided_slice %6 {offsets = [2, 0, 0], sizes = [8, 16, 128], strides = [1, 1, 1]} : vector<10x16x128xbf16> to vector<8x16x128xbf16>
    %20 = vector.shape_cast %19 : vector<8x16x128xbf16> to vector<128x128xbf16>
    %21 = vector.extract_strided_slice %7 {offsets = [2, 0, 0], sizes = [1, 128, 128], strides = [1, 1, 1]} : vector<3x128x128xbf16> to vector<1x128x128xbf16>
    %22 = vector.shape_cast %21 : vector<1x128x128xbf16> to vector<128x128xbf16>
    %cst_15 = arith.constant dense<0.000000e+00> : vector<128x128xf32>
    %23 = tpu.matmul %20, %22, %cst_15 {dimension_numbers = #tpu.dot_dimension_numbers<[1], [0], [0], [1], [0, 0, 1, 1], [], []>} : vector<128x128xbf16>, vector<128x128xbf16>, vector<128x128xf32> -> vector<128x128xf32>
    %24 = arith.addf %18, %23 : vector<128x128xf32>
    %25 = vector.shape_cast %24 : vector<128x128xf32> to vector<8x16x128xf32>
    %c0_16 = arith.constant 0 : index
    %c0_17 = arith.constant 0 : index
    %26 = vector.load %arg6[%c0_16, %c0_17] : memref<1x128xf32, #tpu.memory_space<vmem>>, vector<1x128xf32>
    %27 = vector.shape_cast %26 : vector<1x128xf32> to vector<1x1x128xf32>
    %28 = vector.broadcast %27 : vector<1x1x128xf32> to vector<8x16x128xf32>
    %29 = arith.addf %25, %28 : vector<8x16x128xf32>
    %cst_18 = arith.constant 0.000000e+00 : f32
    %30 = vector.broadcast %cst_18 : f32 to vector<8x16x128xf32>
    %31 = arith.maximumf %29, %30 : vector<8x16x128xf32>
    %c0_19 = arith.constant 0 : index
    %c0_20 = arith.constant 0 : index
    %c0_21 = arith.constant 0 : index
    %32 = vector.load %arg7[%c0_19, %c0_20, %c0_21] : memref<3x128x128xbf16, #tpu.memory_space<vmem>>, vector<3x128x128xbf16>
    %33 = arith.truncf %31 : vector<8x16x128xf32> to vector<8x16x128xbf16>
    %cst_22 = arith.constant 0.000000e+00 : bf16
    %34 = vector.broadcast %cst_22 : bf16 to vector<8x1x128xbf16>
    %35 = vector.extract_strided_slice %33 {offsets = [0, 0, 0], sizes = [8, 15, 128], strides = [1, 1, 1]} : vector<8x16x128xbf16> to vector<8x15x128xbf16>
    %36 = tpu.concatenate %34, %35 in 1 : vector<8x1x128xbf16>, vector<8x15x128xbf16> -> vector<8x16x128xbf16>
    %37 = vector.extract_strided_slice %33 {offsets = [0, 1, 0], sizes = [8, 15, 128], strides = [1, 1, 1]} : vector<8x16x128xbf16> to vector<8x15x128xbf16>
    %38 = tpu.concatenate %37, %34 in 1 : vector<8x15x128xbf16>, vector<8x1x128xbf16> -> vector<8x16x128xbf16>
    %39 = vector.shape_cast %36 : vector<8x16x128xbf16> to vector<128x128xbf16>
    %40 = vector.extract_strided_slice %32 {offsets = [0, 0, 0], sizes = [1, 128, 128], strides = [1, 1, 1]} : vector<3x128x128xbf16> to vector<1x128x128xbf16>
    %41 = vector.shape_cast %40 : vector<1x128x128xbf16> to vector<128x128xbf16>
    %cst_23 = arith.constant dense<0.000000e+00> : vector<128x128xf32>
    %42 = tpu.matmul %39, %41, %cst_23 {dimension_numbers = #tpu.dot_dimension_numbers<[1], [0], [0], [1], [0, 0, 1, 1], [], []>} : vector<128x128xbf16>, vector<128x128xbf16>, vector<128x128xf32> -> vector<128x128xf32>
    %43 = vector.shape_cast %33 : vector<8x16x128xbf16> to vector<128x128xbf16>
    %44 = vector.extract_strided_slice %32 {offsets = [1, 0, 0], sizes = [1, 128, 128], strides = [1, 1, 1]} : vector<3x128x128xbf16> to vector<1x128x128xbf16>
    %45 = vector.shape_cast %44 : vector<1x128x128xbf16> to vector<128x128xbf16>
    %cst_24 = arith.constant dense<0.000000e+00> : vector<128x128xf32>
    %46 = tpu.matmul %43, %45, %cst_24 {dimension_numbers = #tpu.dot_dimension_numbers<[1], [0], [0], [1], [0, 0, 1, 1], [], []>} : vector<128x128xbf16>, vector<128x128xbf16>, vector<128x128xf32> -> vector<128x128xf32>
    %47 = arith.addf %42, %46 : vector<128x128xf32>
    %48 = vector.shape_cast %38 : vector<8x16x128xbf16> to vector<128x128xbf16>
    %49 = vector.extract_strided_slice %32 {offsets = [2, 0, 0], sizes = [1, 128, 128], strides = [1, 1, 1]} : vector<3x128x128xbf16> to vector<1x128x128xbf16>
    %50 = vector.shape_cast %49 : vector<1x128x128xbf16> to vector<128x128xbf16>
    %cst_25 = arith.constant dense<0.000000e+00> : vector<128x128xf32>
    %51 = tpu.matmul %48, %50, %cst_25 {dimension_numbers = #tpu.dot_dimension_numbers<[1], [0], [0], [1], [0, 0, 1, 1], [], []>} : vector<128x128xbf16>, vector<128x128xbf16>, vector<128x128xf32> -> vector<128x128xf32>
    %52 = arith.addf %47, %51 : vector<128x128xf32>
    %53 = vector.shape_cast %52 : vector<128x128xf32> to vector<8x16x128xf32>
    %54 = arith.truncf %53 : vector<8x16x128xf32> to vector<8x16x128xbf16>
    %c0_26 = arith.constant 0 : index
    %c0_27 = arith.constant 0 : index
    %c0_28 = arith.constant 0 : index
    %c0_29 = arith.constant 0 : index
    %55 = vector.load %arg8[%c0_26, %c0_27, %c0_28, %c0_29] : memref<1x8x16x128xbf16, #tpu.memory_space<vmem>>, vector<1x8x16x128xbf16>
    %56 = vector.shape_cast %55 : vector<1x8x16x128xbf16> to vector<8x16x128xbf16>
    %57 = vector.shape_cast %54 : vector<8x16x128xbf16> to vector<1x8x16x128xbf16>
    tpu.vector_store %arg8[%c0_26, %c0_27, %c0_28, %c0_29], %57 {strides = array<i32>} : memref<1x8x16x128xbf16, #tpu.memory_space<vmem>>, vector<1x8x16x128xbf16>,
    %58 = vector.shape_cast %53 : vector<8x16x128xf32> to vector<128x128xf32>
    %cst_30 = arith.constant dense<0.000000e+00> : vector<128xf32>
    %59 = vector.multi_reduction <add>, %58, %cst_30 [0] : vector<128x128xf32> to vector<128xf32>
    %60 = vector.shape_cast %59 : vector<128xf32> to vector<1x128xf32>
    %61 = arith.mulf %58, %58 : vector<128x128xf32>
    %cst_31 = arith.constant dense<0.000000e+00> : vector<128xf32>
    %62 = vector.multi_reduction <add>, %61, %cst_31 [0] : vector<128x128xf32> to vector<128xf32>
    %63 = vector.shape_cast %62 : vector<128xf32> to vector<1x128xf32>
    %64 = tpu.concatenate %60, %63 in 0 : vector<1x128xf32>, vector<1x128xf32> -> vector<2x128xf32>
    %c0_32 = arith.constant 0 : index
    %c0_33 = arith.constant 0 : index
    %c0_34 = arith.constant 0 : index
    %c0_35 = arith.constant 0 : index
    %65 = vector.load %arg9[%c0_32, %c0_33, %c0_34, %c0_35] : memref<1x1x2x128xf32, #tpu.memory_space<vmem>>, vector<1x1x2x128xf32>
    %66 = vector.shape_cast %65 : vector<1x1x2x128xf32> to vector<2x128xf32>
    %67 = vector.shape_cast %64 : vector<2x128xf32> to vector<1x1x2x128xf32>
    tpu.vector_store %arg9[%c0_32, %c0_33, %c0_34, %c0_35], %67 {strides = array<i32>} : memref<1x1x2x128xf32, #tpu.memory_space<vmem>>, vector<1x1x2x128xf32>,
    return
  }
  func.func @transform_0(%arg0: i32, %arg1: i32) -> (i32, i32, i32, i32) {
    %c0_i32 = arith.constant 0 : i32
    %c0_i32_0 = arith.constant 0 : i32
    %c0_i32_1 = arith.constant 0 : i32
    return %arg0, %arg1, %c0_i32, %c0_i32_0 : i32, i32, i32, i32
  }
  func.func @transform_1(%arg0: i32, %arg1: i32) -> (i32, i32, i32, i32) {
    %c0_i32 = arith.constant 0 : i32
    %c0_i32_0 = arith.constant 0 : i32
    %c0_i32_1 = arith.constant 0 : i32
    return %arg0, %arg1, %c0_i32, %c0_i32_0 : i32, i32, i32, i32
  }
  func.func @transform_2(%arg0: i32, %arg1: i32) -> (i32, i32, i32, i32) {
    %c0_i32 = arith.constant 0 : i32
    %c0_i32_0 = arith.constant 0 : i32
    %c0_i32_1 = arith.constant 0 : i32
    return %arg0, %arg1, %c0_i32, %c0_i32_0 : i32, i32, i32, i32
  }
  func.func @transform_3(%arg0: i32, %arg1: i32) -> (i32, i32, i32) {
    %c0_i32 = arith.constant 0 : i32
    %c0_i32_0 = arith.constant 0 : i32
    %c0_i32_1 = arith.constant 0 : i32
    %c0_i32_2 = arith.constant 0 : i32
    return %c0_i32, %c0_i32_0, %c0_i32_1 : i32, i32, i32
  }
  func.func @transform_4(%arg0: i32, %arg1: i32) -> (i32, i32) {
    %c0_i32 = arith.constant 0 : i32
    %c0_i32_0 = arith.constant 0 : i32
    %c0_i32_1 = arith.constant 0 : i32
    return %c0_i32, %c0_i32_0 : i32, i32
  }
  func.func @transform_5(%arg0: i32, %arg1: i32) -> (i32, i32, i32) {
    %c0_i32 = arith.constant 0 : i32
    %c0_i32_0 = arith.constant 0 : i32
    %c0_i32_1 = arith.constant 0 : i32
    %c0_i32_2 = arith.constant 0 : i32
    return %c0_i32, %c0_i32_0, %c0_i32_1 : i32, i32, i32
  }
  func.func @transform_6(%arg0: i32, %arg1: i32) -> (i32, i32, i32, i32) {
    %c0_i32 = arith.constant 0 : i32
    %c0_i32_0 = arith.constant 0 : i32
    %c0_i32_1 = arith.constant 0 : i32
    return %arg0, %arg1, %c0_i32, %c0_i32_0 : i32, i32, i32, i32
  }
  func.func @transform_7(%arg0: i32, %arg1: i32) -> (i32, i32, i32, i32) {
    %c0_i32 = arith.constant 0 : i32
    %c0_i32_0 = arith.constant 0 : i32
    %c0_i32_1 = arith.constant 0 : i32
    return %arg0, %arg1, %c0_i32, %c0_i32_0 : i32, i32, i32, i32
  }
}

module attributes {stable_mosaic.version = 11 : i64} {
  func.func @_stage3_kernel(%arg0: i32, %arg1: memref<512x128xbf16, #tpu.memory_space<vmem>>, %arg2: memref<512x128xbf16, #tpu.memory_space<vmem>>, %arg3: memref<1x128xf32, #tpu.memory_space<vmem>>, %arg4: memref<1x128xf32, #tpu.memory_space<vmem>>, %arg5: memref<512x128xbf16, #tpu.memory_space<vmem>>) attributes {dimension_semantics = [#tpu.dimension_semantics<parallel>], iteration_bounds = array<i64: 1>, scalar_prefetch = 0 : i64, scratch_operands = 0 : i64, tpu.core_type = #tpu.core_type<tc>, window_params = [{transform_indices = @transform_0, window_bounds = array<i64: 512, 128>}, {transform_indices = @transform_1, window_bounds = array<i64: 512, 128>}, {pipeline_mode = #tpu.pipeline_mode<synchronous>, transform_indices = @transform_2, window_bounds = array<i64: 1, 128>}, {pipeline_mode = #tpu.pipeline_mode<synchronous>, transform_indices = @transform_3, window_bounds = array<i64: 1, 128>}, {transform_indices = @transform_4, window_bounds = array<i64: 512, 128>}]} {
    %c0 = arith.constant 0 : index
    %c0_0 = arith.constant 0 : index
    %0 = vector.load %arg1[%c0, %c0_0] : memref<512x128xbf16, #tpu.memory_space<vmem>>, vector<512x128xbf16>
    %1 = arith.extf %0 : vector<512x128xbf16> to vector<512x128xf32>
    %c0_1 = arith.constant 0 : index
    %c0_2 = arith.constant 0 : index
    %2 = vector.load %arg3[%c0_1, %c0_2] : memref<1x128xf32, #tpu.memory_space<vmem>>, vector<1x128xf32>
    %3 = vector.broadcast %2 : vector<1x128xf32> to vector<512x128xf32>
    %4 = arith.mulf %1, %3 : vector<512x128xf32>
    %c0_3 = arith.constant 0 : index
    %c0_4 = arith.constant 0 : index
    %5 = vector.load %arg4[%c0_3, %c0_4] : memref<1x128xf32, #tpu.memory_space<vmem>>, vector<1x128xf32>
    %6 = vector.broadcast %5 : vector<1x128xf32> to vector<512x128xf32>
    %7 = arith.addf %4, %6 : vector<512x128xf32>
    %c0_5 = arith.constant 0 : index
    %c0_6 = arith.constant 0 : index
    %8 = vector.load %arg2[%c0_5, %c0_6] : memref<512x128xbf16, #tpu.memory_space<vmem>>, vector<512x128xbf16>
    %9 = arith.extf %8 : vector<512x128xbf16> to vector<512x128xf32>
    %10 = arith.addf %7, %9 : vector<512x128xf32>
    %cst = arith.constant 0.000000e+00 : f32
    %11 = vector.broadcast %cst : f32 to vector<512x128xf32>
    %12 = arith.maximumf %10, %11 : vector<512x128xf32>
    %13 = arith.truncf %12 : vector<512x128xf32> to vector<512x128xbf16>
    %c0_7 = arith.constant 0 : index
    %c0_8 = arith.constant 0 : index
    %14 = vector.load %arg5[%c0_7, %c0_8] : memref<512x128xbf16, #tpu.memory_space<vmem>>, vector<512x128xbf16>
    tpu.vector_store %arg5[%c0_7, %c0_8], %13 {strides = array<i32>} : memref<512x128xbf16, #tpu.memory_space<vmem>>, vector<512x128xbf16>,
    return
  }
  func.func @transform_0(%arg0: i32) -> (i32, i32) {
    %c0_i32 = arith.constant 0 : i32
    %c0_i32_0 = arith.constant 0 : i32
    return %arg0, %c0_i32 : i32, i32
  }
  func.func @transform_1(%arg0: i32) -> (i32, i32) {
    %c0_i32 = arith.constant 0 : i32
    %c0_i32_0 = arith.constant 0 : i32
    return %arg0, %c0_i32 : i32, i32
  }
  func.func @transform_2(%arg0: i32) -> (i32, i32) {
    %c0_i32 = arith.constant 0 : i32
    %c0_i32_0 = arith.constant 0 : i32
    %c0_i32_1 = arith.constant 0 : i32
    return %c0_i32, %c0_i32_0 : i32, i32
  }
  func.func @transform_3(%arg0: i32) -> (i32, i32) {
    %c0_i32 = arith.constant 0 : i32
    %c0_i32_0 = arith.constant 0 : i32
    %c0_i32_1 = arith.constant 0 : i32
    return %c0_i32, %c0_i32_0 : i32, i32
  }
  func.func @transform_4(%arg0: i32) -> (i32, i32) {
    %c0_i32 = arith.constant 0 : i32
    %c0_i32_0 = arith.constant 0 : i32
    return %arg0, %c0_i32 : i32, i32
  }
}

module attributes {stable_mosaic.version = 11 : i64} {
  func.func @_stage2_kernel(%arg0: i32, %arg1: i32, %arg2: memref<1x8x16x128xbf16, #tpu.memory_space<vmem>>, %arg3: memref<1x2x16x128xbf16, #tpu.memory_space<vmem>>, %arg4: memref<1x2x16x128xbf16, #tpu.memory_space<vmem>>, %arg5: memref<1x128xf32, #tpu.memory_space<vmem>>, %arg6: memref<1x128xf32, #tpu.memory_space<vmem>>, %arg7: memref<3x128x128xbf16, #tpu.memory_space<vmem>>, %arg8: memref<1x128xf32, #tpu.memory_space<vmem>>, %arg9: memref<3x128x128xbf16, #tpu.memory_space<vmem>>, %arg10: memref<1x8x16x128xbf16, #tpu.memory_space<vmem>>, %arg11: memref<1x1x2x128xf32, #tpu.memory_space<vmem>>) attributes {dimension_semantics = [#tpu.dimension_semantics<parallel>, #tpu.dimension_semantics<parallel>], iteration_bounds = array<i64: 2, 2>, scalar_prefetch = 0 : i64, scratch_operands = 0 : i64, tpu.core_type = #tpu.core_type<tc>, window_params = [{transform_indices = @transform_0, window_bounds = array<i64: 1, 8, 16, 128>}, {transform_indices = @transform_1, window_bounds = array<i64: 1, 2, 16, 128>}, {transform_indices = @transform_2, window_bounds = array<i64: 1, 2, 16, 128>}, {pipeline_mode = #tpu.pipeline_mode<synchronous>, transform_indices = @transform_3, window_bounds = array<i64: 1, 128>}, {pipeline_mode = #tpu.pipeline_mode<synchronous>, transform_indices = @transform_4, window_bounds = array<i64: 1, 128>}, {pipeline_mode = #tpu.pipeline_mode<synchronous>, transform_indices = @transform_5, window_bounds = array<i64: 3, 128, 128>}, {pipeline_mode = #tpu.pipeline_mode<synchronous>, transform_indices = @transform_6, window_bounds = array<i64: 1, 128>}, {pipeline_mode = #tpu.pipeline_mode<synchronous>, transform_indices = @transform_7, window_bounds = array<i64: 3, 128, 128>}, {transform_indices = @transform_8, window_bounds = array<i64: 1, 8, 16, 128>}, {transform_indices = @transform_9, window_bounds = array<i64: 1, 1, 2, 128>}]} {
    %c0 = arith.constant 0 : index
    %c0_0 = arith.constant 0 : index
    %0 = vector.load %arg5[%c0, %c0_0] : memref<1x128xf32, #tpu.memory_space<vmem>>, vector<1x128xf32>
    %c0_1 = arith.constant 0 : index
    %c0_2 = arith.constant 0 : index
    %1 = vector.load %arg6[%c0_1, %c0_2] : memref<1x128xf32, #tpu.memory_space<vmem>>, vector<1x128xf32>
    %c0_i32 = arith.constant 0 : i32
    %2 = arith.cmpi sgt, %arg1, %c0_i32 : i32
    %3 = arith.extui %2 : i1 to i32
    %4 = arith.sitofp %3 : i32 to f32
    %c1_i32 = arith.constant 1 : i32
    %5 = arith.cmpi slt, %arg1, %c1_i32 : i32
    %6 = arith.extui %5 : i1 to i32
    %7 = arith.sitofp %6 : i32 to f32
    %c0_3 = arith.constant 0 : index
    %c0_4 = arith.constant 0 : index
    %c0_5 = arith.constant 0 : index
    %c0_6 = arith.constant 0 : index
    %8 = vector.load %arg3[%c0_3, %c0_4, %c0_5, %c0_6] : memref<1x2x16x128xbf16, #tpu.memory_space<vmem>>, vector<1x2x16x128xbf16>
    %9 = vector.shape_cast %8 : vector<1x2x16x128xbf16> to vector<2x16x128xbf16>
    %10 = arith.extf %9 : vector<2x16x128xbf16> to vector<2x16x128xf32>
    %11 = vector.shape_cast %0 : vector<1x128xf32> to vector<1x1x128xf32>
    %12 = vector.broadcast %11 : vector<1x1x128xf32> to vector<2x16x128xf32>
    %13 = arith.mulf %10, %12 : vector<2x16x128xf32>
    %14 = vector.shape_cast %1 : vector<1x128xf32> to vector<1x1x128xf32>
    %15 = vector.broadcast %14 : vector<1x1x128xf32> to vector<2x16x128xf32>
    %16 = arith.addf %13, %15 : vector<2x16x128xf32>
    %cst = arith.constant 0.000000e+00 : f32
    %17 = vector.broadcast %cst : f32 to vector<2x16x128xf32>
    %18 = arith.maximumf %16, %17 : vector<2x16x128xf32>
    %19 = vector.broadcast %4 : f32 to vector<2x16x128xf32>
    %20 = arith.mulf %18, %19 : vector<2x16x128xf32>
    %21 = arith.truncf %20 : vector<2x16x128xf32> to vector<2x16x128xbf16>
    %c0_7 = arith.constant 0 : index
    %c0_8 = arith.constant 0 : index
    %c0_9 = arith.constant 0 : index
    %c0_10 = arith.constant 0 : index
    %22 = vector.load %arg4[%c0_7, %c0_8, %c0_9, %c0_10] : memref<1x2x16x128xbf16, #tpu.memory_space<vmem>>, vector<1x2x16x128xbf16>
    %23 = vector.shape_cast %22 : vector<1x2x16x128xbf16> to vector<2x16x128xbf16>
    %24 = arith.extf %23 : vector<2x16x128xbf16> to vector<2x16x128xf32>
    %25 = vector.shape_cast %0 : vector<1x128xf32> to vector<1x1x128xf32>
    %26 = vector.broadcast %25 : vector<1x1x128xf32> to vector<2x16x128xf32>
    %27 = arith.mulf %24, %26 : vector<2x16x128xf32>
    %28 = vector.shape_cast %1 : vector<1x128xf32> to vector<1x1x128xf32>
    %29 = vector.broadcast %28 : vector<1x1x128xf32> to vector<2x16x128xf32>
    %30 = arith.addf %27, %29 : vector<2x16x128xf32>
    %cst_11 = arith.constant 0.000000e+00 : f32
    %31 = vector.broadcast %cst_11 : f32 to vector<2x16x128xf32>
    %32 = arith.maximumf %30, %31 : vector<2x16x128xf32>
    %33 = vector.broadcast %7 : f32 to vector<2x16x128xf32>
    %34 = arith.mulf %32, %33 : vector<2x16x128xf32>
    %35 = arith.truncf %34 : vector<2x16x128xf32> to vector<2x16x128xbf16>
    %c0_12 = arith.constant 0 : index
    %c0_13 = arith.constant 0 : index
    %c0_14 = arith.constant 0 : index
    %c0_15 = arith.constant 0 : index
    %36 = vector.load %arg2[%c0_12, %c0_13, %c0_14, %c0_15] : memref<1x8x16x128xbf16, #tpu.memory_space<vmem>>, vector<1x8x16x128xbf16>
    %37 = vector.shape_cast %36 : vector<1x8x16x128xbf16> to vector<8x16x128xbf16>
    %38 = arith.extf %37 : vector<8x16x128xbf16> to vector<8x16x128xf32>
    %39 = vector.shape_cast %0 : vector<1x128xf32> to vector<1x1x128xf32>
    %40 = vector.broadcast %39 : vector<1x1x128xf32> to vector<8x16x128xf32>
    %41 = arith.mulf %38, %40 : vector<8x16x128xf32>
    %42 = vector.shape_cast %1 : vector<1x128xf32> to vector<1x1x128xf32>
    %43 = vector.broadcast %42 : vector<1x1x128xf32> to vector<8x16x128xf32>
    %44 = arith.addf %41, %43 : vector<8x16x128xf32>
    %cst_16 = arith.constant 0.000000e+00 : f32
    %45 = vector.broadcast %cst_16 : f32 to vector<8x16x128xf32>
    %46 = arith.maximumf %44, %45 : vector<8x16x128xf32>
    %47 = arith.truncf %46 : vector<8x16x128xf32> to vector<8x16x128xbf16>
    %48 = tpu.concatenate %21, %47, %35 in 0 : vector<2x16x128xbf16>, vector<8x16x128xbf16>, vector<2x16x128xbf16> -> vector<12x16x128xbf16>
    %c0_17 = arith.constant 0 : index
    %c0_18 = arith.constant 0 : index
    %c0_19 = arith.constant 0 : index
    %49 = vector.load %arg7[%c0_17, %c0_18, %c0_19] : memref<3x128x128xbf16, #tpu.memory_space<vmem>>, vector<3x128x128xbf16>
    %50 = vector.extract_strided_slice %48 {offsets = [0, 0, 0], sizes = [8, 16, 128], strides = [1, 1, 1]} : vector<12x16x128xbf16> to vector<8x16x128xbf16>
    %51 = vector.shape_cast %50 : vector<8x16x128xbf16> to vector<128x128xbf16>
    %52 = vector.extract_strided_slice %49 {offsets = [0, 0, 0], sizes = [1, 128, 128], strides = [1, 1, 1]} : vector<3x128x128xbf16> to vector<1x128x128xbf16>
    %53 = vector.shape_cast %52 : vector<1x128x128xbf16> to vector<128x128xbf16>
    %cst_20 = arith.constant dense<0.000000e+00> : vector<128x128xf32>
    %54 = tpu.matmul %51, %53, %cst_20 {dimension_numbers = #tpu.dot_dimension_numbers<[1], [0], [0], [1], [0, 0, 1, 1], [], []>} : vector<128x128xbf16>, vector<128x128xbf16>, vector<128x128xf32> -> vector<128x128xf32>
    %55 = vector.extract_strided_slice %48 {offsets = [2, 0, 0], sizes = [8, 16, 128], strides = [1, 1, 1]} : vector<12x16x128xbf16> to vector<8x16x128xbf16>
    %56 = vector.shape_cast %55 : vector<8x16x128xbf16> to vector<128x128xbf16>
    %57 = vector.extract_strided_slice %49 {offsets = [1, 0, 0], sizes = [1, 128, 128], strides = [1, 1, 1]} : vector<3x128x128xbf16> to vector<1x128x128xbf16>
    %58 = vector.shape_cast %57 : vector<1x128x128xbf16> to vector<128x128xbf16>
    %cst_21 = arith.constant dense<0.000000e+00> : vector<128x128xf32>
    %59 = tpu.matmul %56, %58, %cst_21 {dimension_numbers = #tpu.dot_dimension_numbers<[1], [0], [0], [1], [0, 0, 1, 1], [], []>} : vector<128x128xbf16>, vector<128x128xbf16>, vector<128x128xf32> -> vector<128x128xf32>
    %60 = arith.addf %54, %59 : vector<128x128xf32>
    %61 = vector.extract_strided_slice %48 {offsets = [4, 0, 0], sizes = [8, 16, 128], strides = [1, 1, 1]} : vector<12x16x128xbf16> to vector<8x16x128xbf16>
    %62 = vector.shape_cast %61 : vector<8x16x128xbf16> to vector<128x128xbf16>
    %63 = vector.extract_strided_slice %49 {offsets = [2, 0, 0], sizes = [1, 128, 128], strides = [1, 1, 1]} : vector<3x128x128xbf16> to vector<1x128x128xbf16>
    %64 = vector.shape_cast %63 : vector<1x128x128xbf16> to vector<128x128xbf16>
    %cst_22 = arith.constant dense<0.000000e+00> : vector<128x128xf32>
    %65 = tpu.matmul %62, %64, %cst_22 {dimension_numbers = #tpu.dot_dimension_numbers<[1], [0], [0], [1], [0, 0, 1, 1], [], []>} : vector<128x128xbf16>, vector<128x128xbf16>, vector<128x128xf32> -> vector<128x128xf32>
    %66 = arith.addf %60, %65 : vector<128x128xf32>
    %67 = vector.shape_cast %66 : vector<128x128xf32> to vector<8x16x128xf32>
    %c0_23 = arith.constant 0 : index
    %c0_24 = arith.constant 0 : index
    %68 = vector.load %arg8[%c0_23, %c0_24] : memref<1x128xf32, #tpu.memory_space<vmem>>, vector<1x128xf32>
    %69 = vector.shape_cast %68 : vector<1x128xf32> to vector<1x1x128xf32>
    %70 = vector.broadcast %69 : vector<1x1x128xf32> to vector<8x16x128xf32>
    %71 = arith.addf %67, %70 : vector<8x16x128xf32>
    %cst_25 = arith.constant 0.000000e+00 : f32
    %72 = vector.broadcast %cst_25 : f32 to vector<8x16x128xf32>
    %73 = arith.maximumf %71, %72 : vector<8x16x128xf32>
    %c0_26 = arith.constant 0 : index
    %c0_27 = arith.constant 0 : index
    %c0_28 = arith.constant 0 : index
    %74 = vector.load %arg9[%c0_26, %c0_27, %c0_28] : memref<3x128x128xbf16, #tpu.memory_space<vmem>>, vector<3x128x128xbf16>
    %75 = arith.truncf %73 : vector<8x16x128xf32> to vector<8x16x128xbf16>
    %cst_29 = arith.constant 0.000000e+00 : bf16
    %76 = vector.broadcast %cst_29 : bf16 to vector<8x2x128xbf16>
    %77 = vector.extract_strided_slice %75 {offsets = [0, 0, 0], sizes = [8, 14, 128], strides = [1, 1, 1]} : vector<8x16x128xbf16> to vector<8x14x128xbf16>
    %78 = tpu.concatenate %76, %77 in 1 : vector<8x2x128xbf16>, vector<8x14x128xbf16> -> vector<8x16x128xbf16>
    %79 = vector.extract_strided_slice %75 {offsets = [0, 2, 0], sizes = [8, 14, 128], strides = [1, 1, 1]} : vector<8x16x128xbf16> to vector<8x14x128xbf16>
    %80 = tpu.concatenate %79, %76 in 1 : vector<8x14x128xbf16>, vector<8x2x128xbf16> -> vector<8x16x128xbf16>
    %81 = vector.shape_cast %78 : vector<8x16x128xbf16> to vector<128x128xbf16>
    %82 = vector.extract_strided_slice %74 {offsets = [0, 0, 0], sizes = [1, 128, 128], strides = [1, 1, 1]} : vector<3x128x128xbf16> to vector<1x128x128xbf16>
    %83 = vector.shape_cast %82 : vector<1x128x128xbf16> to vector<128x128xbf16>
    %cst_30 = arith.constant dense<0.000000e+00> : vector<128x128xf32>
    %84 = tpu.matmul %81, %83, %cst_30 {dimension_numbers = #tpu.dot_dimension_numbers<[1], [0], [0], [1], [0, 0, 1, 1], [], []>} : vector<128x128xbf16>, vector<128x128xbf16>, vector<128x128xf32> -> vector<128x128xf32>
    %85 = vector.shape_cast %75 : vector<8x16x128xbf16> to vector<128x128xbf16>
    %86 = vector.extract_strided_slice %74 {offsets = [1, 0, 0], sizes = [1, 128, 128], strides = [1, 1, 1]} : vector<3x128x128xbf16> to vector<1x128x128xbf16>
    %87 = vector.shape_cast %86 : vector<1x128x128xbf16> to vector<128x128xbf16>
    %cst_31 = arith.constant dense<0.000000e+00> : vector<128x128xf32>
    %88 = tpu.matmul %85, %87, %cst_31 {dimension_numbers = #tpu.dot_dimension_numbers<[1], [0], [0], [1], [0, 0, 1, 1], [], []>} : vector<128x128xbf16>, vector<128x128xbf16>, vector<128x128xf32> -> vector<128x128xf32>
    %89 = arith.addf %84, %88 : vector<128x128xf32>
    %90 = vector.shape_cast %80 : vector<8x16x128xbf16> to vector<128x128xbf16>
    %91 = vector.extract_strided_slice %74 {offsets = [2, 0, 0], sizes = [1, 128, 128], strides = [1, 1, 1]} : vector<3x128x128xbf16> to vector<1x128x128xbf16>
    %92 = vector.shape_cast %91 : vector<1x128x128xbf16> to vector<128x128xbf16>
    %cst_32 = arith.constant dense<0.000000e+00> : vector<128x128xf32>
    %93 = tpu.matmul %90, %92, %cst_32 {dimension_numbers = #tpu.dot_dimension_numbers<[1], [0], [0], [1], [0, 0, 1, 1], [], []>} : vector<128x128xbf16>, vector<128x128xbf16>, vector<128x128xf32> -> vector<128x128xf32>
    %94 = arith.addf %89, %93 : vector<128x128xf32>
    %95 = vector.shape_cast %94 : vector<128x128xf32> to vector<8x16x128xf32>
    %96 = arith.truncf %95 : vector<8x16x128xf32> to vector<8x16x128xbf16>
    %c0_33 = arith.constant 0 : index
    %c0_34 = arith.constant 0 : index
    %c0_35 = arith.constant 0 : index
    %c0_36 = arith.constant 0 : index
    %97 = vector.load %arg10[%c0_33, %c0_34, %c0_35, %c0_36] : memref<1x8x16x128xbf16, #tpu.memory_space<vmem>>, vector<1x8x16x128xbf16>
    %98 = vector.shape_cast %97 : vector<1x8x16x128xbf16> to vector<8x16x128xbf16>
    %99 = vector.shape_cast %96 : vector<8x16x128xbf16> to vector<1x8x16x128xbf16>
    tpu.vector_store %arg10[%c0_33, %c0_34, %c0_35, %c0_36], %99 {strides = array<i32>} : memref<1x8x16x128xbf16, #tpu.memory_space<vmem>>, vector<1x8x16x128xbf16>,
    %100 = vector.shape_cast %95 : vector<8x16x128xf32> to vector<128x128xf32>
    %cst_37 = arith.constant dense<0.000000e+00> : vector<128xf32>
    %101 = vector.multi_reduction <add>, %100, %cst_37 [0] : vector<128x128xf32> to vector<128xf32>
    %102 = vector.shape_cast %101 : vector<128xf32> to vector<1x128xf32>
    %103 = arith.mulf %100, %100 : vector<128x128xf32>
    %cst_38 = arith.constant dense<0.000000e+00> : vector<128xf32>
    %104 = vector.multi_reduction <add>, %103, %cst_38 [0] : vector<128x128xf32> to vector<128xf32>
    %105 = vector.shape_cast %104 : vector<128xf32> to vector<1x128xf32>
    %106 = tpu.concatenate %102, %105 in 0 : vector<1x128xf32>, vector<1x128xf32> -> vector<2x128xf32>
    %c0_39 = arith.constant 0 : index
    %c0_40 = arith.constant 0 : index
    %c0_41 = arith.constant 0 : index
    %c0_42 = arith.constant 0 : index
    %107 = vector.load %arg11[%c0_39, %c0_40, %c0_41, %c0_42] : memref<1x1x2x128xf32, #tpu.memory_space<vmem>>, vector<1x1x2x128xf32>
    %108 = vector.shape_cast %107 : vector<1x1x2x128xf32> to vector<2x128xf32>
    %109 = vector.shape_cast %106 : vector<2x128xf32> to vector<1x1x2x128xf32>
    tpu.vector_store %arg11[%c0_39, %c0_40, %c0_41, %c0_42], %109 {strides = array<i32>} : memref<1x1x2x128xf32, #tpu.memory_space<vmem>>, vector<1x1x2x128xf32>,
    return
  }
  func.func @transform_0(%arg0: i32, %arg1: i32) -> (i32, i32, i32, i32) {
    %c0_i32 = arith.constant 0 : i32
    %c0_i32_0 = arith.constant 0 : i32
    %c0_i32_1 = arith.constant 0 : i32
    return %arg0, %arg1, %c0_i32, %c0_i32_0 : i32, i32, i32, i32
  }
  func.func @transform_1(%arg0: i32, %arg1: i32) -> (i32, i32, i32, i32) {
    %c0_i32 = arith.constant 0 : i32
    %c0_i32_0 = arith.constant 0 : i32
    %c0_i32_1 = arith.constant 0 : i32
    return %arg0, %arg1, %c0_i32, %c0_i32_0 : i32, i32, i32, i32
  }
  func.func @transform_2(%arg0: i32, %arg1: i32) -> (i32, i32, i32, i32) {
    %c0_i32 = arith.constant 0 : i32
    %c0_i32_0 = arith.constant 0 : i32
    %c0_i32_1 = arith.constant 0 : i32
    return %arg0, %arg1, %c0_i32, %c0_i32_0 : i32, i32, i32, i32
  }
  func.func @transform_3(%arg0: i32, %arg1: i32) -> (i32, i32) {
    %c0_i32 = arith.constant 0 : i32
    %c0_i32_0 = arith.constant 0 : i32
    %c0_i32_1 = arith.constant 0 : i32
    return %c0_i32, %c0_i32_0 : i32, i32
  }
  func.func @transform_4(%arg0: i32, %arg1: i32) -> (i32, i32) {
    %c0_i32 = arith.constant 0 : i32
    %c0_i32_0 = arith.constant 0 : i32
    %c0_i32_1 = arith.constant 0 : i32
    return %c0_i32, %c0_i32_0 : i32, i32
  }
  func.func @transform_5(%arg0: i32, %arg1: i32) -> (i32, i32, i32) {
    %c0_i32 = arith.constant 0 : i32
    %c0_i32_0 = arith.constant 0 : i32
    %c0_i32_1 = arith.constant 0 : i32
    %c0_i32_2 = arith.constant 0 : i32
    return %c0_i32, %c0_i32_0, %c0_i32_1 : i32, i32, i32
  }
  func.func @transform_6(%arg0: i32, %arg1: i32) -> (i32, i32) {
    %c0_i32 = arith.constant 0 : i32
    %c0_i32_0 = arith.constant 0 : i32
    %c0_i32_1 = arith.constant 0 : i32
    return %c0_i32, %c0_i32_0 : i32, i32
  }
  func.func @transform_7(%arg0: i32, %arg1: i32) -> (i32, i32, i32) {
    %c0_i32 = arith.constant 0 : i32
    %c0_i32_0 = arith.constant 0 : i32
    %c0_i32_1 = arith.constant 0 : i32
    %c0_i32_2 = arith.constant 0 : i32
    return %c0_i32, %c0_i32_0, %c0_i32_1 : i32, i32, i32
  }
  func.func @transform_8(%arg0: i32, %arg1: i32) -> (i32, i32, i32, i32) {
    %c0_i32 = arith.constant 0 : i32
    %c0_i32_0 = arith.constant 0 : i32
    %c0_i32_1 = arith.constant 0 : i32
    return %arg0, %arg1, %c0_i32, %c0_i32_0 : i32, i32, i32, i32
  }
  func.func @transform_9(%arg0: i32, %arg1: i32) -> (i32, i32, i32, i32) {
    %c0_i32 = arith.constant 0 : i32
    %c0_i32_0 = arith.constant 0 : i32
    %c0_i32_1 = arith.constant 0 : i32
    return %arg0, %arg1, %c0_i32, %c0_i32_0 : i32, i32, i32, i32
  }
}

</mosaic_0001>

<llo_original>
// kernel: non_bottleneck_1d_pallas.5
$region0: #{non_bottleneck_1d_pallas.5}
  #allocation0 [shape = 'u32[]', space=smem, size = 0x4, offset = 0x4, fixed_abs, tag = 'smem constant byte address 0x4 - core index']
  #allocation1 [shape = 'u32[144,128]{1,0:T(1,128)}', space=vmem, size = 0x12000, scoped, tag = 'internal scratch']
  %s0 = inlined_call_operand.vmem [shape: bf16[512,128], index: 0, kind: input, shape index: {}, may-alias: {0,4}]
  %s1 = inlined_call_operand.vmem [shape: bf16[512,128], index: 1, kind: input, shape index: {}]
  %s2 = inlined_call_operand.vmem [shape: f32[1,128], index: 2, kind: input, shape index: {}]
  %s3 = inlined_call_operand.vmem [shape: f32[1,128], index: 3, kind: input, shape index: {}]
  %s4 = inlined_call_operand.vmem [shape: bf16[512,128], index: 4, kind: output, shape index: {}, may-alias: {0,4}]
  %s5 = sld [smem:[#allocation0]]
  $region26: #{non_bottleneck_1d_pallas.5} parent=0
    _
  %s7 = ssub.s32 1, %s5
  %s8 = scalar_select 0, %s7, %s5
  // Predicated region
  $region2: #{non_bottleneck_1d_pallas.5} parent=0 // pred_check
    _
  $region3: #{non_bottleneck_1d_pallas.5} parent=0 // pred_check_branch
    %10 = sbr.rel (0) target = $region5
  $region4: #{non_bottleneck_1d_pallas.5} parent=0 // pred_region
    _
  $region5: #{non_bottleneck_1d_pallas.5} parent=0 // pred_fallthru
    _
  // Predicated region
  $region6: #{non_bottleneck_1d_pallas.5} parent=0 // pred_check
    _
  $region7: #{non_bottleneck_1d_pallas.5} parent=0 // pred_check_branch
    %12 = sbr.rel (0) target = $region9
  $region8: #{non_bottleneck_1d_pallas.5} parent=0 // pred_region
    _
  $region9: #{non_bottleneck_1d_pallas.5} parent=0 // pred_fallthru
    _
  // Predicated region
  $region10: #{non_bottleneck_1d_pallas.5} parent=0 // pred_check
    _
  $region11: #{non_bottleneck_1d_pallas.5} parent=0 // pred_check_branch
    %14 = sbr.rel (0) target = $region13
  $region12: #{non_bottleneck_1d_pallas.5} parent=0 // pred_region
    _
  $region13: #{non_bottleneck_1d_pallas.5} parent=0 // pred_fallthru
    _
  // Predicated region
  $region14: #{non_bottleneck_1d_pallas.5} parent=0 // pred_check
    _
  $region15: #{non_bottleneck_1d_pallas.5} parent=0 // pred_check_branch
    %16 = sbr.rel (0) target = $region17
  $region16: #{non_bottleneck_1d_pallas.5} parent=0 // pred_region
    _
  $region17: #{non_bottleneck_1d_pallas.5} parent=0 // pred_fallthru
    _
  %v17 = vld [vmem:[%s0] sm:$0xf]
  %v18 = vld [vmem:[%s0 + $0x4] sm:$0xf]
  %v19 = vld [vmem:[%s0 + $0x8] sm:$0xf]
  %v20 = vld [vmem:[%s0 + $0xc] sm:$0xf]
  %v21 = vld [vmem:[%s0 + $0x10] sm:$0xf]
  %v22 = vld [vmem:[%s0 + $0x14] sm:$0xf]
  %v23 = vld [vmem:[%s0 + $0x18] sm:$0xf]
  %v24 = vld [vmem:[%s0 + $0x1c] sm:$0xf]
  %v25 = vld [vmem:[%s0 + $0x20] sm:$0xf]
  %v26 = vld [vmem:[%s0 + $0x24] sm:$0xf]
  %v27 = vld [vmem:[%s0 + $0x28] sm:$0xf]
  %v28 = vld [vmem:[%s0 + $0x2c] sm:$0xf]
  %v29 = vld [vmem:[%s0 + $0x30] sm:$0xf]
  %v30 = vld [vmem:[%s0 + $0x34] sm:$0xf]
  %v31 = vld [vmem:[%s0 + $0x38] sm:$0xf]
  %v32 = vld [vmem:[%s0 + $0x3c] sm:$0xf]
  %v33 = vld [vmem:[%s0 + $0x40] sm:$0xf]
  %v34 = vld [vmem:[%s0 + $0x44] sm:$0xf]
  %v35 = vld [vmem:[%s0 + $0x48] sm:$0xf]
  %v36 = vld [vmem:[%s0 + $0x4c] sm:$0xf]
  %v37 = vld [vmem:[%s0 + $0x50] sm:$0xf]
  %v38 = vld [vmem:[%s0 + $0x54] sm:$0xf]
  %v39 = vld [vmem:[%s0 + $0x58] sm:$0xf]
  %v40 = vld [vmem:[%s0 + $0x5c] sm:$0xf]
  %v41 = vld [vmem:[%s0 + $0x60] sm:$0xf]
  %v42 = vld [vmem:[%s0 + $0x64] sm:$0xf]
  %v43 = vld [vmem:[%s0 + $0x68] sm:$0xf]
  %v44 = vld [vmem:[%s0 + $0x6c] sm:$0xf]
  %v45 = vld [vmem:[%s0 + $0x70] sm:$0xf]
  %v46 = vld [vmem:[%s0 + $0x74] sm:$0xf]
  %v47 = vld [vmem:[%s0 + $0x78] sm:$0xf]
  %v48 = vld [vmem:[%s0 + $0x7c] sm:$0xf]
  %v49 = vld [vmem:[%s0 + $0x80] sm:$0xf]
  %v50 = vld [vmem:[%s0 + $0x84] sm:$0xf]
  %v51 = vld [vmem:[%s0 + $0x88] sm:$0xf]
  %v52 = vld [vmem:[%s0 + $0x8c] sm:$0xf]
  %v53 = vld [vmem:[%s0 + $0x90] sm:$0xf]
  %v54 = vld [vmem:[%s0 + $0x94] sm:$0xf]
  %v55 = vld [vmem:[%s0 + $0x98] sm:$0xf]
  %v56 = vld [vmem:[%s0 + $0x9c] sm:$0xf]
  %v57 = vld [vmem:[%s0 + $0xa0] sm:$0xf]
  %v58 = vld [vmem:[%s0 + $0xa4] sm:$0xf]
  %v59 = vld [vmem:[%s0 + $0xa8] sm:$0xf]
  %v60 = vld [vmem:[%s0 + $0xac] sm:$0xf]
  %v61 = vld [vmem:[%s0 + $0xb0] sm:$0xf]
  %v62 = vld [vmem:[%s0 + $0xb4] sm:$0xf]
  %v63 = vld [vmem:[%s0 + $0xb8] sm:$0xf]
  %v64 = vld [vmem:[%s0 + $0xbc] sm:$0xf]
  %v65 = vld [vmem:[%s0 + $0xc0] sm:$0xf]
  %v66 = vld [vmem:[%s0 + $0xc4] sm:$0xf]
  %v67 = vld [vmem:[%s0 + $0xc8] sm:$0xf]
  %v68 = vld [vmem:[%s0 + $0xcc] sm:$0xf]
  %v69 = vld [vmem:[%s0 + $0xd0] sm:$0xf]
  %v70 = vld [vmem:[%s0 + $0xd4] sm:$0xf]
  %v71 = vld [vmem:[%s0 + $0xd8] sm:$0xf]
  %v72 = vld [vmem:[%s0 + $0xdc] sm:$0xf]
  %v73 = vld [vmem:[%s0 + $0xe0] sm:$0xf]
  %v74 = vld [vmem:[%s0 + $0xe4] sm:$0xf]
  %v75 = vld [vmem:[%s0 + $0xe8] sm:$0xf]
  %v76 = vld [vmem:[%s0 + $0xec] sm:$0xf]
  %v77 = vld [vmem:[%s0 + $0xf0] sm:$0xf]
  %v78 = vld [vmem:[%s0 + $0xf4] sm:$0xf]
  %v79 = vld [vmem:[%s0 + $0xf8] sm:$0xf]
  %v80 = vld [vmem:[%s0 + $0xfc] sm:$0xf]
  %v81 = vunpack.c.l.bf16 %v17
  %v82 = vunpack.c.l.bf16 %v18
  %v83 = vunpack.c.l.bf16 %v19
  %v84 = vunpack.c.l.bf16 %v20
  %v85 = vunpack.c.l.bf16 %v21
  %v86 = vunpack.c.l.bf16 %v22
  %v87 = vunpack.c.l.bf16 %v23
  %v88 = vunpack.c.l.bf16 %v24
  %v89 = vunpack.c.l.bf16 %v25
  %v90 = vunpack.c.l.bf16 %v26
  %v91 = vunpack.c.l.bf16 %v27
  %v92 = vunpack.c.l.bf16 %v28
  %v93 = vunpack.c.l.bf16 %v29
  %v94 = vunpack.c.l.bf16 %v30
  %v95 = vunpack.c.l.bf16 %v31
  %v96 = vunpack.c.l.bf16 %v32
  %v97 = vunpack.c.l.bf16 %v33
  %v98 = vunpack.c.l.bf16 %v34
  %v99 = vunpack.c.l.bf16 %v35
  %v100 = vunpack.c.l.bf16 %v36
  %v101 = vunpack.c.l.bf16 %v37
  %v102 = vunpack.c.l.bf16 %v38
  %v103 = vunpack.c.l.bf16 %v39
  %v104 = vunpack.c.l.bf16 %v40
  %v105 = vunpack.c.l.bf16 %v41
  %v106 = vunpack.c.l.bf16 %v42
  %v107 = vunpack.c.l.bf16 %v43
  %v108 = vunpack.c.l.bf16 %v44
  %v109 = vunpack.c.l.bf16 %v45
  %v110 = vunpack.c.l.bf16 %v46
  %v111 = vunpack.c.l.bf16 %v47
  %v112 = vunpack.c.l.bf16 %v48
  %v113 = vunpack.c.l.bf16 %v49
  %v114 = vunpack.c.l.bf16 %v50
  %v115 = vunpack.c.l.bf16 %v51
  %v116 = vunpack.c.l.bf16 %v52
  %v117 = vunpack.c.l.bf16 %v53
  %v118 = vunpack.c.l.bf16 %v54
  %v119 = vunpack.c.l.bf16 %v55
  %v120 = vunpack.c.l.bf16 %v56
  %v121 = vunpack.c.l.bf16 %v57
  %v122 = vunpack.c.l.bf16 %v58
  %v123 = vunpack.c.l.bf16 %v59
  %v124 = vunpack.c.l.bf16 %v60
  %v125 = vunpack.c.l.bf16 %v61
  %v126 = vunpack.c.l.bf16 %v62
  %v127 = vunpack.c.l.bf16 %v63
  %v128 = vunpack.c.l.bf16 %v64
  %v129 = vunpack.c.l.bf16 %v65
  %v130 = vunpack.c.l.bf16 %v66
  %v131 = vunpack.c.l.bf16 %v67
  %v132 = vunpack.c.l.bf16 %v68
  %v133 = vunpack.c.l.bf16 %v69
  %v134 = vunpack.c.l.bf16 %v70
  %v135 = vunpack.c.l.bf16 %v71
  %v136 = vunpack.c.l.bf16 %v72
  %v137 = vunpack.c.l.bf16 %v73
  %v138 = vunpack.c.l.bf16 %v74
  %v139 = vunpack.c.l.bf16 %v75
  %v140 = vunpack.c.l.bf16 %v76
  %v141 = vunpack.c.l.bf16 %v77
  %v142 = vunpack.c.l.bf16 %v78
  %v143 = vunpack.c.l.bf16 %v79
  %v144 = vunpack.c.l.bf16 %v80
  %v145 = vld [vmem:[%s2] sm:$0x1]
  %v147 = vlaneseq
  %v148 = vshrl.u32 %v147, 7
  %v149 = vsub.s32 0, %v148
  %v150 = vrot.slane %v145, %v149
  %v152 = vmul.f32 %v81, %v150
  %v153 = vmul.f32 %v82, %v150
  %v154 = vmul.f32 %v83, %v150
  %v155 = vmul.f32 %v84, %v150
  %v156 = vmul.f32 %v85, %v150
  %v157 = vmul.f32 %v86, %v150
  %v158 = vmul.f32 %v87, %v150
  %v159 = vmul.f32 %v88, %v150
  %v160 = vmul.f32 %v89, %v150
  %v161 = vmul.f32 %v90, %v150
  %v162 = vmul.f32 %v91, %v150
  %v163 = vmul.f32 %v92, %v150
  %v164 = vmul.f32 %v93, %v150
  %v165 = vmul.f32 %v94, %v150
  %v166 = vmul.f32 %v95, %v150
  %v167 = vmul.f32 %v96, %v150
  %v168 = vmul.f32 %v97, %v150
  %v169 = vmul.f32 %v98, %v150
  %v170 = vmul.f32 %v99, %v150
  %v171 = vmul.f32 %v100, %v150
  %v172 = vmul.f32 %v101, %v150
  %v173 = vmul.f32 %v102, %v150
  %v174 = vmul.f32 %v103, %v150
  %v175 = vmul.f32 %v104, %v150
  %v176 = vmul.f32 %v105, %v150
  %v177 = vmul.f32 %v106, %v150
  %v178 = vmul.f32 %v107, %v150
  %v179 = vmul.f32 %v108, %v150
  %v180 = vmul.f32 %v109, %v150
  %v181 = vmul.f32 %v110, %v150
  %v182 = vmul.f32 %v111, %v150
  %v183 = vmul.f32 %v112, %v150
  %v184 = vmul.f32 %v113, %v150
  %v185 = vmul.f32 %v114, %v150
  %v186 = vmul.f32 %v115, %v150
  %v187 = vmul.f32 %v116, %v150
  %v188 = vmul.f32 %v117, %v150
  %v189 = vmul.f32 %v118, %v150
  %v190 = vmul.f32 %v119, %v150
  %v191 = vmul.f32 %v120, %v150
  %v192 = vmul.f32 %v121, %v150
  %v193 = vmul.f32 %v122, %v150
  %v194 = vmul.f32 %v123, %v150
  %v195 = vmul.f32 %v124, %v150
  %v196 = vmul.f32 %v125, %v150
  %v197 = vmul.f32 %v126, %v150
  %v198 = vmul.f32 %v127, %v150
  %v199 = vmul.f32 %v128, %v150
  %v200 = vmul.f32 %v129, %v150
  %v201 = vmul.f32 %v130, %v150
  %v202 = vmul.f32 %v131, %v150
  %v203 = vmul.f32 %v132, %v150
  %v204 = vmul.f32 %v133, %v150
  %v205 = vmul.f32 %v134, %v150
  %v206 = vmul.f32 %v135, %v150
  %v207 = vmul.f32 %v136, %v150
  %v208 = vmul.f32 %v137, %v150
  %v209 = vmul.f32 %v138, %v150
  %v210 = vmul.f32 %v139, %v150
  %v211 = vmul.f32 %v140, %v150
  %v212 = vmul.f32 %v141, %v150
  %v213 = vmul.f32 %v142, %v150
  %v214 = vmul.f32 %v143, %v150
  %v215 = vmul.f32 %v144, %v150
  %v216 = vld [vmem:[%s3] sm:$0x1]
  %v218 = vlaneseq
  %v219 = vshrl.u32 %v218, 7
  %v220 = vsub.s32 0, %v219
  %v221 = vrot.slane %v216, %v220
  %v223 = vadd.f32 %v152, %v221
  %v224 = vadd.f32 %v153, %v221
  %v225 = vadd.f32 %v154, %v221
  %v226 = vadd.f32 %v155, %v221
  %v227 = vadd.f32 %v156, %v221
  %v228 = vadd.f32 %v157, %v221
  %v229 = vadd.f32 %v158, %v221
  %v230 = vadd.f32 %v159, %v221
  %v231 = vadd.f32 %v160, %v221
  %v232 = vadd.f32 %v161, %v221
  %v233 = vadd.f32 %v162, %v221
  %v234 = vadd.f32 %v163, %v221
  %v235 = vadd.f32 %v164, %v221
  %v236 = vadd.f32 %v165, %v221
  %v237 = vadd.f32 %v166, %v221
  %v238 = vadd.f32 %v167, %v221
  %v239 = vadd.f32 %v168, %v221
  %v240 = vadd.f32 %v169, %v221
  %v241 = vadd.f32 %v170, %v221
  %v242 = vadd.f32 %v171, %v221
  %v243 = vadd.f32 %v172, %v221
  %v244 = vadd.f32 %v173, %v221
  %v245 = vadd.f32 %v174, %v221
  %v246 = vadd.f32 %v175, %v221
  %v247 = vadd.f32 %v176, %v221
  %v248 = vadd.f32 %v177, %v221
  %v249 = vadd.f32 %v178, %v221
  %v250 = vadd.f32 %v179, %v221
  %v251 = vadd.f32 %v180, %v221
  %v252 = vadd.f32 %v181, %v221
  %v253 = vadd.f32 %v182, %v221
  %v254 = vadd.f32 %v183, %v221
  %v255 = vadd.f32 %v184, %v221
  %v256 = vadd.f32 %v185, %v221
  %v257 = vadd.f32 %v186, %v221
  %v258 = vadd.f32 %v187, %v221
  %v259 = vadd.f32 %v188, %v221
  %v260 = vadd.f32 %v189, %v221
  %v261 = vadd.f32 %v190, %v221
  %v262 = vadd.f32 %v191, %v221
  %v263 = vadd.f32 %v192, %v221
  %v264 = vadd.f32 %v193, %v221
  %v265 = vadd.f32 %v194, %v221
  %v266 = vadd.f32 %v195, %v221
  %v267 = vadd.f32 %v196, %v221
  %v268 = vadd.f32 %v197, %v221
  %v269 = vadd.f32 %v198, %v221
  %v270 = vadd.f32 %v199, %v221
  %v271 = vadd.f32 %v200, %v221
  %v272 = vadd.f32 %v201, %v221
  %v273 = vadd.f32 %v202, %v221
  %v274 = vadd.f32 %v203, %v221
  %v275 = vadd.f32 %v204, %v221
  %v276 = vadd.f32 %v205, %v221
  %v277 = vadd.f32 %v206, %v221
  %v278 = vadd.f32 %v207, %v221
  %v279 = vadd.f32 %v208, %v221
  %v280 = vadd.f32 %v209, %v221
  %v281 = vadd.f32 %v210, %v221
  %v282 = vadd.f32 %v211, %v221
  %v283 = vadd.f32 %v212, %v221
  %v284 = vadd.f32 %v213, %v221
  %v285 = vadd.f32 %v214, %v221
  %v286 = vadd.f32 %v215, %v221
  %v287 = vld [vmem:[%s1] sm:$0xf]
  %v288 = vld [vmem:[%s1 + $0x4] sm:$0xf]
  %v289 = vld [vmem:[%s1 + $0x8] sm:$0xf]
  %v290 = vld [vmem:[%s1 + $0xc] sm:$0xf]
  %v291 = vld [vmem:[%s1 + $0x10] sm:$0xf]
  %v292 = vld [vmem:[%s1 + $0x14] sm:$0xf]
  %v293 = vld [vmem:[%s1 + $0x18] sm:$0xf]
  %v294 = vld [vmem:[%s1 + $0x1c] sm:$0xf]
  %v295 = vld [vmem:[%s1 + $0x20] sm:$0xf]
  %v296 = vld [vmem:[%s1 + $0x24] sm:$0xf]
  %v297 = vld [vmem:[%s1 + $0x28] sm:$0xf]
  %v298 = vld [vmem:[%s1 + $0x2c] sm:$0xf]
  %v299 = vld [vmem:[%s1 + $0x30] sm:$0xf]
  %v300 = vld [vmem:[%s1 + $0x34] sm:$0xf]
  %v301 = vld [vmem:[%s1 + $0x38] sm:$0xf]
  %v302 = vld [vmem:[%s1 + $0x3c] sm:$0xf]
  %v303 = vld [vmem:[%s1 + $0x40] sm:$0xf]
  %v304 = vld [vmem:[%s1 + $0x44] sm:$0xf]
  %v305 = vld [vmem:[%s1 + $0x48] sm:$0xf]
  %v306 = vld [vmem:[%s1 + $0x4c] sm:$0xf]
  %v307 = vld [vmem:[%s1 + $0x50] sm:$0xf]
  %v308 = vld [vmem:[%s1 + $0x54] sm:$0xf]
  %v309 = vld [vmem:[%s1 + $0x58] sm:$0xf]
  %v310 = vld [vmem:[%s1 + $0x5c] sm:$0xf]
  %v311 = vld [vmem:[%s1 + $0x60] sm:$0xf]
  %v312 = vld [vmem:[%s1 + $0x64] sm:$0xf]
  %v313 = vld [vmem:[%s1 + $0x68] sm:$0xf]
  %v314 = vld [vmem:[%s1 + $0x6c] sm:$0xf]
  %v315 = vld [vmem:[%s1 + $0x70] sm:$0xf]
  %v316 = vld [vmem:[%s1 + $0x74] sm:$0xf]
  %v317 = vld [vmem:[%s1 + $0x78] sm:$0xf]
  %v318 = vld [vmem:[%s1 + $0x7c] sm:$0xf]
  %v319 = vld [vmem:[%s1 + $0x80] sm:$0xf]
  %v320 = vld [vmem:[%s1 + $0x84] sm:$0xf]
  %v321 = vld [vmem:[%s1 + $0x88] sm:$0xf]
  %v322 = vld [vmem:[%s1 + $0x8c] sm:$0xf]
  %v323 = vld [vmem:[%s1 + $0x90] sm:$0xf]
  %v324 = vld [vmem:[%s1 + $0x94] sm:$0xf]
  %v325 = vld [vmem:[%s1 + $0x98] sm:$0xf]
  %v326 = vld [vmem:[%s1 + $0x9c] sm:$0xf]
  %v327 = vld [vmem:[%s1 + $0xa0] sm:$0xf]
  %v328 = vld [vmem:[%s1 + $0xa4] sm:$0xf]
  %v329 = vld [vmem:[%s1 + $0xa8] sm:$0xf]
  %v330 = vld [vmem:[%s1 + $0xac] sm:$0xf]
  %v331 = vld [vmem:[%s1 + $0xb0] sm:$0xf]
  %v332 = vld [vmem:[%s1 + $0xb4] sm:$0xf]
  %v333 = vld [vmem:[%s1 + $0xb8] sm:$0xf]
  %v334 = vld [vmem:[%s1 + $0xbc] sm:$0xf]
  %v335 = vld [vmem:[%s1 + $0xc0] sm:$0xf]
  %v336 = vld [vmem:[%s1 + $0xc4] sm:$0xf]
  %v337 = vld [vmem:[%s1 + $0xc8] sm:$0xf]
  %v338 = vld [vmem:[%s1 + $0xcc] sm:$0xf]
  %v339 = vld [vmem:[%s1 + $0xd0] sm:$0xf]
  %v340 = vld [vmem:[%s1 + $0xd4] sm:$0xf]
  %v341 = vld [vmem:[%s1 + $0xd8] sm:$0xf]
  %v342 = vld [vmem:[%s1 + $0xdc] sm:$0xf]
  %v343 = vld [vmem:[%s1 + $0xe0] sm:$0xf]
  %v344 = vld [vmem:[%s1 + $0xe4] sm:$0xf]
  %v345 = vld [vmem:[%s1 + $0xe8] sm:$0xf]
  %v346 = vld [vmem:[%s1 + $0xec] sm:$0xf]
  %v347 = vld [vmem:[%s1 + $0xf0] sm:$0xf]
  %v348 = vld [vmem:[%s1 + $0xf4] sm:$0xf]
  %v349 = vld [vmem:[%s1 + $0xf8] sm:$0xf]
  %v350 = vld [vmem:[%s1 + $0xfc] sm:$0xf]
  %v351 = vunpack.c.l.bf16 %v287
  %v352 = vunpack.c.l.bf16 %v288
  %v353 = vunpack.c.l.bf16 %v289
  %v354 = vunpack.c.l.bf16 %v290
  %v355 = vunpack.c.l.bf16 %v291
  %v356 = vunpack.c.l.bf16 %v292
  %v357 = vunpack.c.l.bf16 %v293
  %v358 = vunpack.c.l.bf16 %v294
  %v359 = vunpack.c.l.bf16 %v295
  %v360 = vunpack.c.l.bf16 %v296
  %v361 = vunpack.c.l.bf16 %v297
  %v362 = vunpack.c.l.bf16 %v298
  %v363 = vunpack.c.l.bf16 %v299
  %v364 = vunpack.c.l.bf16 %v300
  %v365 = vunpack.c.l.bf16 %v301
  %v366 = vunpack.c.l.bf16 %v302
  %v367 = vunpack.c.l.bf16 %v303
  %v368 = vunpack.c.l.bf16 %v304
  %v369 = vunpack.c.l.bf16 %v305
  %v370 = vunpack.c.l.bf16 %v306
  %v371 = vunpack.c.l.bf16 %v307
  %v372 = vunpack.c.l.bf16 %v308
  %v373 = vunpack.c.l.bf16 %v309
  %v374 = vunpack.c.l.bf16 %v310
  %v375 = vunpack.c.l.bf16 %v311
  %v376 = vunpack.c.l.bf16 %v312
  %v377 = vunpack.c.l.bf16 %v313
  %v378 = vunpack.c.l.bf16 %v314
  %v379 = vunpack.c.l.bf16 %v315
  %v380 = vunpack.c.l.bf16 %v316
  %v381 = vunpack.c.l.bf16 %v317
  %v382 = vunpack.c.l.bf16 %v318
  %v383 = vunpack.c.l.bf16 %v319
  %v384 = vunpack.c.l.bf16 %v320
  %v385 = vunpack.c.l.bf16 %v321
  %v386 = vunpack.c.l.bf16 %v322
  %v387 = vunpack.c.l.bf16 %v323
  %v388 = vunpack.c.l.bf16 %v324
  %v389 = vunpack.c.l.bf16 %v325
  %v390 = vunpack.c.l.bf16 %v326
  %v391 = vunpack.c.l.bf16 %v327
  %v392 = vunpack.c.l.bf16 %v328
  %v393 = vunpack.c.l.bf16 %v329
  %v394 = vunpack.c.l.bf16 %v330
  %v395 = vunpack.c.l.bf16 %v331
  %v396 = vunpack.c.l.bf16 %v332
  %v397 = vunpack.c.l.bf16 %v333
  %v398 = vunpack.c.l.bf16 %v334
  %v399 = vunpack.c.l.bf16 %v335
  %v400 = vunpack.c.l.bf16 %v336
  %v401 = vunpack.c.l.bf16 %v337
  %v402 = vunpack.c.l.bf16 %v338
  %v403 = vunpack.c.l.bf16 %v339
  %v404 = vunpack.c.l.bf16 %v340
  %v405 = vunpack.c.l.bf16 %v341
  %v406 = vunpack.c.l.bf16 %v342
  %v407 = vunpack.c.l.bf16 %v343
  %v408 = vunpack.c.l.bf16 %v344
  %v409 = vunpack.c.l.bf16 %v345
  %v410 = vunpack.c.l.bf16 %v346
  %v411 = vunpack.c.l.bf16 %v347
  %v412 = vunpack.c.l.bf16 %v348
  %v413 = vunpack.c.l.bf16 %v349
  %v414 = vunpack.c.l.bf16 %v350
  %v415 = vadd.f32 %v223, %v351
  %v416 = vadd.f32 %v224, %v352
  %v417 = vadd.f32 %v225, %v353
  %v418 = vadd.f32 %v226, %v354
  %v419 = vadd.f32 %v227, %v355
  %v420 = vadd.f32 %v228, %v356
  %v421 = vadd.f32 %v229, %v357
  %v422 = vadd.f32 %v230, %v358
  %v423 = vadd.f32 %v231, %v359
  %v424 = vadd.f32 %v232, %v360
  %v425 = vadd.f32 %v233, %v361
  %v426 = vadd.f32 %v234, %v362
  %v427 = vadd.f32 %v235, %v363
  %v428 = vadd.f32 %v236, %v364
  %v429 = vadd.f32 %v237, %v365
  %v430 = vadd.f32 %v238, %v366
  %v431 = vadd.f32 %v239, %v367
  %v432 = vadd.f32 %v240, %v368
  %v433 = vadd.f32 %v241, %v369
  %v434 = vadd.f32 %v242, %v370
  %v435 = vadd.f32 %v243, %v371
  %v436 = vadd.f32 %v244, %v372
  %v437 = vadd.f32 %v245, %v373
  %v438 = vadd.f32 %v246, %v374
  %v439 = vadd.f32 %v247, %v375
  %v440 = vadd.f32 %v248, %v376
  %v441 = vadd.f32 %v249, %v377
  %v442 = vadd.f32 %v250, %v378
  %v443 = vadd.f32 %v251, %v379
  %v444 = vadd.f32 %v252, %v380
  %v445 = vadd.f32 %v253, %v381
  %v446 = vadd.f32 %v254, %v382
  %v447 = vadd.f32 %v255, %v383
  %v448 = vadd.f32 %v256, %v384
  %v449 = vadd.f32 %v257, %v385
  %v450 = vadd.f32 %v258, %v386
  %v451 = vadd.f32 %v259, %v387
  %v452 = vadd.f32 %v260, %v388
  %v453 = vadd.f32 %v261, %v389
  %v454 = vadd.f32 %v262, %v390
  %v455 = vadd.f32 %v263, %v391
  %v456 = vadd.f32 %v264, %v392
  %v457 = vadd.f32 %v265, %v393
  %v458 = vadd.f32 %v266, %v394
  %v459 = vadd.f32 %v267, %v395
  %v460 = vadd.f32 %v268, %v396
  %v461 = vadd.f32 %v269, %v397
  %v462 = vadd.f32 %v270, %v398
  %v463 = vadd.f32 %v271, %v399
  %v464 = vadd.f32 %v272, %v400
  %v465 = vadd.f32 %v273, %v401
  %v466 = vadd.f32 %v274, %v402
  %v467 = vadd.f32 %v275, %v403
  %v468 = vadd.f32 %v276, %v404
  %v469 = vadd.f32 %v277, %v405
  %v470 = vadd.f32 %v278, %v406
  %v471 = vadd.f32 %v279, %v407
  %v472 = vadd.f32 %v280, %v408
  %v473 = vadd.f32 %v281, %v409
  %v474 = vadd.f32 %v282, %v410
  %v475 = vadd.f32 %v283, %v411
  %v476 = vadd.f32 %v284, %v412
  %v477 = vadd.f32 %v285, %v413
  %v478 = vadd.f32 %v286, %v414
  %v479 = vmax.f32 %v415, 0.0
  %v480 = vmax.f32 %v416, 0.0
  %v481 = vmax.f32 %v417, 0.0
  %v482 = vmax.f32 %v418, 0.0
  %v483 = vmax.f32 %v419, 0.0
  %v484 = vmax.f32 %v420, 0.0
  %v485 = vmax.f32 %v421, 0.0
  %v486 = vmax.f32 %v422, 0.0
  %v487 = vmax.f32 %v423, 0.0
  %v488 = vmax.f32 %v424, 0.0
  %v489 = vmax.f32 %v425, 0.0
  %v490 = vmax.f32 %v426, 0.0
  %v491 = vmax.f32 %v427, 0.0
  %v492 = vmax.f32 %v428, 0.0
  %v493 = vmax.f32 %v429, 0.0
  %v494 = vmax.f32 %v430, 0.0
  %v495 = vmax.f32 %v431, 0.0
  %v496 = vmax.f32 %v432, 0.0
  %v497 = vmax.f32 %v433, 0.0
  %v498 = vmax.f32 %v434, 0.0
  %v499 = vmax.f32 %v435, 0.0
  %v500 = vmax.f32 %v436, 0.0
  %v501 = vmax.f32 %v437, 0.0
  %v502 = vmax.f32 %v438, 0.0
  %v503 = vmax.f32 %v439, 0.0
  %v504 = vmax.f32 %v440, 0.0
  %v505 = vmax.f32 %v441, 0.0
  %v506 = vmax.f32 %v442, 0.0
  %v507 = vmax.f32 %v443, 0.0
  %v508 = vmax.f32 %v444, 0.0
  %v509 = vmax.f32 %v445, 0.0
  %v510 = vmax.f32 %v446, 0.0
  %v511 = vmax.f32 %v447, 0.0
  %v512 = vmax.f32 %v448, 0.0
  %v513 = vmax.f32 %v449, 0.0
  %v514 = vmax.f32 %v450, 0.0
  %v515 = vmax.f32 %v451, 0.0
  %v516 = vmax.f32 %v452, 0.0
  %v517 = vmax.f32 %v453, 0.0
  %v518 = vmax.f32 %v454, 0.0
  %v519 = vmax.f32 %v455, 0.0
  %v520 = vmax.f32 %v456, 0.0
  %v521 = vmax.f32 %v457, 0.0
  %v522 = vmax.f32 %v458, 0.0
  %v523 = vmax.f32 %v459, 0.0
  %v524 = vmax.f32 %v460, 0.0
  %v525 = vmax.f32 %v461, 0.0
  %v526 = vmax.f32 %v462, 0.0
  %v527 = vmax.f32 %v463, 0.0
  %v528 = vmax.f32 %v464, 0.0
  %v529 = vmax.f32 %v465, 0.0
  %v530 = vmax.f32 %v466, 0.0
  %v531 = vmax.f32 %v467, 0.0
  %v532 = vmax.f32 %v468, 0.0
  %v533 = vmax.f32 %v469, 0.0
  %v534 = vmax.f32 %v470, 0.0
  %v535 = vmax.f32 %v471, 0.0
  %v536 = vmax.f32 %v472, 0.0
  %v537 = vmax.f32 %v473, 0.0
  %v538 = vmax.f32 %v474, 0.0
  %v539 = vmax.f32 %v475, 0.0
  %v540 = vmax.f32 %v476, 0.0
  %v541 = vmax.f32 %v477, 0.0
  %v542 = vmax.f32 %v478, 0.0
  %v543 = vpack.c.bf16 %v480, %v479
  %v544 = vpack.c.bf16 %v482, %v481
  %v545 = vpack.c.bf16 %v484, %v483
  %v546 = vpack.c.bf16 %v486, %v485
  %v547 = vpack.c.bf16 %v488, %v487
  %v548 = vpack.c.bf16 %v490, %v489
  %v549 = vpack.c.bf16 %v492, %v491
  %v550 = vpack.c.bf16 %v494, %v493
  %v551 = vpack.c.bf16 %v496, %v495
  %v552 = vpack.c.bf16 %v498, %v497
  %v553 = vpack.c.bf16 %v500, %v499
  %v554 = vpack.c.bf16 %v502, %v501
  %v555 = vpack.c.bf16 %v504, %v503
  %v556 = vpack.c.bf16 %v506, %v505
  %v557 = vpack.c.bf16 %v508, %v507
  %v558 = vpack.c.bf16 %v510, %v509
  %v559 = vpack.c.bf16 %v512, %v511
  %v560 = vpack.c.bf16 %v514, %v513
  %v561 = vpack.c.bf16 %v516, %v515
  %v562 = vpack.c.bf16 %v518, %v517
  %v563 = vpack.c.bf16 %v520, %v519
  %v564 = vpack.c.bf16 %v522, %v521
  %v565 = vpack.c.bf16 %v524, %v523
  %v566 = vpack.c.bf16 %v526, %v525
  %v567 = vpack.c.bf16 %v528, %v527
  %v568 = vpack.c.bf16 %v530, %v529
  %v569 = vpack.c.bf16 %v532, %v531
  %v570 = vpack.c.bf16 %v534, %v533
  %v571 = vpack.c.bf16 %v536, %v535
  %v572 = vpack.c.bf16 %v538, %v537
  %v573 = vpack.c.bf16 %v540, %v539
  %v574 = vpack.c.bf16 %v542, %v541
  %v607 = vunpack.c.l.b16 %v543
  %v608 = vunpack.c.h.b16 %v543
  %v609 = vunpack.c.l.b16 %v544
  %v610 = vunpack.c.h.b16 %v544
  %v611 = vunpack.c.l.b16 %v545
  %v612 = vunpack.c.h.b16 %v545
  %v613 = vunpack.c.l.b16 %v546
  %v614 = vunpack.c.h.b16 %v546
  %v615 = vunpack.c.l.b16 %v547
  %v616 = vunpack.c.h.b16 %v547
  %v617 = vunpack.c.l.b16 %v548
  %v618 = vunpack.c.h.b16 %v548
  %v619 = vunpack.c.l.b16 %v549
  %v620 = vunpack.c.h.b16 %v549
  %v621 = vunpack.c.l.b16 %v550
  %v622 = vunpack.c.h.b16 %v550
  %v623 = vunpack.c.l.b16 %v551
  %v624 = vunpack.c.h.b16 %v551
  %v625 = vunpack.c.l.b16 %v552
  %v626 = vunpack.c.h.b16 %v552
  %v627 = vunpack.c.l.b16 %v553
  %v628 = vunpack.c.h.b16 %v553
  %v629 = vunpack.c.l.b16 %v554
  %v630 = vunpack.c.h.b16 %v554
  %v631 = vunpack.c.l.b16 %v555
  %v632 = vunpack.c.h.b16 %v555
  %v633 = vunpack.c.l.b16 %v556
  %v634 = vunpack.c.h.b16 %v556
  %v635 = vunpack.c.l.b16 %v557
  %v636 = vunpack.c.h.b16 %v557
  %v637 = vunpack.c.l.b16 %v558
  %v638 = vunpack.c.h.b16 %v558
  %v639 = vunpack.c.l.b16 %v559
  %v640 = vunpack.c.h.b16 %v559
  %v641 = vunpack.c.l.b16 %v560
  %v642 = vunpack.c.h.b16 %v560
  %v643 = vunpack.c.l.b16 %v561
  %v644 = vunpack.c.h.b16 %v561
  %v645 = vunpack.c.l.b16 %v562
  %v646 = vunpack.c.h.b16 %v562
  %v647 = vunpack.c.l.b16 %v563
  %v648 = vunpack.c.h.b16 %v563
  %v649 = vunpack.c.l.b16 %v564
  %v650 = vunpack.c.h.b16 %v564
  %v651 = vunpack.c.l.b16 %v565
  %v652 = vunpack.c.h.b16 %v565
  %v653 = vunpack.c.l.b16 %v566
  %v654 = vunpack.c.h.b16 %v566
  %v655 = vunpack.c.l.b16 %v567
  %v656 = vunpack.c.h.b16 %v567
  %v657 = vunpack.c.l.b16 %v568
  %v658 = vunpack.c.h.b16 %v568
  %v659 = vunpack.c.l.b16 %v569
  %v660 = vunpack.c.h.b16 %v569
  %v661 = vunpack.c.l.b16 %v570
  %v662 = vunpack.c.h.b16 %v570
  %v663 = vunpack.c.l.b16 %v571
  %v664 = vunpack.c.h.b16 %v571
  %v665 = vunpack.c.l.b16 %v572
  %v666 = vunpack.c.h.b16 %v572
  %v667 = vunpack.c.l.b16 %v573
  %v668 = vunpack.c.h.b16 %v573
  %v669 = vunpack.c.l.b16 %v574
  %v670 = vunpack.c.h.b16 %v574
  %v671 = vpack.c.b16 %v607, %v607
  %v672 = vpack.c.b16 %v608, %v608
  %v673 = vpack.c.b16 %v609, %v609
  %v674 = vpack.c.b16 %v610, %v610
  %v675 = vpack.c.b16 %v611, %v611
  %v676 = vpack.c.b16 %v612, %v612
  %v677 = vpack.c.b16 %v613, %v613
  %v678 = vpack.c.b16 %v614, %v614
  %v679 = vpack.c.b16 %v615, %v615
  %v680 = vpack.c.b16 %v616, %v616
  %v681 = vpack.c.b16 %v617, %v617
  %v682 = vpack.c.b16 %v618, %v618
  %v683 = vpack.c.b16 %v619, %v619
  %v684 = vpack.c.b16 %v620, %v620
  %v685 = vpack.c.b16 %v621, %v621
  %v686 = vpack.c.b16 %v622, %v622
  %v687 = vpack.c.b16 %v623, %v623
  %v688 = vpack.c.b16 %v624, %v624
  %v689 = vpack.c.b16 %v625, %v625
  %v690 = vpack.c.b16 %v626, %v626
  %v691 = vpack.c.b16 %v627, %v627
  %v692 = vpack.c.b16 %v628, %v628
  %v693 = vpack.c.b16 %v629, %v629
  %v694 = vpack.c.b16 %v630, %v630
  %v695 = vpack.c.b16 %v631, %v631
  %v696 = vpack.c.b16 %v632, %v632
  %v697 = vpack.c.b16 %v633, %v633
  %v698 = vpack.c.b16 %v634, %v634
  %v699 = vpack.c.b16 %v635, %v635
  %v700 = vpack.c.b16 %v636, %v636
  %v701 = vpack.c.b16 %v637, %v637
  %v702 = vpack.c.b16 %v638, %v638
  %v703 = vpack.c.b16 %v639, %v639
  %v704 = vpack.c.b16 %v640, %v640
  %v705 = vpack.c.b16 %v641, %v641
  %v706 = vpack.c.b16 %v642, %v642
  %v707 = vpack.c.b16 %v643, %v643
  %v708 = vpack.c.b16 %v644, %v644
  %v709 = vpack.c.b16 %v645, %v645
  %v710 = vpack.c.b16 %v646, %v646
  %v711 = vpack.c.b16 %v647, %v647
  %v712 = vpack.c.b16 %v648, %v648
  %v713 = vpack.c.b16 %v649, %v649
  %v714 = vpack.c.b16 %v650, %v650
  %v715 = vpack.c.b16 %v651, %v651
  %v716 = vpack.c.b16 %v652, %v652
  %v717 = vpack.c.b16 %v653, %v653
  %v718 = vpack.c.b16 %v654, %v654
  %v719 = vpack.c.b16 %v655, %v655
  %v720 = vpack.c.b16 %v656, %v656
  %v721 = vpack.c.b16 %v657, %v657
  %v722 = vpack.c.b16 %v658, %v658
  %v723 = vpack.c.b16 %v659, %v659
  %v724 = vpack.c.b16 %v660, %v660
  %v725 = vpack.c.b16 %v661, %v661
  %v726 = vpack.c.b16 %v662, %v662
  %v727 = vpack.c.b16 %v663, %v663
  %v728 = vpack.c.b16 %v664, %v664
  %v729 = vpack.c.b16 %v665, %v665
  %v730 = vpack.c.b16 %v666, %v666
  %v731 = vpack.c.b16 %v667, %v667
  %v732 = vpack.c.b16 %v668, %v668
  %v733 = vpack.c.b16 %v669, %v669
  %v734 = vpack.c.b16 %v670, %v670
  %799 = vst [vmem:[%s4] sm:$0xf] %v671
  %800 = vst [vmem:[%s4 + $0x4] sm:$0xf] %v672
  %801 = vst [vmem:[%s4 + $0x8] sm:$0xf] %v673
  %802 = vst [vmem:[%s4 + $0xc] sm:$0xf] %v674
  %803 = vst [vmem:[%s4 + $0x10] sm:$0xf] %v675
  %804 = vst [vmem:[%s4 + $0x14] sm:$0xf] %v676
  %805 = vst [vmem:[%s4 + $0x18] sm:$0xf] %v677
  %806 = vst [vmem:[%s4 + $0x1c] sm:$0xf] %v678
  %807 = vst [vmem:[%s4 + $0x20] sm:$0xf] %v679
  %808 = vst [vmem:[%s4 + $0x24] sm:$0xf] %v680
  %809 = vst [vmem:[%s4 + $0x28] sm:$0xf] %v681
  %810 = vst [vmem:[%s4 + $0x2c] sm:$0xf] %v682
  %811 = vst [vmem:[%s4 + $0x30] sm:$0xf] %v683
  %812 = vst [vmem:[%s4 + $0x34] sm:$0xf] %v684
  %813 = vst [vmem:[%s4 + $0x38] sm:$0xf] %v685
  %814 = vst [vmem:[%s4 + $0x3c] sm:$0xf] %v686
  %815 = vst [vmem:[%s4 + $0x40] sm:$0xf] %v687
  %816 = vst [vmem:[%s4 + $0x44] sm:$0xf] %v688
  %817 = vst [vmem:[%s4 + $0x48] sm:$0xf] %v689
  %818 = vst [vmem:[%s4 + $0x4c] sm:$0xf] %v690
  %819 = vst [vmem:[%s4 + $0x50] sm:$0xf] %v691
  %820 = vst [vmem:[%s4 + $0x54] sm:$0xf] %v692
  %821 = vst [vmem:[%s4 + $0x58] sm:$0xf] %v693
  %822 = vst [vmem:[%s4 + $0x5c] sm:$0xf] %v694
  %823 = vst [vmem:[%s4 + $0x60] sm:$0xf] %v695
  %824 = vst [vmem:[%s4 + $0x64] sm:$0xf] %v696
  %825 = vst [vmem:[%s4 + $0x68] sm:$0xf] %v697
  %826 = vst [vmem:[%s4 + $0x6c] sm:$0xf] %v698
  %827 = vst [vmem:[%s4 + $0x70] sm:$0xf] %v699
  %828 = vst [vmem:[%s4 + $0x74] sm:$0xf] %v700
  %829 = vst [vmem:[%s4 + $0x78] sm:$0xf] %v701
  %830 = vst [vmem:[%s4 + $0x7c] sm:$0xf] %v702
  %831 = vst [vmem:[%s4 + $0x80] sm:$0xf] %v703
  %832 = vst [vmem:[%s4 + $0x84] sm:$0xf] %v704
  %833 = vst [vmem:[%s4 + $0x88] sm:$0xf] %v705
  %834 = vst [vmem:[%s4 + $0x8c] sm:$0xf] %v706
  %835 = vst [vmem:[%s4 + $0x90] sm:$0xf] %v707
  %836 = vst [vmem:[%s4 + $0x94] sm:$0xf] %v708
  %837 = vst [vmem:[%s4 + $0x98] sm:$0xf] %v709
  %838 = vst [vmem:[%s4 + $0x9c] sm:$0xf] %v710
  %839 = vst [vmem:[%s4 + $0xa0] sm:$0xf] %v711
  %840 = vst [vmem:[%s4 + $0xa4] sm:$0xf] %v712
  %841 = vst [vmem:[%s4 + $0xa8] sm:$0xf] %v713
  %842 = vst [vmem:[%s4 + $0xac] sm:$0xf] %v714
  %843 = vst [vmem:[%s4 + $0xb0] sm:$0xf] %v715
  %844 = vst [vmem:[%s4 + $0xb4] sm:$0xf] %v716
  %845 = vst [vmem:[%s4 + $0xb8] sm:$0xf] %v717
  %846 = vst [vmem:[%s4 + $0xbc] sm:$0xf] %v718
  %847 = vst [vmem:[%s4 + $0xc0] sm:$0xf] %v719
  %848 = vst [vmem:[%s4 + $0xc4] sm:$0xf] %v720
  %849 = vst [vmem:[%s4 + $0xc8] sm:$0xf] %v721
  %850 = vst [vmem:[%s4 + $0xcc] sm:$0xf] %v722
  %851 = vst [vmem:[%s4 + $0xd0] sm:$0xf] %v723
  %852 = vst [vmem:[%s4 + $0xd4] sm:$0xf] %v724
  %853 = vst [vmem:[%s4 + $0xd8] sm:$0xf] %v725
  %854 = vst [vmem:[%s4 + $0xdc] sm:$0xf] %v726
  %855 = vst [vmem:[%s4 + $0xe0] sm:$0xf] %v727
  %856 = vst [vmem:[%s4 + $0xe4] sm:$0xf] %v728
  %857 = vst [vmem:[%s4 + $0xe8] sm:$0xf] %v729
  %858 = vst [vmem:[%s4 + $0xec] sm:$0xf] %v730
  %859 = vst [vmem:[%s4 + $0xf0] sm:$0xf] %v731
  %860 = vst [vmem:[%s4 + $0xf4] sm:$0xf] %v732
  %861 = vst [vmem:[%s4 + $0xf8] sm:$0xf] %v733
  %862 = vst [vmem:[%s4 + $0xfc] sm:$0xf] %v734
  // Predicated region
  $region18: #{non_bottleneck_1d_pallas.5} parent=0 // pred_check
    _
  $region19: #{non_bottleneck_1d_pallas.5} parent=0 // pred_check_branch
    %864 = sbr.rel (0) target = $region21
  $region20: #{non_bottleneck_1d_pallas.5} parent=0 // pred_region
    _
  $region21: #{non_bottleneck_1d_pallas.5} parent=0 // pred_fallthru
    _
  // Predicated region
  $region22: #{non_bottleneck_1d_pallas.5} parent=0 // pred_check
    _
  $region23: #{non_bottleneck_1d_pallas.5} parent=0 // pred_check_branch
    %866 = sbr.rel (0) target = $region25
  $region24: #{non_bottleneck_1d_pallas.5} parent=0 // pred_region
    _
  $region25: #{non_bottleneck_1d_pallas.5} parent=0 // pred_fallthru
    _

// kernel: non_bottleneck_1d_pallas.3
$region0: #{non_bottleneck_1d_pallas.3}
  #allocation0 [shape = 'u32[]', space=smem, size = 0x4, offset = 0x4, fixed_abs, tag = 'smem constant byte address 0x4 - core index']
  #allocation1 [shape = 'u32[144,128]{1,0:T(1,128)}', space=vmem, size = 0x12000, scoped, tag = 'internal scratch']
  %s0 = inlined_call_operand.vmem [shape: bf16[2,16,16,128], index: 0, kind: input, shape index: {}]
  %s1 = inlined_call_operand.vmem [shape: bf16[2,2,16,128], index: 1, kind: input, shape index: {}]
  %s2 = inlined_call_operand.vmem [shape: bf16[2,2,16,128], index: 2, kind: input, shape index: {}]
  %s3 = inlined_call_operand.vmem [shape: bf16[3,128,128], index: 3, kind: input, shape index: {}]
  %s4 = inlined_call_operand.vmem [shape: f32[1,128], index: 4, kind: input, shape index: {}]
  %s5 = inlined_call_operand.vmem [shape: bf16[3,128,128], index: 5, kind: input, shape index: {}]
  %s6 = inlined_call_operand.vmem [shape: bf16[2,16,16,128], index: 6, kind: output, shape index: {0}]
  %s7 = inlined_call_operand.vmem [shape: f32[2,2,2,128], index: 7, kind: output, shape index: {1}]
  %8 = xla_tuple %s6, %s7
  %s9 = sld [smem:[#allocation0]]
  $region65: #{non_bottleneck_1d_pallas.3} parent=0
    _
  %s11 = ssub.s32 1, %s9
  %s12 = scalar_select 0, %s11, %s9
  loop: start=0, step=1, limit=6
  $region2: #{non_bottleneck_1d_pallas.3} parent=0 // loop_pre_header
    _
  $region3: #{non_bottleneck_1d_pallas.3} parent=0 // loop_header
    %s14 = sphi 0, %s18
    %p15 = scmp.ge.s32.totalorder %s14, 6
    %s21 = sphi 0, %s33
    %s22 = sphi 0, %s29
    %s23 = sphi 0, %s21
    %s24 = sphi 0, %s22
    %s25 = sphi 0, %s23
    %s26 = sphi 0, %s24
    %s38 = sphi 0, %s40
    %s41 = sphi 0, %s38
    %s42 = sphi 0, %s41
    %s58 = sphi 0, %s42
    %s66 = sphi 0, %s68
    %s69 = sphi 0, %s66
    %s70 = sphi 0, %s69
    %s86 = sphi 0, %s70
    %s94 = sphi 0, %s96
    %s97 = sphi 0, %s94
    %s98 = sphi 0, %s97
    %s114 = sphi 0, %s98
    %s118 = sphi 0, %s118
    %s120 = sphi 0, %s118
    %s121 = sphi 0, %s120
    %s135 = sphi 0, %s121
    %s139 = sphi 0, %s139
    %s141 = sphi 0, %s139
    %s142 = sphi 0, %s141
    %s156 = sphi 0, %s142
    %s160 = sphi 0, %s160
    %s162 = sphi 0, %s160
    %s163 = sphi 0, %s162
    %s177 = sphi 0, %s163
    %s185 = sphi 0, %s187
    %s188 = sphi 0, %s185
    %s189 = sphi 0, %s188
    %s205 = sphi 0, %s189
    %s213 = sphi 0, %s215
    %s216 = sphi 0, %s213
    %s217 = sphi 0, %s216
    %s233 = sphi 0, %s217
  $region4: #{non_bottleneck_1d_pallas.3} parent=0 // loop_header_branch
    %17 = sbr.rel (%p15) target = $region8
  $region5: #{non_bottleneck_1d_pallas.3} parent=0 // loop_body
    %s19 = ssub.s32 %s14, 1
    %s20 = ssub.s32 %s14, 2
    %s27 = sadd.s32 1, %s22
    %p28 = scmp.ge.s32.totalorder %s27, 2
    %s29 = scalar_select %p28, 0, %s27
    %s30 = sadd.s32 1, %s21
    %s31 = scalar_select %p28, %s30, %s21
    %p32 = scmp.ge.s32.totalorder %s31, 2
    %s33 = scalar_select %p32, 0, %s31
    %s34 = ssub.s32 %s21, %s33
    %s35 = ssub.s32 %s22, %s29
    %s36 = sor.u32 %s34, %s35
    %p37 = scmp.eq.s32.totalorder %s36, 0
    %s39 = sadd.s32 %s38, 1
    %s40 = scalar_select %p37, %s38, %s39
    %p43 = pneg %p37
    %p44 = scmp.eq.s32.totalorder %s14, 3
    %p45 = por %p43, %p44
    %p46 = scmp.ne.s32.totalorder %s38, %s41
    %p47 = scmp.eq.s32.totalorder %s14, 0
    %p48 = por %p46, %p47
    %p49 = scmp.ne.s32.totalorder %s38, %s41
    %p50 = scmp.eq.s32.totalorder %s19, 3
    %p51 = por %p49, %p50
    %p52 = scmp.ne.s32.totalorder %s41, %s42
    %p53 = scmp.eq.s32.totalorder %s19, 0
    %p54 = por %p52, %p53
    %p55 = scmp.ne.s32.totalorder %s41, %s42
    %p56 = scmp.eq.s32.totalorder %s20, 3
    %p57 = por %p55, %p56
    %p59 = scmp.ne.s32.totalorder %s42, %s58
    %p60 = scmp.eq.s32.totalorder %s20, 0
    %p61 = por %p59, %p60
    %s62 = ssub.s32 %s21, %s33
    %s63 = ssub.s32 %s22, %s29
    %s64 = sor.u32 %s62, %s63
    %p65 = scmp.eq.s32.totalorder %s64, 0
    %s67 = sadd.s32 %s66, 1
    %s68 = scalar_select %p65, %s66, %s67
    %p71 = pneg %p65
    %p72 = scmp.eq.s32.totalorder %s14, 3
    %p73 = por %p71, %p72
    %p74 = scmp.ne.s32.totalorder %s66, %s69
    %p75 = scmp.eq.s32.totalorder %s14, 0
    %p76 = por %p74, %p75
    %p77 = scmp.ne.s32.totalorder %s66, %s69
    %p78 = scmp.eq.s32.totalorder %s19, 3
    %p79 = por %p77, %p78
    %p80 = scmp.ne.s32.totalorder %s69, %s70
    %p81 = scmp.eq.s32.totalorder %s19, 0
    %p82 = por %p80, %p81
    %p83 = scmp.ne.s32.totalorder %s69, %s70
    %p84 = scmp.eq.s32.totalorder %s20, 3
    %p85 = por %p83, %p84
    %p87 = scmp.ne.s32.totalorder %s70, %s86
    %p88 = scmp.eq.s32.totalorder %s20, 0
    %p89 = por %p87, %p88
    %s90 = ssub.s32 %s21, %s33
    %s91 = ssub.s32 %s22, %s29
    %s92 = sor.u32 %s90, %s91
    %p93 = scmp.eq.s32.totalorder %s92, 0
    %s95 = sadd.s32 %s94, 1
    %s96 = scalar_select %p93, %s94, %s95
    %p99 = pneg %p93
    %p100 = scmp.eq.s32.totalorder %s14, 3
    %p101 = por %p99, %p100
    %p102 = scmp.ne.s32.totalorder %s94, %s97
    %p103 = scmp.eq.s32.totalorder %s14, 0
    %p104 = por %p102, %p103
    %p105 = scmp.ne.s32.totalorder %s94, %s97
    %p106 = scmp.eq.s32.totalorder %s19, 3
    %p107 = por %p105, %p106
    %p108 = scmp.ne.s32.totalorder %s97, %s98
    %p109 = scmp.eq.s32.totalorder %s19, 0
    %p110 = por %p108, %p109
    %p111 = scmp.ne.s32.totalorder %s97, %s98
    %p112 = scmp.eq.s32.totalorder %s20, 3
    %p113 = por %p111, %p112
    %p115 = scmp.ne.s32.totalorder %s98, %s114
    %p116 = scmp.eq.s32.totalorder %s20, 0
    %p117 = por %p115, %p116
    %s119 = sadd.s32 %s118, 1
    %p122 = scmp.eq.s32.totalorder %s14, 3
    %p123 = scmp.ne.s32.totalorder %s118, %s120
    %p124 = scmp.eq.s32.totalorder %s14, 0
    %p125 = por %p123, %p124
    %p126 = scmp.ne.s32.totalorder %s118, %s120
    %p127 = scmp.eq.s32.totalorder %s19, 3
    %p128 = por %p126, %p127
    %p129 = scmp.ne.s32.totalorder %s120, %s121
    %p130 = scmp.eq.s32.totalorder %s19, 0
    %p131 = por %p129, %p130
    %p132 = scmp.ne.s32.totalorder %s120, %s121
    %p133 = scmp.eq.s32.totalorder %s20, 3
    %p134 = por %p132, %p133
    %p136 = scmp.ne.s32.totalorder %s121, %s135
    %p137 = scmp.eq.s32.totalorder %s20, 0
    %p138 = por %p136, %p137
    %s140 = sadd.s32 %s139, 1
    %p143 = scmp.eq.s32.totalorder %s14, 3
    %p144 = scmp.ne.s32.totalorder %s139, %s141
    %p145 = scmp.eq.s32.totalorder %s14, 0
    %p146 = por %p144, %p145
    %p147 = scmp.ne.s32.totalorder %s139, %s141
    %p148 = scmp.eq.s32.totalorder %s19, 3
    %p149 = por %p147, %p148
    %p150 = scmp.ne.s32.totalorder %s141, %s142
    %p151 = scmp.eq.s32.totalorder %s19, 0
    %p152 = por %p150, %p151
    %p153 = scmp.ne.s32.totalorder %s141, %s142
    %p154 = scmp.eq.s32.totalorder %s20, 3
    %p155 = por %p153, %p154
    %p157 = scmp.ne.s32.totalorder %s142, %s156
    %p158 = scmp.eq.s32.totalorder %s20, 0
    %p159 = por %p157, %p158
    %s161 = sadd.s32 %s160, 1
    %p164 = scmp.eq.s32.totalorder %s14, 3
    %p165 = scmp.ne.s32.totalorder %s160, %s162
    %p166 = scmp.eq.s32.totalorder %s14, 0
    %p167 = por %p165, %p166
    %p168 = scmp.ne.s32.totalorder %s160, %s162
    %p169 = scmp.eq.s32.totalorder %s19, 3
    %p170 = por %p168, %p169
    %p171 = scmp.ne.s32.totalorder %s162, %s163
    %p172 = scmp.eq.s32.totalorder %s19, 0
    %p173 = por %p171, %p172
    %p174 = scmp.ne.s32.totalorder %s162, %s163
    %p175 = scmp.eq.s32.totalorder %s20, 3
    %p176 = por %p174, %p175
    %p178 = scmp.ne.s32.totalorder %s163, %s177
    %p179 = scmp.eq.s32.totalorder %s20, 0
    %p180 = por %p178, %p179
    %s181 = ssub.s32 %s21, %s33
    %s182 = ssub.s32 %s22, %s29
    %s183 = sor.u32 %s181, %s182
    %p184 = scmp.eq.s32.totalorder %s183, 0
    %s186 = sadd.s32 %s185, 1
    %s187 = scalar_select %p184, %s185, %s186
    %p190 = pneg %p184
    %p191 = scmp.eq.s32.totalorder %s14, 3
    %p192 = por %p190, %p191
    %p193 = scmp.ne.s32.totalorder %s185, %s188
    %p194 = scmp.eq.s32.totalorder %s14, 0
    %p195 = por %p193, %p194
    %p196 = scmp.ne.s32.totalorder %s185, %s188
    %p197 = scmp.eq.s32.totalorder %s19, 3
    %p198 = por %p196, %p197
    %p199 = scmp.ne.s32.totalorder %s188, %s189
    %p200 = scmp.eq.s32.totalorder %s19, 0
    %p201 = por %p199, %p200
    %p202 = scmp.ne.s32.totalorder %s188, %s189
    %p203 = scmp.eq.s32.totalorder %s20, 3
    %p204 = por %p202, %p203
    %p206 = scmp.ne.s32.totalorder %s189, %s205
    %p207 = scmp.eq.s32.totalorder %s20, 0
    %p208 = por %p206, %p207
    %s209 = ssub.s32 %s21, %s33
    %s210 = ssub.s32 %s22, %s29
    %s211 = sor.u32 %s209, %s210
    %p212 = scmp.eq.s32.totalorder %s211, 0
    %s214 = sadd.s32 %s213, 1
    %s215 = scalar_select %p212, %s213, %s214
    %p218 = pneg %p212
    %p219 = scmp.eq.s32.totalorder %s14, 3
    %p220 = por %p218, %p219
    %p221 = scmp.ne.s32.totalorder %s213, %s216
    %p222 = scmp.eq.s32.totalorder %s14, 0
    %p223 = por %p221, %p222
    %p224 = scmp.ne.s32.totalorder %s213, %s216
    %p225 = scmp.eq.s32.totalorder %s19, 3
    %p226 = por %p224, %p225
    %p227 = scmp.ne.s32.totalorder %s216, %s217
    %p228 = scmp.eq.s32.totalorder %s19, 0
    %p229 = por %p227, %p228
    %p230 = scmp.ne.s32.totalorder %s216, %s217
    %p231 = scmp.eq.s32.totalorder %s20, 3
    %p232 = por %p230, %p231
    %p234 = scmp.ne.s32.totalorder %s217, %s233
    %p235 = scmp.eq.s32.totalorder %s20, 0
    %p236 = por %p234, %p235
    %p237 = scmp.le.s32.totalorder 1, %s14
    %p238 = scmp.lt.s32.totalorder %s14, 5
    %p239 = pnand %p237, %p238
    %p240 = pneg %p239
    // Predicated region
    $region9: #{non_bottleneck_1d_pallas.3} parent=5 // pred_check
      _
    $region10: #{non_bottleneck_1d_pallas.3} parent=5 // pred_check_branch
      %242 = sbr.rel (%p239) target = $region12
    $region11: #{non_bottleneck_1d_pallas.3} parent=5 // pred_region
      %s243 = ssub.s32 %s14, 1
      // Predicated region
      $region13: #{non_bottleneck_1d_pallas.3} parent=11 // pred_check
        %p244 = pneg %p131
      $region14: #{non_bottleneck_1d_pallas.3} parent=11 // pred_check_branch
        %246 = sbr.rel (%p244) target = $region16
      $region15: #{non_bottleneck_1d_pallas.3} parent=11 // pred_region
        _
      $region16: #{non_bottleneck_1d_pallas.3} parent=11 // pred_fallthru
        _
      // Predicated region
      $region17: #{non_bottleneck_1d_pallas.3} parent=11 // pred_check
        %p247 = pneg %p152
      $region18: #{non_bottleneck_1d_pallas.3} parent=11 // pred_check_branch
        %249 = sbr.rel (%p247) target = $region20
      $region19: #{non_bottleneck_1d_pallas.3} parent=11 // pred_region
        _
      $region20: #{non_bottleneck_1d_pallas.3} parent=11 // pred_fallthru
        _
      // Predicated region
      $region21: #{non_bottleneck_1d_pallas.3} parent=11 // pred_check
        %p250 = pneg %p173
      $region22: #{non_bottleneck_1d_pallas.3} parent=11 // pred_check_branch
        %252 = sbr.rel (%p250) target = $region24
      $region23: #{non_bottleneck_1d_pallas.3} parent=11 // pred_region
        _
      $region24: #{non_bottleneck_1d_pallas.3} parent=11 // pred_fallthru
        _
    $region12: #{non_bottleneck_1d_pallas.3} parent=5 // pred_fallthru
      _
    %p253 = scmp.lt.s32.totalorder %s14, 4
    // Predicated region
    $region25: #{non_bottleneck_1d_pallas.3} parent=5 // pred_check
      %p254 = pneg %p253
    $region26: #{non_bottleneck_1d_pallas.3} parent=5 // pred_check_branch
      %256 = sbr.rel (%p254) target = $region28
    $region27: #{non_bottleneck_1d_pallas.3} parent=5 // pred_region
      // Predicated region
      $region29: #{non_bottleneck_1d_pallas.3} parent=27 // pred_check
        %p257 = pneg %p48
      $region30: #{non_bottleneck_1d_pallas.3} parent=27 // pred_check_branch
        %259 = sbr.rel (%p257) target = $region32
      $region31: #{non_bottleneck_1d_pallas.3} parent=27 // pred_region
        %s260 = smul.u32 8, %s22
        %p261 = scmp.lt.s32.totalorder %s21, 1
        %s262 = scalar_select %p261, %s21, 1
        %p263 = scmp.lt.s32.totalorder %s260, 15
        %s264 = scalar_select %p263, %s260, 15
        %s265 = smul.addr %s264, 2
        %s266 = smul.addr %s262, 32
        %s267 = sadd.s32 %s265, %s266
        %s268 = smul.addr %s267, 4
        %s269 = scalar_lea.vmem %s0, %s268
        %s270 = smul.u32 8, %s22
      $region32: #{non_bottleneck_1d_pallas.3} parent=27 // pred_fallthru
        _
      // Predicated region
      $region33: #{non_bottleneck_1d_pallas.3} parent=27 // pred_check
        %p271 = pneg %p76
      $region34: #{non_bottleneck_1d_pallas.3} parent=27 // pred_check_branch
        %273 = sbr.rel (%p271) target = $region36
      $region35: #{non_bottleneck_1d_pallas.3} parent=27 // pred_region
        %p274 = scmp.lt.s32.totalorder %s21, 1
        %s275 = scalar_select %p274, %s21, 1
        %p276 = scmp.lt.s32.totalorder %s22, 1
        %s277 = scalar_select %p276, %s22, 1
        %s278 = smul.addr %s277, 2
        %s279 = smul.addr %s275, 4
        %s280 = sadd.s32 %s278, %s279
        %s281 = smul.addr %s280, 4
        %s282 = scalar_lea.vmem %s1, %s281
      $region36: #{non_bottleneck_1d_pallas.3} parent=27 // pred_fallthru
        _
      // Predicated region
      $region37: #{non_bottleneck_1d_pallas.3} parent=27 // pred_check
        %p283 = pneg %p104
      $region38: #{non_bottleneck_1d_pallas.3} parent=27 // pred_check_branch
        %285 = sbr.rel (%p283) target = $region40
      $region39: #{non_bottleneck_1d_pallas.3} parent=27 // pred_region
        %p286 = scmp.lt.s32.totalorder %s21, 1
        %s287 = scalar_select %p286, %s21, 1
        %p288 = scmp.lt.s32.totalorder %s22, 1
        %s289 = scalar_select %p288, %s22, 1
        %s290 = smul.addr %s289, 2
        %s291 = smul.addr %s287, 4
        %s292 = sadd.s32 %s290, %s291
        %s293 = smul.addr %s292, 4
        %s294 = scalar_lea.vmem %s2, %s293
      $region40: #{non_bottleneck_1d_pallas.3} parent=27 // pred_fallthru
        _
    $region28: #{non_bottleneck_1d_pallas.3} parent=5 // pred_fallthru
      _
    %p295 = scmp.le.s32.totalorder 1, %s14
    %p296 = scmp.lt.s32.totalorder %s14, 5
    %p297 = pnand %p295, %p296
    %p298 = pneg %p297
    // Predicated region
    $region41: #{non_bottleneck_1d_pallas.3} parent=5 // pred_check
      _
    $region42: #{non_bottleneck_1d_pallas.3} parent=5 // pred_check_branch
      %300 = sbr.rel (%p297) target = $region44
    $region43: #{non_bottleneck_1d_pallas.3} parent=5 // pred_region
      %s301 = ssub.s32 %s14, 1
      %s302 = smul.u32 8, %s24
      %p303 = scmp.lt.s32.totalorder %s23, 1
      %s304 = scalar_select %p303, %s23, 1
      %p305 = scmp.lt.s32.totalorder %s302, 15
      %s306 = scalar_select %p305, %s302, 15
      %s307 = smul.addr %s306, 2
      %s308 = smul.addr %s304, 32
      %s309 = sadd.s32 %s307, %s308
      %s310 = smul.addr %s309, 4
      %s311 = scalar_lea.vmem %s0, %s310
      %p312 = pneg %p54
      %p313 = pneg %p51
      %p314 = scmp.lt.s32.totalorder %s23, 1
      %s315 = scalar_select %p314, %s23, 1
      %p316 = scmp.lt.s32.totalorder %s24, 1
      %s317 = scalar_select %p316, %s24, 1
      %s318 = smul.addr %s317, 2
      %s319 = smul.addr %s315, 4
      %s320 = sadd.s32 %s318, %s319
      %s321 = smul.addr %s320, 4
      %s322 = scalar_lea.vmem %s1, %s321
      %p323 = pneg %p82
      %p324 = pneg %p79
      %p325 = scmp.lt.s32.totalorder %s23, 1
      %s326 = scalar_select %p325, %s23, 1
      %p327 = scmp.lt.s32.totalorder %s24, 1
      %s328 = scalar_select %p327, %s24, 1
      %s329 = smul.addr %s328, 2
      %s330 = smul.addr %s326, 4
      %s331 = sadd.s32 %s329, %s330
      %s332 = smul.addr %s331, 4
      %s333 = scalar_lea.vmem %s2, %s332
      %p334 = pneg %p110
      %p335 = pneg %p107
      %p336 = pneg %p131
      %p337 = pneg %p128
      %p338 = pneg %p152
      %p339 = pneg %p149
      %p340 = pneg %p173
      %p341 = pneg %p170
      %p342 = pneg %p201
      %p343 = pneg %p198
      %s344 = smul.u32 8, %s24
      %p345 = scmp.lt.s32.totalorder %s23, 1
      %s346 = scalar_select %p345, %s23, 1
      %p347 = scmp.lt.s32.totalorder %s344, 15
      %s348 = scalar_select %p347, %s344, 15
      %s349 = smul.addr %s348, 2
      %s350 = smul.addr %s346, 32
      %s351 = sadd.s32 %s349, %s350
      %s352 = smul.addr %s351, 4
      %s353 = scalar_lea.vmem %s6, %s352
      %p354 = pneg %p229
      %p355 = pneg %p226
      %p356 = scmp.lt.s32.totalorder %s23, 1
      %s357 = scalar_select %p356, %s23, 1
      %p358 = scmp.lt.s32.totalorder %s24, 1
      %s359 = scalar_select %p358, %s24, 1
      %s360 = smul.addr %s357, 2
      %s361 = sadd.s32 %s359, %s360
      %s362 = smul.addr %s361, 2
      %s363 = scalar_lea.vmem %s7, %s362
      %s364 = smul.u32 8, %s24
      %p365 = scmp.lt.s32.totalorder %s23, 1
      %s366 = scalar_select %p365, %s23, 1
      %p367 = scmp.lt.s32.totalorder %s364, 15
      %s368 = scalar_select %p367, %s364, 15
      %s369 = smul.addr %s368, 2
      %s370 = smul.addr %s366, 32
      %s371 = sadd.s32 %s369, %s370
      %s372 = smul.addr %s371, 4
      %s373 = scalar_lea.vmem %s0, %s372
      %s374 = smul.u32 8, %s24
      %p375 = scmp.lt.s32.totalorder %s23, 1
      %s376 = scalar_select %p375, %s23, 1
      %p377 = scmp.lt.s32.totalorder %s24, 1
      %s378 = scalar_select %p377, %s24, 1
      %s379 = smul.addr %s378, 2
      %s380 = smul.addr %s376, 4
      %s381 = sadd.s32 %s379, %s380
      %s382 = smul.addr %s381, 4
      %s383 = scalar_lea.vmem %s1, %s382
      %p384 = scmp.lt.s32.totalorder %s23, 1
      %s385 = scalar_select %p384, %s23, 1
      %p386 = scmp.lt.s32.totalorder %s24, 1
      %s387 = scalar_select %p386, %s24, 1
      %s388 = smul.addr %s387, 2
      %s389 = smul.addr %s385, 4
      %s390 = sadd.s32 %s388, %s389
      %s391 = smul.addr %s390, 4
      %s392 = scalar_lea.vmem %s2, %s391
      %s393 = smul.u32 8, %s24
      %p394 = scmp.lt.s32.totalorder %s23, 1
      %s395 = scalar_select %p394, %s23, 1
      %p396 = scmp.lt.s32.totalorder %s393, 15
      %s397 = scalar_select %p396, %s393, 15
      %s398 = smul.addr %s397, 2
      %s399 = smul.addr %s395, 32
      %s400 = sadd.s32 %s398, %s399
      %s401 = smul.addr %s400, 4
      %s402 = scalar_lea.vmem %s6, %s401
      %s403 = smul.u32 8, %s24
      %p404 = scmp.lt.s32.totalorder %s23, 1
      %s405 = scalar_select %p404, %s23, 1
      %p406 = scmp.lt.s32.totalorder %s24, 1
      %s407 = scalar_select %p406, %s24, 1
      %s408 = smul.addr %s405, 2
      %s409 = sadd.s32 %s407, %s408
      %s410 = smul.addr %s409, 2
      %s411 = scalar_lea.vmem %s7, %s410
      %v413 = vld [vmem:[%s383] sm:$0xf]
      %v414 = vld [vmem:[%s383 + $0x4] sm:$0xf]
      %v415 = vld [vmem:[%s373] sm:$0xf]
      %v416 = vld [vmem:[%s373 + $0x4] sm:$0xf]
      %v417 = vld [vmem:[%s373 + $0x8] sm:$0xf]
      %v418 = vld [vmem:[%s373 + $0xc] sm:$0xf]
      %v419 = vld [vmem:[%s373 + $0x10] sm:$0xf]
      %v420 = vld [vmem:[%s373 + $0x14] sm:$0xf]
      %v421 = vld [vmem:[%s373 + $0x18] sm:$0xf]
      %v422 = vld [vmem:[%s373 + $0x1c] sm:$0xf]
      %v423 = vld [vmem:[%s373 + $0x20] sm:$0xf]
      %v424 = vld [vmem:[%s373 + $0x24] sm:$0xf]
      %v425 = vld [vmem:[%s373 + $0x28] sm:$0xf]
      %v426 = vld [vmem:[%s373 + $0x2c] sm:$0xf]
      %v427 = vld [vmem:[%s373 + $0x30] sm:$0xf]
      %v428 = vld [vmem:[%s373 + $0x34] sm:$0xf]
      %v429 = vld [vmem:[%s373 + $0x38] sm:$0xf]
      %v430 = vld [vmem:[%s373 + $0x3c] sm:$0xf]
      %v431 = vld [vmem:[%s392] sm:$0xf]
      %v432 = vld [vmem:[%s392 + $0x4] sm:$0xf]
      %v433 = vld [vmem:[%s3] sm:$0xf]
      %v434 = vld [vmem:[%s3 + $0x4] sm:$0xf]
      %v435 = vld [vmem:[%s3 + $0x8] sm:$0xf]
      %v436 = vld [vmem:[%s3 + $0xc] sm:$0xf]
      %v437 = vld [vmem:[%s3 + $0x10] sm:$0xf]
      %v438 = vld [vmem:[%s3 + $0x14] sm:$0xf]
      %v439 = vld [vmem:[%s3 + $0x18] sm:$0xf]
      %v440 = vld [vmem:[%s3 + $0x1c] sm:$0xf]
      %v441 = vld [vmem:[%s3 + $0x20] sm:$0xf]
      %v442 = vld [vmem:[%s3 + $0x24] sm:$0xf]
      %v443 = vld [vmem:[%s3 + $0x28] sm:$0xf]
      %v444 = vld [vmem:[%s3 + $0x2c] sm:$0xf]
      %v445 = vld [vmem:[%s3 + $0x30] sm:$0xf]
      %v446 = vld [vmem:[%s3 + $0x34] sm:$0xf]
      %v447 = vld [vmem:[%s3 + $0x38] sm:$0xf]
      %v448 = vld [vmem:[%s3 + $0x3c] sm:$0xf]
      %v449 = vld [vmem:[%s3 + $0x40] sm:$0xf]
      %v450 = vld [vmem:[%s3 + $0x44] sm:$0xf]
      %v451 = vld [vmem:[%s3 + $0x48] sm:$0xf]
      %v452 = vld [vmem:[%s3 + $0x4c] sm:$0xf]
      %v453 = vld [vmem:[%s3 + $0x50] sm:$0xf]
      %v454 = vld [vmem:[%s3 + $0x54] sm:$0xf]
      %v455 = vld [vmem:[%s3 + $0x58] sm:$0xf]
      %v456 = vld [vmem:[%s3 + $0x5c] sm:$0xf]
      %v457 = vld [vmem:[%s3 + $0x60] sm:$0xf]
      %v458 = vld [vmem:[%s3 + $0x64] sm:$0xf]
      %v459 = vld [vmem:[%s3 + $0x68] sm:$0xf]
      %v460 = vld [vmem:[%s3 + $0x6c] sm:$0xf]
      %v461 = vld [vmem:[%s3 + $0x70] sm:$0xf]
      %v462 = vld [vmem:[%s3 + $0x74] sm:$0xf]
      %v463 = vld [vmem:[%s3 + $0x78] sm:$0xf]
      %v464 = vld [vmem:[%s3 + $0x7c] sm:$0xf]
      %v465 = vld [vmem:[%s3 + $0x80] sm:$0xf]
      %v466 = vld [vmem:[%s3 + $0x84] sm:$0xf]
      %v467 = vld [vmem:[%s3 + $0x88] sm:$0xf]
      %v468 = vld [vmem:[%s3 + $0x8c] sm:$0xf]
      %v469 = vld [vmem:[%s3 + $0x90] sm:$0xf]
      %v470 = vld [vmem:[%s3 + $0x94] sm:$0xf]
      %v471 = vld [vmem:[%s3 + $0x98] sm:$0xf]
      %v472 = vld [vmem:[%s3 + $0x9c] sm:$0xf]
      %v473 = vld [vmem:[%s3 + $0xa0] sm:$0xf]
      %v474 = vld [vmem:[%s3 + $0xa4] sm:$0xf]
      %v475 = vld [vmem:[%s3 + $0xa8] sm:$0xf]
      %v476 = vld [vmem:[%s3 + $0xac] sm:$0xf]
      %v477 = vld [vmem:[%s3 + $0xb0] sm:$0xf]
      %v478 = vld [vmem:[%s3 + $0xb4] sm:$0xf]
      %v479 = vld [vmem:[%s3 + $0xb8] sm:$0xf]
      %v480 = vld [vmem:[%s3 + $0xbc] sm:$0xf]
      %v497 = vunpack.c.l.b16 %v415
      %v498 = vunpack.c.l.b16 %v416
      %v499 = vunpack.c.l.b16 %v417
      %v500 = vunpack.c.l.b16 %v418
      %v501 = vunpack.c.l.b16 %v419
      %v502 = vunpack.c.l.b16 %v420
      %v503 = vunpack.c.l.b16 %v421
      %v504 = vunpack.c.l.b16 %v422
      %v505 = vunpack.c.l.b16 %v423
      %v506 = vunpack.c.l.b16 %v424
      %v507 = vunpack.c.l.b16 %v425
      %v508 = vunpack.c.l.b16 %v426
      %v509 = vunpack.c.l.b16 %v427
      %v510 = vunpack.c.l.b16 %v428
      %v511 = vunpack.c.l.b16 %v429
      %v512 = vunpack.c.l.b16 %v430
      %v513 = vpack.c.b16 %v498, %v497
      %v514 = vpack.c.b16 %v500, %v499
      %v515 = vpack.c.b16 %v502, %v501
      %v516 = vpack.c.b16 %v504, %v503
      %v517 = vpack.c.b16 %v506, %v505
      %v518 = vpack.c.b16 %v508, %v507
      %v519 = vpack.c.b16 %v510, %v509
      %v520 = vpack.c.b16 %v512, %v511
      %v545 = vunpack.c.l.b16 %v449
      %v546 = vunpack.c.l.b16 %v450
      %v547 = vunpack.c.l.b16 %v451
      %v548 = vunpack.c.l.b16 %v452
      %v549 = vunpack.c.l.b16 %v453
      %v550 = vunpack.c.l.b16 %v454
      %v551 = vunpack.c.l.b16 %v455
      %v552 = vunpack.c.l.b16 %v456
      %v553 = vunpack.c.l.b16 %v457
      %v554 = vunpack.c.l.b16 %v458
      %v555 = vunpack.c.l.b16 %v459
      %v556 = vunpack.c.l.b16 %v460
      %v557 = vunpack.c.l.b16 %v461
      %v558 = vunpack.c.l.b16 %v462
      %v559 = vunpack.c.l.b16 %v463
      %v560 = vunpack.c.l.b16 %v464
      %v561 = vpack.c.b16 %v546, %v545
      %v562 = vpack.c.b16 %v548, %v547
      %v563 = vpack.c.b16 %v550, %v549
      %v564 = vpack.c.b16 %v552, %v551
      %v565 = vpack.c.b16 %v554, %v553
      %v566 = vpack.c.b16 %v556, %v555
      %v567 = vpack.c.b16 %v558, %v557
      %v568 = vpack.c.b16 %v560, %v559
      %577 = vmatprep.subr.bf16.mxu0 0
      %578 = vmatpush1.bf16.msra.mxu0 %v561
      %579 = vmatprep.subr.bf16.mxu0 0
      %580 = vmatpush1.bf16.msra.mxu0 %v562
      %581 = vmatprep.subr.bf16.mxu0 0
      %582 = vmatpush1.bf16.msra.mxu0 %v563
      %583 = vmatprep.subr.bf16.mxu0 0
      %584 = vmatpush1.bf16.msra.mxu0 %v564
      %585 = vmatprep.subr.bf16.mxu0 0
      %586 = vmatpush1.bf16.msra.mxu0 %v565
      %587 = vmatprep.subr.bf16.mxu0 0
      %588 = vmatpush1.bf16.msra.mxu0 %v566
      %589 = vmatprep.subr.bf16.mxu0 0
      %590 = vmatpush1.bf16.msra.mxu0 %v567
      %591 = vmatprep.subr.bf16.mxu0 0
      %592 = vmatpush1.bf16.msra.mxu0 %v568
      %593 = vmatprep.subr.bf16.mxu0 0
      %594 = vmatpush1.bf16.msra.mxu0 0
      %595 = vmatprep.subr.bf16.mxu0 0
      %596 = vmatpush1.bf16.msra.mxu0 0
      %597 = vmatprep.subr.bf16.mxu0 0
      %598 = vmatpush1.bf16.msra.mxu0 0
      %599 = vmatprep.subr.bf16.mxu0 0
      %600 = vmatpush1.bf16.msra.mxu0 0
      %601 = vmatprep.subr.bf16.mxu0 0
      %602 = vmatpush1.bf16.msra.mxu0 0
      %603 = vmatprep.subr.bf16.mxu0 0
      %604 = vmatpush1.bf16.msra.mxu0 0
      %605 = vmatprep.subr.bf16.mxu0 0
      %606 = vmatpush1.bf16.msra.mxu0 0
      %607 = vmatprep.subr.bf16.mxu0 0
      %608 = vmatpush1.bf16.msra.mxu0 0
      %609 = vmatprep.mubr.bf16.mxu0 0
      %610 = vmatmul.mubr.bf16.gmra.mrb[0].mxu0 %v513
      %v611 = vpop.f32.mrb[0].mxu0
      %v612 = vadd.f32 0.0, %v611
      %v613 = vpop.f32.mrb[0].mxu0
      %v614 = vpop.f32.mrb[0].mxu0
      %v615 = vadd.f32 0.0, %v614
      %v616 = vpop.f32.mrb[0].mxu0
      %617 = vmatprep.mubr.bf16.mxu0 0
      %618 = vmatmul.mubr.bf16.gmra.mrb[0].mxu0 %v514
      %v619 = vpop.f32.mrb[0].mxu0
      %v620 = vadd.f32 0.0, %v619
      %v621 = vpop.f32.mrb[0].mxu0
      %v622 = vpop.f32.mrb[0].mxu0
      %v623 = vadd.f32 0.0, %v622
      %v624 = vpop.f32.mrb[0].mxu0
      %625 = vmatprep.mubr.bf16.mxu0 0
      %626 = vmatmul.mubr.bf16.gmra.mrb[0].mxu0 %v515
      %v627 = vpop.f32.mrb[0].mxu0
      %v628 = vadd.f32 0.0, %v627
      %v629 = vpop.f32.mrb[0].mxu0
      %v630 = vpop.f32.mrb[0].mxu0
      %v631 = vadd.f32 0.0, %v630
      %v632 = vpop.f32.mrb[0].mxu0
      %633 = vmatprep.mubr.bf16.mxu0 0
      %634 = vmatmul.mubr.bf16.gmra.mrb[0].mxu0 %v516
      %v635 = vpop.f32.mrb[0].mxu0
      %v636 = vadd.f32 0.0, %v635
      %v637 = vpop.f32.mrb[0].mxu0
      %v638 = vpop.f32.mrb[0].mxu0
      %v639 = vadd.f32 0.0, %v638
      %v640 = vpop.f32.mrb[0].mxu0
      %641 = vmatprep.mubr.bf16.mxu0 0
      %642 = vmatmul.mubr.bf16.gmra.mrb[0].mxu0 %v517
      %v643 = vpop.f32.mrb[0].mxu0
      %v644 = vadd.f32 0.0, %v643
      %v645 = vpop.f32.mrb[0].mxu0
      %v646 = vpop.f32.mrb[0].mxu0
      %v647 = vadd.f32 0.0, %v646
      %v648 = vpop.f32.mrb[0].mxu0
      %649 = vmatprep.mubr.bf16.mxu0 0
      %650 = vmatmul.mubr.bf16.gmra.mrb[0].mxu0 %v518
      %v651 = vpop.f32.mrb[0].mxu0
      %v652 = vadd.f32 0.0, %v651
      %v653 = vpop.f32.mrb[0].mxu0
      %v654 = vpop.f32.mrb[0].mxu0
      %v655 = vadd.f32 0.0, %v654
      %v656 = vpop.f32.mrb[0].mxu0
      %657 = vmatprep.mubr.bf16.mxu0 0
      %658 = vmatmul.mubr.bf16.gmra.mrb[0].mxu0 %v519
      %v659 = vpop.f32.mrb[0].mxu0
      %v660 = vadd.f32 0.0, %v659
      %v661 = vpop.f32.mrb[0].mxu0
      %v662 = vpop.f32.mrb[0].mxu0
      %v663 = vadd.f32 0.0, %v662
      %v664 = vpop.f32.mrb[0].mxu0
      %665 = vmatprep.mubr.bf16.mxu0 0
      %666 = vmatmul.mubr.bf16.gmra.mrb[0].mxu0 %v520
      %v667 = vpop.f32.mrb[0].mxu0
      %v668 = vadd.f32 0.0, %v667
      %v669 = vpop.f32.mrb[0].mxu0
      %v670 = vpop.f32.mrb[0].mxu0
      %v671 = vadd.f32 0.0, %v670
      %v672 = vpop.f32.mrb[0].mxu0
      %673 = vdwg.mxu0
      %v676 = vunpack.c.l.b16 %v413
      %v677 = vunpack.c.l.b16 %v414
      %v678 = vpack.c.b16 %v677, %v676
      %v696 = vunpack.c.l.b16 %v433
      %v697 = vunpack.c.l.b16 %v434
      %v698 = vunpack.c.l.b16 %v435
      %v699 = vunpack.c.l.b16 %v436
      %v700 = vunpack.c.l.b16 %v437
      %v701 = vunpack.c.l.b16 %v438
      %v702 = vunpack.c.l.b16 %v439
      %v703 = vunpack.c.l.b16 %v440
      %v704 = vunpack.c.l.b16 %v441
      %v705 = vunpack.c.l.b16 %v442
      %v706 = vunpack.c.l.b16 %v443
      %v707 = vunpack.c.l.b16 %v444
      %v708 = vunpack.c.l.b16 %v445
      %v709 = vunpack.c.l.b16 %v446
      %v710 = vunpack.c.l.b16 %v447
      %v711 = vunpack.c.l.b16 %v448
      %v712 = vpack.c.b16 %v697, %v696
      %v713 = vpack.c.b16 %v699, %v698
      %v714 = vpack.c.b16 %v701, %v700
      %v715 = vpack.c.b16 %v703, %v702
      %v716 = vpack.c.b16 %v705, %v704
      %v717 = vpack.c.b16 %v707, %v706
      %v718 = vpack.c.b16 %v709, %v708
      %v719 = vpack.c.b16 %v711, %v710
      %728 = vmatprep.subr.bf16.mxu0 0
      %729 = vmatpush1.bf16.msra.mxu0 %v712
      %730 = vmatprep.subr.bf16.mxu0 0
      %731 = vmatpush1.bf16.msra.mxu0 %v713
      %732 = vmatprep.subr.bf16.mxu0 0
      %733 = vmatpush1.bf16.msra.mxu0 %v714
      %734 = vmatprep.subr.bf16.mxu0 0
      %735 = vmatpush1.bf16.msra.mxu0 %v715
      %736 = vmatprep.subr.bf16.mxu0 0
      %737 = vmatpush1.bf16.msra.mxu0 %v716
      %738 = vmatprep.subr.bf16.mxu0 0
      %739 = vmatpush1.bf16.msra.mxu0 %v717
      %740 = vmatprep.subr.bf16.mxu0 0
      %741 = vmatpush1.bf16.msra.mxu0 %v718
      %742 = vmatprep.subr.bf16.mxu0 0
      %743 = vmatpush1.bf16.msra.mxu0 %v719
      %744 = vmatprep.subr.bf16.mxu0 0
      %745 = vmatpush1.bf16.msra.mxu0 0
      %746 = vmatprep.subr.bf16.mxu0 0
      %747 = vmatpush1.bf16.msra.mxu0 0
      %748 = vmatprep.subr.bf16.mxu0 0
      %749 = vmatpush1.bf16.msra.mxu0 0
      %750 = vmatprep.subr.bf16.mxu0 0
      %751 = vmatpush1.bf16.msra.mxu0 0
      %752 = vmatprep.subr.bf16.mxu0 0
      %753 = vmatpush1.bf16.msra.mxu0 0
      %754 = vmatprep.subr.bf16.mxu0 0
      %755 = vmatpush1.bf16.msra.mxu0 0
      %756 = vmatprep.subr.bf16.mxu0 0
      %757 = vmatpush1.bf16.msra.mxu0 0
      %758 = vmatprep.subr.bf16.mxu0 0
      %759 = vmatpush1.bf16.msra.mxu0 0
      %760 = vmatprep.mubr.bf16.mxu0 0
      %761 = vmatmul.mubr.bf16.gmra.mrb[0].mxu0 %v678
      %v762 = vpop.f32.mrb[0].mxu0
      %v763 = vadd.f32 %v612, %v762
      %v764 = vpop.f32.mrb[0].mxu0
      %v765 = vpop.f32.mrb[0].mxu0
      %v766 = vadd.f32 %v615, %v765
      %v767 = vpop.f32.mrb[0].mxu0
      %768 = vmatprep.mubr.bf16.mxu0 0
      %769 = vmatmul.mubr.bf16.gmra.mrb[0].mxu0 %v513
      %v770 = vpop.f32.mrb[0].mxu0
      %v771 = vadd.f32 %v620, %v770
      %v772 = vpop.f32.mrb[0].mxu0
      %v773 = vpop.f32.mrb[0].mxu0
      %v774 = vadd.f32 %v623, %v773
      %v775 = vpop.f32.mrb[0].mxu0
      %776 = vmatprep.mubr.bf16.mxu0 0
      %777 = vmatmul.mubr.bf16.gmra.mrb[0].mxu0 %v514
      %v778 = vpop.f32.mrb[0].mxu0
      %v779 = vadd.f32 %v628, %v778
      %v780 = vpop.f32.mrb[0].mxu0
      %v781 = vpop.f32.mrb[0].mxu0
      %v782 = vadd.f32 %v631, %v781
      %v783 = vpop.f32.mrb[0].mxu0
      %784 = vmatprep.mubr.bf16.mxu0 0
      %785 = vmatmul.mubr.bf16.gmra.mrb[0].mxu0 %v515
      %v786 = vpop.f32.mrb[0].mxu0
      %v787 = vadd.f32 %v636, %v786
      %v788 = vpop.f32.mrb[0].mxu0
      %v789 = vpop.f32.mrb[0].mxu0
      %v790 = vadd.f32 %v639, %v789
      %v791 = vpop.f32.mrb[0].mxu0
      %792 = vmatprep.mubr.bf16.mxu0 0
      %793 = vmatmul.mubr.bf16.gmra.mrb[0].mxu0 %v516
      %v794 = vpop.f32.mrb[0].mxu0
      %v795 = vadd.f32 %v644, %v794
      %v796 = vpop.f32.mrb[0].mxu0
      %v797 = vpop.f32.mrb[0].mxu0
      %v798 = vadd.f32 %v647, %v797
      %v799 = vpop.f32.mrb[0].mxu0
      %800 = vmatprep.mubr.bf16.mxu0 0
      %801 = vmatmul.mubr.bf16.gmra.mrb[0].mxu0 %v517
      %v802 = vpop.f32.mrb[0].mxu0
      %v803 = vadd.f32 %v652, %v802
      %v804 = vpop.f32.mrb[0].mxu0
      %v805 = vpop.f32.mrb[0].mxu0
      %v806 = vadd.f32 %v655, %v805
      %v807 = vpop.f32.mrb[0].mxu0
      %808 = vmatprep.mubr.bf16.mxu0 0
      %809 = vmatmul.mubr.bf16.gmra.mrb[0].mxu0 %v518
      %v810 = vpop.f32.mrb[0].mxu0
      %v811 = vadd.f32 %v660, %v810
      %v812 = vpop.f32.mrb[0].mxu0
      %v813 = vpop.f32.mrb[0].mxu0
      %v814 = vadd.f32 %v663, %v813
      %v815 = vpop.f32.mrb[0].mxu0
      %816 = vmatprep.mubr.bf16.mxu0 0
      %817 = vmatmul.mubr.bf16.gmra.mrb[0].mxu0 %v519
      %v818 = vpop.f32.mrb[0].mxu0
      %v819 = vadd.f32 %v668, %v818
      %v820 = vpop.f32.mrb[0].mxu0
      %v821 = vpop.f32.mrb[0].mxu0
      %v822 = vadd.f32 %v671, %v821
      %v823 = vpop.f32.mrb[0].mxu0
      %824 = vdwg.mxu0
      %v827 = vunpack.c.l.b16 %v431
      %v828 = vunpack.c.l.b16 %v432
      %v829 = vpack.c.b16 %v828, %v827
      %v847 = vunpack.c.l.b16 %v465
      %v848 = vunpack.c.l.b16 %v466
      %v849 = vunpack.c.l.b16 %v467
      %v850 = vunpack.c.l.b16 %v468
      %v851 = vunpack.c.l.b16 %v469
      %v852 = vunpack.c.l.b16 %v470
      %v853 = vunpack.c.l.b16 %v471
      %v854 = vunpack.c.l.b16 %v472
      %v855 = vunpack.c.l.b16 %v473
      %v856 = vunpack.c.l.b16 %v474
      %v857 = vunpack.c.l.b16 %v475
      %v858 = vunpack.c.l.b16 %v476
      %v859 = vunpack.c.l.b16 %v477
      %v860 = vunpack.c.l.b16 %v478
      %v861 = vunpack.c.l.b16 %v479
      %v862 = vunpack.c.l.b16 %v480
      %v863 = vpack.c.b16 %v848, %v847
      %v864 = vpack.c.b16 %v850, %v849
      %v865 = vpack.c.b16 %v852, %v851
      %v866 = vpack.c.b16 %v854, %v853
      %v867 = vpack.c.b16 %v856, %v855
      %v868 = vpack.c.b16 %v858, %v857
      %v869 = vpack.c.b16 %v860, %v859
      %v870 = vpack.c.b16 %v862, %v861
      %879 = vmatprep.subr.bf16.mxu0 0
      %880 = vmatpush1.bf16.msra.mxu0 %v863
      %881 = vmatprep.subr.bf16.mxu0 0
      %882 = vmatpush1.bf16.msra.mxu0 %v864
      %883 = vmatprep.subr.bf16.mxu0 0
      %884 = vmatpush1.bf16.msra.mxu0 %v865
      %885 = vmatprep.subr.bf16.mxu0 0
      %886 = vmatpush1.bf16.msra.mxu0 %v866
      %887 = vmatprep.subr.bf16.mxu0 0
      %888 = vmatpush1.bf16.msra.mxu0 %v867
      %889 = vmatprep.subr.bf16.mxu0 0
      %890 = vmatpush1.bf16.msra.mxu0 %v868
      %891 = vmatprep.subr.bf16.mxu0 0
      %892 = vmatpush1.bf16.msra.mxu0 %v869
      %893 = vmatprep.subr.bf16.mxu0 0
      %894 = vmatpush1.bf16.msra.mxu0 %v870
      %895 = vmatprep.subr.bf16.mxu0 0
      %896 = vmatpush1.bf16.msra.mxu0 0
      %897 = vmatprep.subr.bf16.mxu0 0
      %898 = vmatpush1.bf16.msra.mxu0 0
      %899 = vmatprep.subr.bf16.mxu0 0
      %900 = vmatpush1.bf16.msra.mxu0 0
      %901 = vmatprep.subr.bf16.mxu0 0
      %902 = vmatpush1.bf16.msra.mxu0 0
      %903 = vmatprep.subr.bf16.mxu0 0
      %904 = vmatpush1.bf16.msra.mxu0 0
      %905 = vmatprep.subr.bf16.mxu0 0
      %906 = vmatpush1.bf16.msra.mxu0 0
      %907 = vmatprep.subr.bf16.mxu0 0
      %908 = vmatpush1.bf16.msra.mxu0 0
      %909 = vmatprep.subr.bf16.mxu0 0
      %910 = vmatpush1.bf16.msra.mxu0 0
      %911 = vmatprep.mubr.bf16.mxu0 0
      %912 = vmatmul.mubr.bf16.gmra.mrb[0].mxu0 %v514
      %v913 = vpop.f32.mrb[0].mxu0
      %v914 = vadd.f32 0.0, %v913
      %v915 = vpop.f32.mrb[0].mxu0
      %v916 = vpop.f32.mrb[0].mxu0
      %v917 = vadd.f32 0.0, %v916
      %v918 = vpop.f32.mrb[0].mxu0
      %919 = vmatprep.mubr.bf16.mxu0 0
      %920 = vmatmul.mubr.bf16.gmra.mrb[0].mxu0 %v515
      %v921 = vpop.f32.mrb[0].mxu0
      %v922 = vadd.f32 0.0, %v921
      %v923 = vpop.f32.mrb[0].mxu0
      %v924 = vpop.f32.mrb[0].mxu0
      %v925 = vadd.f32 0.0, %v924
      %v926 = vpop.f32.mrb[0].mxu0
      %927 = vmatprep.mubr.bf16.mxu0 0
      %928 = vmatmul.mubr.bf16.gmra.mrb[0].mxu0 %v516
      %v929 = vpop.f32.mrb[0].mxu0
      %v930 = vadd.f32 0.0, %v929
      %v931 = vpop.f32.mrb[0].mxu0
      %v932 = vpop.f32.mrb[0].mxu0
      %v933 = vadd.f32 0.0, %v932
      %v934 = vpop.f32.mrb[0].mxu0
      %935 = vmatprep.mubr.bf16.mxu0 0
      %936 = vmatmul.mubr.bf16.gmra.mrb[0].mxu0 %v517
      %v937 = vpop.f32.mrb[0].mxu0
      %v938 = vadd.f32 0.0, %v937
      %v939 = vpop.f32.mrb[0].mxu0
      %v940 = vpop.f32.mrb[0].mxu0
      %v941 = vadd.f32 0.0, %v940
      %v942 = vpop.f32.mrb[0].mxu0
      %943 = vmatprep.mubr.bf16.mxu0 0
      %944 = vmatmul.mubr.bf16.gmra.mrb[0].mxu0 %v518
      %v945 = vpop.f32.mrb[0].mxu0
      %v946 = vadd.f32 0.0, %v945
      %v947 = vpop.f32.mrb[0].mxu0
      %v948 = vpop.f32.mrb[0].mxu0
      %v949 = vadd.f32 0.0, %v948
      %v950 = vpop.f32.mrb[0].mxu0
      %951 = vmatprep.mubr.bf16.mxu0 0
      %952 = vmatmul.mubr.bf16.gmra.mrb[0].mxu0 %v519
      %v953 = vpop.f32.mrb[0].mxu0
      %v954 = vadd.f32 0.0, %v953
      %v955 = vpop.f32.mrb[0].mxu0
      %v956 = vpop.f32.mrb[0].mxu0
      %v957 = vadd.f32 0.0, %v956
      %v958 = vpop.f32.mrb[0].mxu0
      %959 = vmatprep.mubr.bf16.mxu0 0
      %960 = vmatmul.mubr.bf16.gmra.mrb[0].mxu0 %v520
      %v961 = vpop.f32.mrb[0].mxu0
      %v962 = vadd.f32 0.0, %v961
      %v963 = vpop.f32.mrb[0].mxu0
      %v964 = vpop.f32.mrb[0].mxu0
      %v965 = vadd.f32 0.0, %v964
      %v966 = vpop.f32.mrb[0].mxu0
      %967 = vmatprep.mubr.bf16.mxu0 0
      %968 = vmatmul.mubr.bf16.gmra.mrb[0].mxu0 %v829
      %v969 = vpop.f32.mrb[0].mxu0
      %v970 = vadd.f32 0.0, %v969
      %v971 = vpop.f32.mrb[0].mxu0
      %v972 = vpop.f32.mrb[0].mxu0
      %v973 = vadd.f32 0.0, %v972
      %v974 = vpop.f32.mrb[0].mxu0
      %975 = vdwg.mxu0
      %v976 = vadd.f32 %v763, %v914
      %v977 = vadd.f32 %v766, %v917
      %v978 = vadd.f32 %v771, %v922
      %v979 = vadd.f32 %v774, %v925
      %v980 = vadd.f32 %v779, %v930
      %v981 = vadd.f32 %v782, %v933
      %v982 = vadd.f32 %v787, %v938
      %v983 = vadd.f32 %v790, %v941
      %v984 = vadd.f32 %v795, %v946
      %v985 = vadd.f32 %v798, %v949
      %v986 = vadd.f32 %v803, %v954
      %v987 = vadd.f32 %v806, %v957
      %v988 = vadd.f32 %v811, %v962
      %v989 = vadd.f32 %v814, %v965
      %v990 = vadd.f32 %v819, %v970
      %v991 = vadd.f32 %v822, %v973
      %v992 = vld [vmem:[%s4] sm:$0x1]
      %v994 = vlaneseq
      %v995 = vshrl.u32 %v994, 7
      %v996 = vsub.s32 0, %v995
      %v997 = vrot.slane %v992, %v996
      %v999 = vadd.f32 %v976, %v997
      %v1000 = vadd.f32 %v977, %v997
      %v1001 = vadd.f32 %v978, %v997
      %v1002 = vadd.f32 %v979, %v997
      %v1003 = vadd.f32 %v980, %v997
      %v1004 = vadd.f32 %v981, %v997
      %v1005 = vadd.f32 %v982, %v997
      %v1006 = vadd.f32 %v983, %v997
      %v1007 = vadd.f32 %v984, %v997
      %v1008 = vadd.f32 %v985, %v997
      %v1009 = vadd.f32 %v986, %v997
      %v1010 = vadd.f32 %v987, %v997
      %v1011 = vadd.f32 %v988, %v997
      %v1012 = vadd.f32 %v989, %v997
      %v1013 = vadd.f32 %v990, %v997
      %v1014 = vadd.f32 %v991, %v997
      %v1015 = vmax.f32 %v999, 0.0
      %v1016 = vmax.f32 %v1000, 0.0
      %v1017 = vmax.f32 %v1001, 0.0
      %v1018 = vmax.f32 %v1002, 0.0
      %v1019 = vmax.f32 %v1003, 0.0
      %v1020 = vmax.f32 %v1004, 0.0
      %v1021 = vmax.f32 %v1005, 0.0
      %v1022 = vmax.f32 %v1006, 0.0
      %v1023 = vmax.f32 %v1007, 0.0
      %v1024 = vmax.f32 %v1008, 0.0
      %v1025 = vmax.f32 %v1009, 0.0
      %v1026 = vmax.f32 %v1010, 0.0
      %v1027 = vmax.f32 %v1011, 0.0
      %v1028 = vmax.f32 %v1012, 0.0
      %v1029 = vmax.f32 %v1013, 0.0
      %v1030 = vmax.f32 %v1014, 0.0
      %v1031 = vld [vmem:[%s5] sm:$0xf]
      %v1032 = vld [vmem:[%s5 + $0x4] sm:$0xf]
      %v1033 = vld [vmem:[%s5 + $0x8] sm:$0xf]
      %v1034 = vld [vmem:[%s5 + $0xc] sm:$0xf]
      %v1035 = vld [vmem:[%s5 + $0x10] sm:$0xf]
      %v1036 = vld [vmem:[%s5 + $0x14] sm:$0xf]
      %v1037 = vld [vmem:[%s5 + $0x18] sm:$0xf]
      %v1038 = vld [vmem:[%s5 + $0x1c] sm:$0xf]
      %v1039 = vld [vmem:[%s5 + $0x20] sm:$0xf]
      %v1040 = vld [vmem:[%s5 + $0x24] sm:$0xf]
      %v1041 = vld [vmem:[%s5 + $0x28] sm:$0xf]
      %v1042 = vld [vmem:[%s5 + $0x2c] sm:$0xf]
      %v1043 = vld [vmem:[%s5 + $0x30] sm:$0xf]
      %v1044 = vld [vmem:[%s5 + $0x34] sm:$0xf]
      %v1045 = vld [vmem:[%s5 + $0x38] sm:$0xf]
      %v1046 = vld [vmem:[%s5 + $0x3c] sm:$0xf]
      %v1047 = vld [vmem:[%s5 + $0x40] sm:$0xf]
      %v1048 = vld [vmem:[%s5 + $0x44] sm:$0xf]
      %v1049 = vld [vmem:[%s5 + $0x48] sm:$0xf]
      %v1050 = vld [vmem:[%s5 + $0x4c] sm:$0xf]
      %v1051 = vld [vmem:[%s5 + $0x50] sm:$0xf]
      %v1052 = vld [vmem:[%s5 + $0x54] sm:$0xf]
      %v1053 = vld [vmem:[%s5 + $0x58] sm:$0xf]
      %v1054 = vld [vmem:[%s5 + $0x5c] sm:$0xf]
      %v1055 = vld [vmem:[%s5 + $0x60] sm:$0xf]
      %v1056 = vld [vmem:[%s5 + $0x64] sm:$0xf]
      %v1057 = vld [vmem:[%s5 + $0x68] sm:$0xf]
      %v1058 = vld [vmem:[%s5 + $0x6c] sm:$0xf]
      %v1059 = vld [vmem:[%s5 + $0x70] sm:$0xf]
      %v1060 = vld [vmem:[%s5 + $0x74] sm:$0xf]
      %v1061 = vld [vmem:[%s5 + $0x78] sm:$0xf]
      %v1062 = vld [vmem:[%s5 + $0x7c] sm:$0xf]
      %v1063 = vld [vmem:[%s5 + $0x80] sm:$0xf]
      %v1064 = vld [vmem:[%s5 + $0x84] sm:$0xf]
      %v1065 = vld [vmem:[%s5 + $0x88] sm:$0xf]
      %v1066 = vld [vmem:[%s5 + $0x8c] sm:$0xf]
      %v1067 = vld [vmem:[%s5 + $0x90] sm:$0xf]
      %v1068 = vld [vmem:[%s5 + $0x94] sm:$0xf]
      %v1069 = vld [vmem:[%s5 + $0x98] sm:$0xf]
      %v1070 = vld [vmem:[%s5 + $0x9c] sm:$0xf]
      %v1071 = vld [vmem:[%s5 + $0xa0] sm:$0xf]
      %v1072 = vld [vmem:[%s5 + $0xa4] sm:$0xf]
      %v1073 = vld [vmem:[%s5 + $0xa8] sm:$0xf]
      %v1074 = vld [vmem:[%s5 + $0xac] sm:$0xf]
      %v1075 = vld [vmem:[%s5 + $0xb0] sm:$0xf]
      %v1076 = vld [vmem:[%s5 + $0xb4] sm:$0xf]
      %v1077 = vld [vmem:[%s5 + $0xb8] sm:$0xf]
      %v1078 = vld [vmem:[%s5 + $0xbc] sm:$0xf]
      %v1079 = vpack.c.bf16 %v1016, %v1015
      %v1080 = vpack.c.bf16 %v1018, %v1017
      %v1081 = vpack.c.bf16 %v1020, %v1019
      %v1082 = vpack.c.bf16 %v1022, %v1021
      %v1083 = vpack.c.bf16 %v1024, %v1023
      %v1084 = vpack.c.bf16 %v1026, %v1025
      %v1085 = vpack.c.bf16 %v1028, %v1027
      %v1086 = vpack.c.bf16 %v1030, %v1029
      %v1088 = vshrl.u32 %v1079, 16
      %v1090 = vrot.slane %v1088, 7
      %v1091 = vshll.u32 %v1079, 16
      %v1093 = vor.u32 %v1090, %v1091
      %v1095 = vshrl.u32 %v1080, 16
      %v1097 = vrot.slane %v1095, 7
      %v1098 = vshll.u32 %v1080, 16
      %v1100 = vor.u32 %v1097, %v1098
      %v1102 = vshrl.u32 %v1081, 16
      %v1104 = vrot.slane %v1102, 7
      %v1105 = vshll.u32 %v1081, 16
      %v1107 = vor.u32 %v1104, %v1105
      %v1109 = vshrl.u32 %v1082, 16
      %v1111 = vrot.slane %v1109, 7
      %v1112 = vshll.u32 %v1082, 16
      %v1114 = vor.u32 %v1111, %v1112
      %v1116 = vshrl.u32 %v1083, 16
      %v1118 = vrot.slane %v1116, 7
      %v1119 = vshll.u32 %v1083, 16
      %v1121 = vor.u32 %v1118, %v1119
      %v1123 = vshrl.u32 %v1084, 16
      %v1125 = vrot.slane %v1123, 7
      %v1126 = vshll.u32 %v1084, 16
      %v1128 = vor.u32 %v1125, %v1126
      %v1130 = vshrl.u32 %v1085, 16
      %v1132 = vrot.slane %v1130, 7
      %v1133 = vshll.u32 %v1085, 16
      %v1135 = vor.u32 %v1132, %v1133
      %v1137 = vshrl.u32 %v1086, 16
      %v1139 = vrot.slane %v1137, 7
      %v1140 = vshll.u32 %v1086, 16
      %v1142 = vor.u32 %v1139, %v1140
      %vm1151 = vcmask 1040384
      %vm1152 = vsmask.f32 256
      %vm1153 = vmand %vm1151, %vm1152
      %v1154 = vsel %vm1153, 0, %v1093
      %v1155 = vsel %vm1153, 0, %v1100
      %v1156 = vsel %vm1153, 0, %v1107
      %v1157 = vsel %vm1153, 0, %v1114
      %v1158 = vsel %vm1153, 0, %v1121
      %v1159 = vsel %vm1153, 0, %v1128
      %v1160 = vsel %vm1153, 0, %v1135
      %v1161 = vsel %vm1153, 0, %v1142
      %v1162 = vrot.slane %v1091, 1
      %v1163 = vor.u32 %v1088, %v1162
      %v1164 = vrot.slane %v1098, 1
      %v1165 = vor.u32 %v1095, %v1164
      %v1166 = vrot.slane %v1105, 1
      %v1167 = vor.u32 %v1102, %v1166
      %v1168 = vrot.slane %v1112, 1
      %v1169 = vor.u32 %v1109, %v1168
      %v1170 = vrot.slane %v1119, 1
      %v1171 = vor.u32 %v1116, %v1170
      %v1172 = vrot.slane %v1126, 1
      %v1173 = vor.u32 %v1123, %v1172
      %v1174 = vrot.slane %v1133, 1
      %v1175 = vor.u32 %v1130, %v1174
      %v1176 = vrot.slane %v1140, 1
      %v1177 = vor.u32 %v1137, %v1176
      %vm1186 = vcmask 1047552
      %vm1187 = vsmask.f32 7424
      %vm1188 = vmand %vm1186, %vm1187
      %v1189 = vsel %vm1188, %v1163, 0
      %v1190 = vsel %vm1188, %v1165, 0
      %v1191 = vsel %vm1188, %v1167, 0
      %v1192 = vsel %vm1188, %v1169, 0
      %v1193 = vsel %vm1188, %v1171, 0
      %v1194 = vsel %vm1188, %v1173, 0
      %v1195 = vsel %vm1188, %v1175, 0
      %v1196 = vsel %vm1188, %v1177, 0
      %v1213 = vunpack.c.l.b16 %v1047
      %v1214 = vunpack.c.l.b16 %v1048
      %v1215 = vunpack.c.l.b16 %v1049
      %v1216 = vunpack.c.l.b16 %v1050
      %v1217 = vunpack.c.l.b16 %v1051
      %v1218 = vunpack.c.l.b16 %v1052
      %v1219 = vunpack.c.l.b16 %v1053
      %v1220 = vunpack.c.l.b16 %v1054
      %v1221 = vunpack.c.l.b16 %v1055
      %v1222 = vunpack.c.l.b16 %v1056
      %v1223 = vunpack.c.l.b16 %v1057
      %v1224 = vunpack.c.l.b16 %v1058
      %v1225 = vunpack.c.l.b16 %v1059
      %v1226 = vunpack.c.l.b16 %v1060
      %v1227 = vunpack.c.l.b16 %v1061
      %v1228 = vunpack.c.l.b16 %v1062
      %v1229 = vpack.c.b16 %v1214, %v1213
      %v1230 = vpack.c.b16 %v1216, %v1215
      %v1231 = vpack.c.b16 %v1218, %v1217
      %v1232 = vpack.c.b16 %v1220, %v1219
      %v1233 = vpack.c.b16 %v1222, %v1221
      %v1234 = vpack.c.b16 %v1224, %v1223
      %v1235 = vpack.c.b16 %v1226, %v1225
      %v1236 = vpack.c.b16 %v1228, %v1227
      %1245 = vmatprep.subr.bf16.mxu0 0
      %1246 = vmatpush1.bf16.msra.mxu0 %v1229
      %1247 = vmatprep.subr.bf16.mxu0 0
      %1248 = vmatpush1.bf16.msra.mxu0 %v1230
      %1249 = vmatprep.subr.bf16.mxu0 0
      %1250 = vmatpush1.bf16.msra.mxu0 %v1231
      %1251 = vmatprep.subr.bf16.mxu0 0
      %1252 = vmatpush1.bf16.msra.mxu0 %v1232
      %1253 = vmatprep.subr.bf16.mxu0 0
      %1254 = vmatpush1.bf16.msra.mxu0 %v1233
      %1255 = vmatprep.subr.bf16.mxu0 0
      %1256 = vmatpush1.bf16.msra.mxu0 %v1234
      %1257 = vmatprep.subr.bf16.mxu0 0
      %1258 = vmatpush1.bf16.msra.mxu0 %v1235
      %1259 = vmatprep.subr.bf16.mxu0 0
      %1260 = vmatpush1.bf16.msra.mxu0 %v1236
      %1261 = vmatprep.subr.bf16.mxu0 0
      %1262 = vmatpush1.bf16.msra.mxu0 0
      %1263 = vmatprep.subr.bf16.mxu0 0
      %1264 = vmatpush1.bf16.msra.mxu0 0
      %1265 = vmatprep.subr.bf16.mxu0 0
      %1266 = vmatpush1.bf16.msra.mxu0 0
      %1267 = vmatprep.subr.bf16.mxu0 0
      %1268 = vmatpush1.bf16.msra.mxu0 0
      %1269 = vmatprep.subr.bf16.mxu0 0
      %1270 = vmatpush1.bf16.msra.mxu0 0
      %1271 = vmatprep.subr.bf16.mxu0 0
      %1272 = vmatpush1.bf16.msra.mxu0 0
      %1273 = vmatprep.subr.bf16.mxu0 0
      %1274 = vmatpush1.bf16.msra.mxu0 0
      %1275 = vmatprep.subr.bf16.mxu0 0
      %1276 = vmatpush1.bf16.msra.mxu0 0
      %1277 = vmatprep.mubr.bf16.mxu0 0
      %1278 = vmatmul.mubr.bf16.gmra.mrb[0].mxu0 %v1079
      %v1279 = vpop.f32.mrb[0].mxu0
      %v1280 = vadd.f32 0.0, %v1279
      %v1281 = vpop.f32.mrb[0].mxu0
      %v1282 = vpop.f32.mrb[0].mxu0
      %v1283 = vadd.f32 0.0, %v1282
      %v1284 = vpop.f32.mrb[0].mxu0
      %1285 = vmatprep.mubr.bf16.mxu0 0
      %1286 = vmatmul.mubr.bf16.gmra.mrb[0].mxu0 %v1080
      %v1287 = vpop.f32.mrb[0].mxu0
      %v1288 = vadd.f32 0.0, %v1287
      %v1289 = vpop.f32.mrb[0].mxu0
      %v1290 = vpop.f32.mrb[0].mxu0
      %v1291 = vadd.f32 0.0, %v1290
      %v1292 = vpop.f32.mrb[0].mxu0
      %1293 = vmatprep.mubr.bf16.mxu0 0
      %1294 = vmatmul.mubr.bf16.gmra.mrb[0].mxu0 %v1081
      %v1295 = vpop.f32.mrb[0].mxu0
      %v1296 = vadd.f32 0.0, %v1295
      %v1297 = vpop.f32.mrb[0].mxu0
      %v1298 = vpop.f32.mrb[0].mxu0
      %v1299 = vadd.f32 0.0, %v1298
      %v1300 = vpop.f32.mrb[0].mxu0
      %1301 = vmatprep.mubr.bf16.mxu0 0
      %1302 = vmatmul.mubr.bf16.gmra.mrb[0].mxu0 %v1082
      %v1303 = vpop.f32.mrb[0].mxu0
      %v1304 = vadd.f32 0.0, %v1303
      %v1305 = vpop.f32.mrb[0].mxu0
      %v1306 = vpop.f32.mrb[0].mxu0
      %v1307 = vadd.f32 0.0, %v1306
      %v1308 = vpop.f32.mrb[0].mxu0
      %1309 = vmatprep.mubr.bf16.mxu0 0
      %1310 = vmatmul.mubr.bf16.gmra.mrb[0].mxu0 %v1083
      %v1311 = vpop.f32.mrb[0].mxu0
      %v1312 = vadd.f32 0.0, %v1311
      %v1313 = vpop.f32.mrb[0].mxu0
      %v1314 = vpop.f32.mrb[0].mxu0
      %v1315 = vadd.f32 0.0, %v1314
      %v1316 = vpop.f32.mrb[0].mxu0
      %1317 = vmatprep.mubr.bf16.mxu0 0
      %1318 = vmatmul.mubr.bf16.gmra.mrb[0].mxu0 %v1084
      %v1319 = vpop.f32.mrb[0].mxu0
      %v1320 = vadd.f32 0.0, %v1319
      %v1321 = vpop.f32.mrb[0].mxu0
      %v1322 = vpop.f32.mrb[0].mxu0
      %v1323 = vadd.f32 0.0, %v1322
      %v1324 = vpop.f32.mrb[0].mxu0
      %1325 = vmatprep.mubr.bf16.mxu0 0
      %1326 = vmatmul.mubr.bf16.gmra.mrb[0].mxu0 %v1085
      %v1327 = vpop.f32.mrb[0].mxu0
      %v1328 = vadd.f32 0.0, %v1327
      %v1329 = vpop.f32.mrb[0].mxu0
      %v1330 = vpop.f32.mrb[0].mxu0
      %v1331 = vadd.f32 0.0, %v1330
      %v1332 = vpop.f32.mrb[0].mxu0
      %1333 = vmatprep.mubr.bf16.mxu0 0
      %1334 = vmatmul.mubr.bf16.gmra.mrb[0].mxu0 %v1086
      %v1335 = vpop.f32.mrb[0].mxu0
      %v1336 = vadd.f32 0.0, %v1335
      %v1337 = vpop.f32.mrb[0].mxu0
      %v1338 = vpop.f32.mrb[0].mxu0
      %v1339 = vadd.f32 0.0, %v1338
      %v1340 = vpop.f32.mrb[0].mxu0
      %1341 = vdwg.mxu0
      %v1358 = vunpack.c.l.b16 %v1031
      %v1359 = vunpack.c.l.b16 %v1032
      %v1360 = vunpack.c.l.b16 %v1033
      %v1361 = vunpack.c.l.b16 %v1034
      %v1362 = vunpack.c.l.b16 %v1035
      %v1363 = vunpack.c.l.b16 %v1036
      %v1364 = vunpack.c.l.b16 %v1037
      %v1365 = vunpack.c.l.b16 %v1038
      %v1366 = vunpack.c.l.b16 %v1039
      %v1367 = vunpack.c.l.b16 %v1040
      %v1368 = vunpack.c.l.b16 %v1041
      %v1369 = vunpack.c.l.b16 %v1042
      %v1370 = vunpack.c.l.b16 %v1043
      %v1371 = vunpack.c.l.b16 %v1044
      %v1372 = vunpack.c.l.b16 %v1045
      %v1373 = vunpack.c.l.b16 %v1046
      %v1374 = vpack.c.b16 %v1359, %v1358
      %v1375 = vpack.c.b16 %v1361, %v1360
      %v1376 = vpack.c.b16 %v1363, %v1362
      %v1377 = vpack.c.b16 %v1365, %v1364
      %v1378 = vpack.c.b16 %v1367, %v1366
      %v1379 = vpack.c.b16 %v1369, %v1368
      %v1380 = vpack.c.b16 %v1371, %v1370
      %v1381 = vpack.c.b16 %v1373, %v1372
      %1390 = vmatprep.subr.bf16.mxu0 0
      %1391 = vmatpush1.bf16.msra.mxu0 %v1374
      %1392 = vmatprep.subr.bf16.mxu0 0
      %1393 = vmatpush1.bf16.msra.mxu0 %v1375
      %1394 = vmatprep.subr.bf16.mxu0 0
      %1395 = vmatpush1.bf16.msra.mxu0 %v1376
      %1396 = vmatprep.subr.bf16.mxu0 0
      %1397 = vmatpush1.bf16.msra.mxu0 %v1377
      %1398 = vmatprep.subr.bf16.mxu0 0
      %1399 = vmatpush1.bf16.msra.mxu0 %v1378
      %1400 = vmatprep.subr.bf16.mxu0 0
      %1401 = vmatpush1.bf16.msra.mxu0 %v1379
      %1402 = vmatprep.subr.bf16.mxu0 0
      %1403 = vmatpush1.bf16.msra.mxu0 %v1380
      %1404 = vmatprep.subr.bf16.mxu0 0
      %1405 = vmatpush1.bf16.msra.mxu0 %v1381
      %1406 = vmatprep.subr.bf16.mxu0 0
      %1407 = vmatpush1.bf16.msra.mxu0 0
      %1408 = vmatprep.subr.bf16.mxu0 0
      %1409 = vmatpush1.bf16.msra.mxu0 0
      %1410 = vmatprep.subr.bf16.mxu0 0
      %1411 = vmatpush1.bf16.msra.mxu0 0
      %1412 = vmatprep.subr.bf16.mxu0 0
      %1413 = vmatpush1.bf16.msra.mxu0 0
      %1414 = vmatprep.subr.bf16.mxu0 0
      %1415 = vmatpush1.bf16.msra.mxu0 0
      %1416 = vmatprep.subr.bf16.mxu0 0
      %1417 = vmatpush1.bf16.msra.mxu0 0
      %1418 = vmatprep.subr.bf16.mxu0 0
      %1419 = vmatpush1.bf16.msra.mxu0 0
      %1420 = vmatprep.subr.bf16.mxu0 0
      %1421 = vmatpush1.bf16.msra.mxu0 0
      %1422 = vmatprep.mubr.bf16.mxu0 0
      %1423 = vmatmul.mubr.bf16.gmra.mrb[0].mxu0 %v1154
      %v1424 = vpop.f32.mrb[0].mxu0
      %v1425 = vadd.f32 %v1280, %v1424
      %v1426 = vpop.f32.mrb[0].mxu0
      %v1427 = vpop.f32.mrb[0].mxu0
      %v1428 = vadd.f32 %v1283, %v1427
      %v1429 = vpop.f32.mrb[0].mxu0
      %1430 = vmatprep.mubr.bf16.mxu0 0
      %1431 = vmatmul.mubr.bf16.gmra.mrb[0].mxu0 %v1155
      %v1432 = vpop.f32.mrb[0].mxu0
      %v1433 = vadd.f32 %v1288, %v1432
      %v1434 = vpop.f32.mrb[0].mxu0
      %v1435 = vpop.f32.mrb[0].mxu0
      %v1436 = vadd.f32 %v1291, %v1435
      %v1437 = vpop.f32.mrb[0].mxu0
      %1438 = vmatprep.mubr.bf16.mxu0 0
      %1439 = vmatmul.mubr.bf16.gmra.mrb[0].mxu0 %v1156
      %v1440 = vpop.f32.mrb[0].mxu0
      %v1441 = vadd.f32 %v1296, %v1440
      %v1442 = vpop.f32.mrb[0].mxu0
      %v1443 = vpop.f32.mrb[0].mxu0
      %v1444 = vadd.f32 %v1299, %v1443
      %v1445 = vpop.f32.mrb[0].mxu0
      %1446 = vmatprep.mubr.bf16.mxu0 0
      %1447 = vmatmul.mubr.bf16.gmra.mrb[0].mxu0 %v1157
      %v1448 = vpop.f32.mrb[0].mxu0
      %v1449 = vadd.f32 %v1304, %v1448
      %v1450 = vpop.f32.mrb[0].mxu0
      %v1451 = vpop.f32.mrb[0].mxu0
      %v1452 = vadd.f32 %v1307, %v1451
      %v1453 = vpop.f32.mrb[0].mxu0
      %1454 = vmatprep.mubr.bf16.mxu0 0
      %1455 = vmatmul.mubr.bf16.gmra.mrb[0].mxu0 %v1158
      %v1456 = vpop.f32.mrb[0].mxu0
      %v1457 = vadd.f32 %v1312, %v1456
      %v1458 = vpop.f32.mrb[0].mxu0
      %v1459 = vpop.f32.mrb[0].mxu0
      %v1460 = vadd.f32 %v1315, %v1459
      %v1461 = vpop.f32.mrb[0].mxu0
      %1462 = vmatprep.mubr.bf16.mxu0 0
      %1463 = vmatmul.mubr.bf16.gmra.mrb[0].mxu0 %v1159
      %v1464 = vpop.f32.mrb[0].mxu0
      %v1465 = vadd.f32 %v1320, %v1464
      %v1466 = vpop.f32.mrb[0].mxu0
      %v1467 = vpop.f32.mrb[0].mxu0
      %v1468 = vadd.f32 %v1323, %v1467
      %v1469 = vpop.f32.mrb[0].mxu0
      %1470 = vmatprep.mubr.bf16.mxu0 0
      %1471 = vmatmul.mubr.bf16.gmra.mrb[0].mxu0 %v1160
      %v1472 = vpop.f32.mrb[0].mxu0
      %v1473 = vadd.f32 %v1328, %v1472
      %v1474 = vpop.f32.mrb[0].mxu0
      %v1475 = vpop.f32.mrb[0].mxu0
      %v1476 = vadd.f32 %v1331, %v1475
      %v1477 = vpop.f32.mrb[0].mxu0
      %1478 = vmatprep.mubr.bf16.mxu0 0
      %1479 = vmatmul.mubr.bf16.gmra.mrb[0].mxu0 %v1161
      %v1480 = vpop.f32.mrb[0].mxu0
      %v1481 = vadd.f32 %v1336, %v1480
      %v1482 = vpop.f32.mrb[0].mxu0
      %v1483 = vpop.f32.mrb[0].mxu0
      %v1484 = vadd.f32 %v1339, %v1483
      %v1485 = vpop.f32.mrb[0].mxu0
      %1486 = vdwg.mxu0
      %v1503 = vunpack.c.l.b16 %v1063
      %v1504 = vunpack.c.l.b16 %v1064
      %v1505 = vunpack.c.l.b16 %v1065
      %v1506 = vunpack.c.l.b16 %v1066
      %v1507 = vunpack.c.l.b16 %v1067
      %v1508 = vunpack.c.l.b16 %v1068
      %v1509 = vunpack.c.l.b16 %v1069
      %v1510 = vunpack.c.l.b16 %v1070
      %v1511 = vunpack.c.l.b16 %v1071
      %v1512 = vunpack.c.l.b16 %v1072
      %v1513 = vunpack.c.l.b16 %v1073
      %v1514 = vunpack.c.l.b16 %v1074
      %v1515 = vunpack.c.l.b16 %v1075
      %v1516 = vunpack.c.l.b16 %v1076
      %v1517 = vunpack.c.l.b16 %v1077
      %v1518 = vunpack.c.l.b16 %v1078
      %v1519 = vpack.c.b16 %v1504, %v1503
      %v1520 = vpack.c.b16 %v1506, %v1505
      %v1521 = vpack.c.b16 %v1508, %v1507
      %v1522 = vpack.c.b16 %v1510, %v1509
      %v1523 = vpack.c.b16 %v1512, %v1511
      %v1524 = vpack.c.b16 %v1514, %v1513
      %v1525 = vpack.c.b16 %v1516, %v1515
      %v1526 = vpack.c.b16 %v1518, %v1517
      %1535 = vmatprep.subr.bf16.mxu0 0
      %1536 = vmatpush1.bf16.msra.mxu0 %v1519
      %1537 = vmatprep.subr.bf16.mxu0 0
      %1538 = vmatpush1.bf16.msra.mxu0 %v1520
      %1539 = vmatprep.subr.bf16.mxu0 0
      %1540 = vmatpush1.bf16.msra.mxu0 %v1521
      %1541 = vmatprep.subr.bf16.mxu0 0
      %1542 = vmatpush1.bf16.msra.mxu0 %v1522
      %1543 = vmatprep.subr.bf16.mxu0 0
      %1544 = vmatpush1.bf16.msra.mxu0 %v1523
      %1545 = vmatprep.subr.bf16.mxu0 0
      %1546 = vmatpush1.bf16.msra.mxu0 %v1524
      %1547 = vmatprep.subr.bf16.mxu0 0
      %1548 = vmatpush1.bf16.msra.mxu0 %v1525
      %1549 = vmatprep.subr.bf16.mxu0 0
      %1550 = vmatpush1.bf16.msra.mxu0 %v1526
      %1551 = vmatprep.subr.bf16.mxu0 0
      %1552 = vmatpush1.bf16.msra.mxu0 0
      %1553 = vmatprep.subr.bf16.mxu0 0
      %1554 = vmatpush1.bf16.msra.mxu0 0
      %1555 = vmatprep.subr.bf16.mxu0 0
      %1556 = vmatpush1.bf16.msra.mxu0 0
      %1557 = vmatprep.subr.bf16.mxu0 0
      %1558 = vmatpush1.bf16.msra.mxu0 0
      %1559 = vmatprep.subr.bf16.mxu0 0
      %1560 = vmatpush1.bf16.msra.mxu0 0
      %1561 = vmatprep.subr.bf16.mxu0 0
      %1562 = vmatpush1.bf16.msra.mxu0 0
      %1563 = vmatprep.subr.bf16.mxu0 0
      %1564 = vmatpush1.bf16.msra.mxu0 0
      %1565 = vmatprep.subr.bf16.mxu0 0
      %1566 = vmatpush1.bf16.msra.mxu0 0
      %1567 = vmatprep.mubr.bf16.mxu0 0
      %1568 = vmatmul.mubr.bf16.gmra.mrb[0].mxu0 %v1189
      %v1569 = vpop.f32.mrb[0].mxu0
      %v1570 = vadd.f32 0.0, %v1569
      %v1571 = vpop.f32.mrb[0].mxu0
      %v1572 = vpop.f32.mrb[0].mxu0
      %v1573 = vadd.f32 0.0, %v1572
      %v1574 = vpop.f32.mrb[0].mxu0
      %1575 = vmatprep.mubr.bf16.mxu0 0
      %1576 = vmatmul.mubr.bf16.gmra.mrb[0].mxu0 %v1190
      %v1577 = vpop.f32.mrb[0].mxu0
      %v1578 = vadd.f32 0.0, %v1577
      %v1579 = vpop.f32.mrb[0].mxu0
      %v1580 = vpop.f32.mrb[0].mxu0
      %v1581 = vadd.f32 0.0, %v1580
      %v1582 = vpop.f32.mrb[0].mxu0
      %1583 = vmatprep.mubr.bf16.mxu0 0
      %1584 = vmatmul.mubr.bf16.gmra.mrb[0].mxu0 %v1191
      %v1585 = vpop.f32.mrb[0].mxu0
      %v1586 = vadd.f32 0.0, %v1585
      %v1587 = vpop.f32.mrb[0].mxu0
      %v1588 = vpop.f32.mrb[0].mxu0
      %v1589 = vadd.f32 0.0, %v1588
      %v1590 = vpop.f32.mrb[0].mxu0
      %1591 = vmatprep.mubr.bf16.mxu0 0
      %1592 = vmatmul.mubr.bf16.gmra.mrb[0].mxu0 %v1192
      %v1593 = vpop.f32.mrb[0].mxu0
      %v1594 = vadd.f32 0.0, %v1593
      %v1595 = vpop.f32.mrb[0].mxu0
      %v1596 = vpop.f32.mrb[0].mxu0
      %v1597 = vadd.f32 0.0, %v1596
      %v1598 = vpop.f32.mrb[0].mxu0
      %1599 = vmatprep.mubr.bf16.mxu0 0
      %1600 = vmatmul.mubr.bf16.gmra.mrb[0].mxu0 %v1193
      %v1601 = vpop.f32.mrb[0].mxu0
      %v1602 = vadd.f32 0.0, %v1601
      %v1603 = vpop.f32.mrb[0].mxu0
      %v1604 = vpop.f32.mrb[0].mxu0
      %v1605 = vadd.f32 0.0, %v1604
      %v1606 = vpop.f32.mrb[0].mxu0
      %1607 = vmatprep.mubr.bf16.mxu0 0
      %1608 = vmatmul.mubr.bf16.gmra.mrb[0].mxu0 %v1194
      %v1609 = vpop.f32.mrb[0].mxu0
      %v1610 = vadd.f32 0.0, %v1609
      %v1611 = vpop.f32.mrb[0].mxu0
      %v1612 = vpop.f32.mrb[0].mxu0
      %v1613 = vadd.f32 0.0, %v1612
      %v1614 = vpop.f32.mrb[0].mxu0
      %1615 = vmatprep.mubr.bf16.mxu0 0
      %1616 = vmatmul.mubr.bf16.gmra.mrb[0].mxu0 %v1195
      %v1617 = vpop.f32.mrb[0].mxu0
      %v1618 = vadd.f32 0.0, %v1617
      %v1619 = vpop.f32.mrb[0].mxu0
      %v1620 = vpop.f32.mrb[0].mxu0
      %v1621 = vadd.f32 0.0, %v1620
      %v1622 = vpop.f32.mrb[0].mxu0
      %1623 = vmatprep.mubr.bf16.mxu0 0
      %1624 = vmatmul.mubr.bf16.gmra.mrb[0].mxu0 %v1196
      %v1625 = vpop.f32.mrb[0].mxu0
      %v1626 = vadd.f32 0.0, %v1625
      %v1627 = vpop.f32.mrb[0].mxu0
      %v1628 = vpop.f32.mrb[0].mxu0
      %v1629 = vadd.f32 0.0, %v1628
      %v1630 = vpop.f32.mrb[0].mxu0
      %1631 = vdwg.mxu0
      %v1632 = vadd.f32 %v1425, %v1570
      %v1633 = vadd.f32 %v1428, %v1573
      %v1634 = vadd.f32 %v1433, %v1578
      %v1635 = vadd.f32 %v1436, %v1581
      %v1636 = vadd.f32 %v1441, %v1586
      %v1637 = vadd.f32 %v1444, %v1589
      %v1638 = vadd.f32 %v1449, %v1594
      %v1639 = vadd.f32 %v1452, %v1597
      %v1640 = vadd.f32 %v1457, %v1602
      %v1641 = vadd.f32 %v1460, %v1605
      %v1642 = vadd.f32 %v1465, %v1610
      %v1643 = vadd.f32 %v1468, %v1613
      %v1644 = vadd.f32 %v1473, %v1618
      %v1645 = vadd.f32 %v1476, %v1621
      %v1646 = vadd.f32 %v1481, %v1626
      %v1647 = vadd.f32 %v1484, %v1629
      %v1648 = vpack.c.bf16 %v1633, %v1632
      %v1649 = vpack.c.bf16 %v1635, %v1634
      %v1650 = vpack.c.bf16 %v1637, %v1636
      %v1651 = vpack.c.bf16 %v1639, %v1638
      %v1652 = vpack.c.bf16 %v1641, %v1640
      %v1653 = vpack.c.bf16 %v1643, %v1642
      %v1654 = vpack.c.bf16 %v1645, %v1644
      %v1655 = vpack.c.bf16 %v1647, %v1646
      %v1664 = vunpack.c.l.b16 %v1648
      %v1665 = vunpack.c.h.b16 %v1648
      %v1666 = vunpack.c.l.b16 %v1649
      %v1667 = vunpack.c.h.b16 %v1649
      %v1668 = vunpack.c.l.b16 %v1650
      %v1669 = vunpack.c.h.b16 %v1650
      %v1670 = vunpack.c.l.b16 %v1651
      %v1671 = vunpack.c.h.b16 %v1651
      %v1672 = vunpack.c.l.b16 %v1652
      %v1673 = vunpack.c.h.b16 %v1652
      %v1674 = vunpack.c.l.b16 %v1653
      %v1675 = vunpack.c.h.b16 %v1653
      %v1676 = vunpack.c.l.b16 %v1654
      %v1677 = vunpack.c.h.b16 %v1654
      %v1678 = vunpack.c.l.b16 %v1655
      %v1679 = vunpack.c.h.b16 %v1655
      %v1680 = vpack.c.b16 %v1664, %v1664
      %v1681 = vpack.c.b16 %v1665, %v1665
      %v1682 = vpack.c.b16 %v1666, %v1666
      %v1683 = vpack.c.b16 %v1667, %v1667
      %v1684 = vpack.c.b16 %v1668, %v1668
      %v1685 = vpack.c.b16 %v1669, %v1669
      %v1686 = vpack.c.b16 %v1670, %v1670
      %v1687 = vpack.c.b16 %v1671, %v1671
      %v1688 = vpack.c.b16 %v1672, %v1672
      %v1689 = vpack.c.b16 %v1673, %v1673
      %v1690 = vpack.c.b16 %v1674, %v1674
      %v1691 = vpack.c.b16 %v1675, %v1675
      %v1692 = vpack.c.b16 %v1676, %v1676
      %v1693 = vpack.c.b16 %v1677, %v1677
      %v1694 = vpack.c.b16 %v1678, %v1678
      %v1695 = vpack.c.b16 %v1679, %v1679
      %1712 = vst [vmem:[%s402] sm:$0xf] %v1680
      %1713 = vst [vmem:[%s402 + $0x4] sm:$0xf] %v1681
      %1714 = vst [vmem:[%s402 + $0x8] sm:$0xf] %v1682
      %1715 = vst [vmem:[%s402 + $0xc] sm:$0xf] %v1683
      %1716 = vst [vmem:[%s402 + $0x10] sm:$0xf] %v1684
      %1717 = vst [vmem:[%s402 + $0x14] sm:$0xf] %v1685
      %1718 = vst [vmem:[%s402 + $0x18] sm:$0xf] %v1686
      %1719 = vst [vmem:[%s402 + $0x1c] sm:$0xf] %v1687
      %1720 = vst [vmem:[%s402 + $0x20] sm:$0xf] %v1688
      %1721 = vst [vmem:[%s402 + $0x24] sm:$0xf] %v1689
      %1722 = vst [vmem:[%s402 + $0x28] sm:$0xf] %v1690
      %1723 = vst [vmem:[%s402 + $0x2c] sm:$0xf] %v1691
      %1724 = vst [vmem:[%s402 + $0x30] sm:$0xf] %v1692
      %1725 = vst [vmem:[%s402 + $0x34] sm:$0xf] %v1693
      %1726 = vst [vmem:[%s402 + $0x38] sm:$0xf] %v1694
      %1727 = vst [vmem:[%s402 + $0x3c] sm:$0xf] %v1695
      %v1728 = vadd.f32 %v1632, %v1633
      %v1729 = vadd.f32 %v1728, %v1634
      %v1730 = vadd.f32 %v1729, %v1635
      %v1731 = vadd.f32 %v1730, %v1636
      %v1732 = vadd.f32 %v1731, %v1637
      %v1733 = vadd.f32 %v1732, %v1638
      %v1734 = vadd.f32 %v1733, %v1639
      %v1735 = vadd.f32 %v1734, %v1640
      %v1736 = vadd.f32 %v1735, %v1641
      %v1737 = vadd.f32 %v1736, %v1642
      %v1738 = vadd.f32 %v1737, %v1643
      %v1739 = vadd.f32 %v1738, %v1644
      %v1740 = vadd.f32 %v1739, %v1645
      %v1741 = vadd.f32 %v1740, %v1646
      %v1742 = vadd.f32 %v1741, %v1647
      %v1743 = vrot.slane %v1742, 4
      %v1744 = vadd.f32 %v1742, %v1743
      %v1745 = vrot.slane %v1744, 2
      %v1746 = vadd.f32 %v1744, %v1745
      %v1747 = vrot.slane %v1746, 1
      %v1748 = vadd.f32 %v1746, %v1747
      %v1749 = vmul.f32 %v1632, %v1632
      %v1750 = vmul.f32 %v1633, %v1633
      %v1751 = vmul.f32 %v1634, %v1634
      %v1752 = vmul.f32 %v1635, %v1635
      %v1753 = vmul.f32 %v1636, %v1636
      %v1754 = vmul.f32 %v1637, %v1637
      %v1755 = vmul.f32 %v1638, %v1638
      %v1756 = vmul.f32 %v1639, %v1639
      %v1757 = vmul.f32 %v1640, %v1640
      %v1758 = vmul.f32 %v1641, %v1641
      %v1759 = vmul.f32 %v1642, %v1642
      %v1760 = vmul.f32 %v1643, %v1643
      %v1761 = vmul.f32 %v1644, %v1644
      %v1762 = vmul.f32 %v1645, %v1645
      %v1763 = vmul.f32 %v1646, %v1646
      %v1764 = vmul.f32 %v1647, %v1647
      %v1765 = vadd.f32 %v1749, %v1750
      %v1766 = vadd.f32 %v1765, %v1751
      %v1767 = vadd.f32 %v1766, %v1752
      %v1768 = vadd.f32 %v1767, %v1753
      %v1769 = vadd.f32 %v1768, %v1754
      %v1770 = vadd.f32 %v1769, %v1755
      %v1771 = vadd.f32 %v1770, %v1756
      %v1772 = vadd.f32 %v1771, %v1757
      %v1773 = vadd.f32 %v1772, %v1758
      %v1774 = vadd.f32 %v1773, %v1759
      %v1775 = vadd.f32 %v1774, %v1760
      %v1776 = vadd.f32 %v1775, %v1761
      %v1777 = vadd.f32 %v1776, %v1762
      %v1778 = vadd.f32 %v1777, %v1763
      %v1779 = vadd.f32 %v1778, %v1764
      %v1780 = vrot.slane %v1779, 4
      %v1781 = vadd.f32 %v1779, %v1780
      %v1782 = vrot.slane %v1781, 2
      %v1783 = vadd.f32 %v1781, %v1782
      %v1784 = vrot.slane %v1783, 1
      %v1785 = vadd.f32 %v1783, %v1784
      %vm1786 = vcmask 1040384
      %v1787 = vsel %vm1786, %v1748, %v1785
      %1788 = vst [vmem:[%s411] sm:$0x3] %v1787
      %s1789 = smul.u32 8, %s24
      %p1790 = scmp.lt.s32.totalorder %s23, 1
      %s1791 = scalar_select %p1790, %s23, 1
      %p1792 = scmp.lt.s32.totalorder %s1789, 15
      %s1793 = scalar_select %p1792, %s1789, 15
      %s1794 = smul.addr %s1793, 2
      %s1795 = smul.addr %s1791, 32
      %s1796 = sadd.s32 %s1794, %s1795
      %s1797 = smul.addr %s1796, 4
      %s1798 = scalar_lea.vmem %s6, %s1797
      %p1799 = scmp.lt.s32.totalorder %s23, 1
      %s1800 = scalar_select %p1799, %s23, 1
      %p1801 = scmp.lt.s32.totalorder %s24, 1
      %s1802 = scalar_select %p1801, %s24, 1
      %s1803 = smul.addr %s1800, 2
      %s1804 = sadd.s32 %s1802, %s1803
      %s1805 = smul.addr %s1804, 2
      %s1806 = scalar_lea.vmem %s7, %s1805
      // Predicated region
      $region45: #{non_bottleneck_1d_pallas.3} parent=43 // pred_check
        %p1807 = pneg %p198
      $region46: #{non_bottleneck_1d_pallas.3} parent=43 // pred_check_branch
        %1809 = sbr.rel (%p1807) target = $region48
      $region47: #{non_bottleneck_1d_pallas.3} parent=43 // pred_region
        %s1810 = smul.u32 8, %s24
      $region48: #{non_bottleneck_1d_pallas.3} parent=43 // pred_fallthru
        _
      // Predicated region
      $region49: #{non_bottleneck_1d_pallas.3} parent=43 // pred_check
        %p1811 = pneg %p226
      $region50: #{non_bottleneck_1d_pallas.3} parent=43 // pred_check_branch
        %1813 = sbr.rel (%p1811) target = $region52
      $region51: #{non_bottleneck_1d_pallas.3} parent=43 // pred_region
        _
      $region52: #{non_bottleneck_1d_pallas.3} parent=43 // pred_fallthru
        _
    $region44: #{non_bottleneck_1d_pallas.3} parent=5 // pred_fallthru
      _
    %p1814 = scmp.le.s32.totalorder 2, %s14
    // Predicated region
    $region53: #{non_bottleneck_1d_pallas.3} parent=5 // pred_check
      %p1815 = pneg %p1814
    $region54: #{non_bottleneck_1d_pallas.3} parent=5 // pred_check_branch
      %1817 = sbr.rel (%p1815) target = $region56
    $region55: #{non_bottleneck_1d_pallas.3} parent=5 // pred_region
      %s1818 = ssub.s32 %s14, 2
      // Predicated region
      $region57: #{non_bottleneck_1d_pallas.3} parent=55 // pred_check
        %p1819 = pneg %p204
      $region58: #{non_bottleneck_1d_pallas.3} parent=55 // pred_check_branch
        %1821 = sbr.rel (%p1819) target = $region60
      $region59: #{non_bottleneck_1d_pallas.3} parent=55 // pred_region
        %s1822 = smul.u32 8, %s26
        %p1823 = scmp.lt.s32.totalorder %s25, 1
        %s1824 = scalar_select %p1823, %s25, 1
        %p1825 = scmp.lt.s32.totalorder %s1822, 15
        %s1826 = scalar_select %p1825, %s1822, 15
        %s1827 = smul.addr %s1826, 2
        %s1828 = smul.addr %s1824, 32
        %s1829 = sadd.s32 %s1827, %s1828
        %s1830 = smul.addr %s1829, 4
        %s1831 = scalar_lea.vmem %s6, %s1830
      $region60: #{non_bottleneck_1d_pallas.3} parent=55 // pred_fallthru
        _
      // Predicated region
      $region61: #{non_bottleneck_1d_pallas.3} parent=55 // pred_check
        %p1832 = pneg %p232
      $region62: #{non_bottleneck_1d_pallas.3} parent=55 // pred_check_branch
        %1834 = sbr.rel (%p1832) target = $region64
      $region63: #{non_bottleneck_1d_pallas.3} parent=55 // pred_region
        %p1835 = scmp.lt.s32.totalorder %s25, 1
        %s1836 = scalar_select %p1835, %s25, 1
        %p1837 = scmp.lt.s32.totalorder %s26, 1
        %s1838 = scalar_select %p1837, %s26, 1
        %s1839 = smul.addr %s1836, 2
        %s1840 = sadd.s32 %s1838, %s1839
        %s1841 = smul.addr %s1840, 2
        %s1842 = scalar_lea.vmem %s7, %s1841
      $region64: #{non_bottleneck_1d_pallas.3} parent=55 // pred_fallthru
        _
    $region56: #{non_bottleneck_1d_pallas.3} parent=5 // pred_fallthru
      _
  $region6: #{non_bottleneck_1d_pallas.3} parent=0 // loop_footer
    %s18 = sadd.s32 1, %s14
  $region7: #{non_bottleneck_1d_pallas.3} parent=0 // loop_footer_branch
    %13 = sbr.rel target = $region3
  $region8: #{non_bottleneck_1d_pallas.3} parent=0 // loop_exit
    _

// kernel: non_bottleneck_1d_pallas.4
$region0: #{non_bottleneck_1d_pallas.4}
  #allocation0 [shape = 'u32[]', space=smem, size = 0x4, offset = 0x4, fixed_abs, tag = 'smem constant byte address 0x4 - core index']
  #allocation1 [shape = 'u32[144,128]{1,0:T(1,128)}', space=vmem, size = 0x12000, scoped, tag = 'internal scratch']
  %s0 = inlined_call_operand.vmem [shape: bf16[2,16,16,128], index: 0, kind: input, shape index: {}]
  %s1 = inlined_call_operand.vmem [shape: bf16[2,4,16,128], index: 1, kind: input, shape index: {}]
  %s2 = inlined_call_operand.vmem [shape: bf16[2,4,16,128], index: 2, kind: input, shape index: {}]
  %s3 = inlined_call_operand.vmem [shape: f32[1,128], index: 3, kind: input, shape index: {}]
  %s4 = inlined_call_operand.vmem [shape: f32[1,128], index: 4, kind: input, shape index: {}]
  %s5 = inlined_call_operand.vmem [shape: bf16[3,128,128], index: 5, kind: input, shape index: {}]
  %s6 = inlined_call_operand.vmem [shape: f32[1,128], index: 6, kind: input, shape index: {}]
  %s7 = inlined_call_operand.vmem [shape: bf16[3,128,128], index: 7, kind: input, shape index: {}]
  %s8 = inlined_call_operand.vmem [shape: bf16[2,16,16,128], index: 8, kind: output, shape index: {0}]
  %s9 = inlined_call_operand.vmem [shape: f32[2,2,2,128], index: 9, kind: output, shape index: {1}]
  %10 = xla_tuple %s8, %s9
  %s11 = sld [smem:[#allocation0]]
  $region73: #{non_bottleneck_1d_pallas.4} parent=0
    _
  %s13 = ssub.s32 1, %s11
  %s14 = scalar_select 0, %s13, %s11
  loop: start=0, step=1, limit=6
  $region2: #{non_bottleneck_1d_pallas.4} parent=0 // loop_pre_header
    _
  $region3: #{non_bottleneck_1d_pallas.4} parent=0 // loop_header
    %s16 = sphi 0, %s20
    %p17 = scmp.ge.s32.totalorder %s16, 6
    %s23 = sphi 0, %s35
    %s24 = sphi 0, %s31
    %s25 = sphi 0, %s23
    %s26 = sphi 0, %s24
    %s27 = sphi 0, %s25
    %s28 = sphi 0, %s26
    %s40 = sphi 0, %s42
    %s43 = sphi 0, %s40
    %s44 = sphi 0, %s43
    %s60 = sphi 0, %s44
    %s68 = sphi 0, %s70
    %s71 = sphi 0, %s68
    %s72 = sphi 0, %s71
    %s88 = sphi 0, %s72
    %s96 = sphi 0, %s98
    %s99 = sphi 0, %s96
    %s100 = sphi 0, %s99
    %s116 = sphi 0, %s100
    %s120 = sphi 0, %s120
    %s122 = sphi 0, %s120
    %s123 = sphi 0, %s122
    %s137 = sphi 0, %s123
    %s141 = sphi 0, %s141
    %s143 = sphi 0, %s141
    %s144 = sphi 0, %s143
    %s158 = sphi 0, %s144
    %s162 = sphi 0, %s162
    %s164 = sphi 0, %s162
    %s165 = sphi 0, %s164
    %s179 = sphi 0, %s165
    %s183 = sphi 0, %s183
    %s185 = sphi 0, %s183
    %s186 = sphi 0, %s185
    %s200 = sphi 0, %s186
    %s204 = sphi 0, %s204
    %s206 = sphi 0, %s204
    %s207 = sphi 0, %s206
    %s221 = sphi 0, %s207
    %s229 = sphi 0, %s231
    %s232 = sphi 0, %s229
    %s233 = sphi 0, %s232
    %s249 = sphi 0, %s233
    %s257 = sphi 0, %s259
    %s260 = sphi 0, %s257
    %s261 = sphi 0, %s260
    %s277 = sphi 0, %s261
  $region4: #{non_bottleneck_1d_pallas.4} parent=0 // loop_header_branch
    %19 = sbr.rel (%p17) target = $region8
  $region5: #{non_bottleneck_1d_pallas.4} parent=0 // loop_body
    %s21 = ssub.s32 %s16, 1
    %s22 = ssub.s32 %s16, 2
    %s29 = sadd.s32 1, %s24
    %p30 = scmp.ge.s32.totalorder %s29, 2
    %s31 = scalar_select %p30, 0, %s29
    %s32 = sadd.s32 1, %s23
    %s33 = scalar_select %p30, %s32, %s23
    %p34 = scmp.ge.s32.totalorder %s33, 2
    %s35 = scalar_select %p34, 0, %s33
    %s36 = ssub.s32 %s23, %s35
    %s37 = ssub.s32 %s24, %s31
    %s38 = sor.u32 %s36, %s37
    %p39 = scmp.eq.s32.totalorder %s38, 0
    %s41 = sadd.s32 %s40, 1
    %s42 = scalar_select %p39, %s40, %s41
    %p45 = pneg %p39
    %p46 = scmp.eq.s32.totalorder %s16, 3
    %p47 = por %p45, %p46
    %p48 = scmp.ne.s32.totalorder %s40, %s43
    %p49 = scmp.eq.s32.totalorder %s16, 0
    %p50 = por %p48, %p49
    %p51 = scmp.ne.s32.totalorder %s40, %s43
    %p52 = scmp.eq.s32.totalorder %s21, 3
    %p53 = por %p51, %p52
    %p54 = scmp.ne.s32.totalorder %s43, %s44
    %p55 = scmp.eq.s32.totalorder %s21, 0
    %p56 = por %p54, %p55
    %p57 = scmp.ne.s32.totalorder %s43, %s44
    %p58 = scmp.eq.s32.totalorder %s22, 3
    %p59 = por %p57, %p58
    %p61 = scmp.ne.s32.totalorder %s44, %s60
    %p62 = scmp.eq.s32.totalorder %s22, 0
    %p63 = por %p61, %p62
    %s64 = ssub.s32 %s23, %s35
    %s65 = ssub.s32 %s24, %s31
    %s66 = sor.u32 %s64, %s65
    %p67 = scmp.eq.s32.totalorder %s66, 0
    %s69 = sadd.s32 %s68, 1
    %s70 = scalar_select %p67, %s68, %s69
    %p73 = pneg %p67
    %p74 = scmp.eq.s32.totalorder %s16, 3
    %p75 = por %p73, %p74
    %p76 = scmp.ne.s32.totalorder %s68, %s71
    %p77 = scmp.eq.s32.totalorder %s16, 0
    %p78 = por %p76, %p77
    %p79 = scmp.ne.s32.totalorder %s68, %s71
    %p80 = scmp.eq.s32.totalorder %s21, 3
    %p81 = por %p79, %p80
    %p82 = scmp.ne.s32.totalorder %s71, %s72
    %p83 = scmp.eq.s32.totalorder %s21, 0
    %p84 = por %p82, %p83
    %p85 = scmp.ne.s32.totalorder %s71, %s72
    %p86 = scmp.eq.s32.totalorder %s22, 3
    %p87 = por %p85, %p86
    %p89 = scmp.ne.s32.totalorder %s72, %s88
    %p90 = scmp.eq.s32.totalorder %s22, 0
    %p91 = por %p89, %p90
    %s92 = ssub.s32 %s23, %s35
    %s93 = ssub.s32 %s24, %s31
    %s94 = sor.u32 %s92, %s93
    %p95 = scmp.eq.s32.totalorder %s94, 0
    %s97 = sadd.s32 %s96, 1
    %s98 = scalar_select %p95, %s96, %s97
    %p101 = pneg %p95
    %p102 = scmp.eq.s32.totalorder %s16, 3
    %p103 = por %p101, %p102
    %p104 = scmp.ne.s32.totalorder %s96, %s99
    %p105 = scmp.eq.s32.totalorder %s16, 0
    %p106 = por %p104, %p105
    %p107 = scmp.ne.s32.totalorder %s96, %s99
    %p108 = scmp.eq.s32.totalorder %s21, 3
    %p109 = por %p107, %p108
    %p110 = scmp.ne.s32.totalorder %s99, %s100
    %p111 = scmp.eq.s32.totalorder %s21, 0
    %p112 = por %p110, %p111
    %p113 = scmp.ne.s32.totalorder %s99, %s100
    %p114 = scmp.eq.s32.totalorder %s22, 3
    %p115 = por %p113, %p114
    %p117 = scmp.ne.s32.totalorder %s100, %s116
    %p118 = scmp.eq.s32.totalorder %s22, 0
    %p119 = por %p117, %p118
    %s121 = sadd.s32 %s120, 1
    %p124 = scmp.eq.s32.totalorder %s16, 3
    %p125 = scmp.ne.s32.totalorder %s120, %s122
    %p126 = scmp.eq.s32.totalorder %s16, 0
    %p127 = por %p125, %p126
    %p128 = scmp.ne.s32.totalorder %s120, %s122
    %p129 = scmp.eq.s32.totalorder %s21, 3
    %p130 = por %p128, %p129
    %p131 = scmp.ne.s32.totalorder %s122, %s123
    %p132 = scmp.eq.s32.totalorder %s21, 0
    %p133 = por %p131, %p132
    %p134 = scmp.ne.s32.totalorder %s122, %s123
    %p135 = scmp.eq.s32.totalorder %s22, 3
    %p136 = por %p134, %p135
    %p138 = scmp.ne.s32.totalorder %s123, %s137
    %p139 = scmp.eq.s32.totalorder %s22, 0
    %p140 = por %p138, %p139
    %s142 = sadd.s32 %s141, 1
    %p145 = scmp.eq.s32.totalorder %s16, 3
    %p146 = scmp.ne.s32.totalorder %s141, %s143
    %p147 = scmp.eq.s32.totalorder %s16, 0
    %p148 = por %p146, %p147
    %p149 = scmp.ne.s32.totalorder %s141, %s143
    %p150 = scmp.eq.s32.totalorder %s21, 3
    %p151 = por %p149, %p150
    %p152 = scmp.ne.s32.totalorder %s143, %s144
    %p153 = scmp.eq.s32.totalorder %s21, 0
    %p154 = por %p152, %p153
    %p155 = scmp.ne.s32.totalorder %s143, %s144
    %p156 = scmp.eq.s32.totalorder %s22, 3
    %p157 = por %p155, %p156
    %p159 = scmp.ne.s32.totalorder %s144, %s158
    %p160 = scmp.eq.s32.totalorder %s22, 0
    %p161 = por %p159, %p160
    %s163 = sadd.s32 %s162, 1
    %p166 = scmp.eq.s32.totalorder %s16, 3
    %p167 = scmp.ne.s32.totalorder %s162, %s164
    %p168 = scmp.eq.s32.totalorder %s16, 0
    %p169 = por %p167, %p168
    %p170 = scmp.ne.s32.totalorder %s162, %s164
    %p171 = scmp.eq.s32.totalorder %s21, 3
    %p172 = por %p170, %p171
    %p173 = scmp.ne.s32.totalorder %s164, %s165
    %p174 = scmp.eq.s32.totalorder %s21, 0
    %p175 = por %p173, %p174
    %p176 = scmp.ne.s32.totalorder %s164, %s165
    %p177 = scmp.eq.s32.totalorder %s22, 3
    %p178 = por %p176, %p177
    %p180 = scmp.ne.s32.totalorder %s165, %s179
    %p181 = scmp.eq.s32.totalorder %s22, 0
    %p182 = por %p180, %p181
    %s184 = sadd.s32 %s183, 1
    %p187 = scmp.eq.s32.totalorder %s16, 3
    %p188 = scmp.ne.s32.totalorder %s183, %s185
    %p189 = scmp.eq.s32.totalorder %s16, 0
    %p190 = por %p188, %p189
    %p191 = scmp.ne.s32.totalorder %s183, %s185
    %p192 = scmp.eq.s32.totalorder %s21, 3
    %p193 = por %p191, %p192
    %p194 = scmp.ne.s32.totalorder %s185, %s186
    %p195 = scmp.eq.s32.totalorder %s21, 0
    %p196 = por %p194, %p195
    %p197 = scmp.ne.s32.totalorder %s185, %s186
    %p198 = scmp.eq.s32.totalorder %s22, 3
    %p199 = por %p197, %p198
    %p201 = scmp.ne.s32.totalorder %s186, %s200
    %p202 = scmp.eq.s32.totalorder %s22, 0
    %p203 = por %p201, %p202
    %s205 = sadd.s32 %s204, 1
    %p208 = scmp.eq.s32.totalorder %s16, 3
    %p209 = scmp.ne.s32.totalorder %s204, %s206
    %p210 = scmp.eq.s32.totalorder %s16, 0
    %p211 = por %p209, %p210
    %p212 = scmp.ne.s32.totalorder %s204, %s206
    %p213 = scmp.eq.s32.totalorder %s21, 3
    %p214 = por %p212, %p213
    %p215 = scmp.ne.s32.totalorder %s206, %s207
    %p216 = scmp.eq.s32.totalorder %s21, 0
    %p217 = por %p215, %p216
    %p218 = scmp.ne.s32.totalorder %s206, %s207
    %p219 = scmp.eq.s32.totalorder %s22, 3
    %p220 = por %p218, %p219
    %p222 = scmp.ne.s32.totalorder %s207, %s221
    %p223 = scmp.eq.s32.totalorder %s22, 0
    %p224 = por %p222, %p223
    %s225 = ssub.s32 %s23, %s35
    %s226 = ssub.s32 %s24, %s31
    %s227 = sor.u32 %s225, %s226
    %p228 = scmp.eq.s32.totalorder %s227, 0
    %s230 = sadd.s32 %s229, 1
    %s231 = scalar_select %p228, %s229, %s230
    %p234 = pneg %p228
    %p235 = scmp.eq.s32.totalorder %s16, 3
    %p236 = por %p234, %p235
    %p237 = scmp.ne.s32.totalorder %s229, %s232
    %p238 = scmp.eq.s32.totalorder %s16, 0
    %p239 = por %p237, %p238
    %p240 = scmp.ne.s32.totalorder %s229, %s232
    %p241 = scmp.eq.s32.totalorder %s21, 3
    %p242 = por %p240, %p241
    %p243 = scmp.ne.s32.totalorder %s232, %s233
    %p244 = scmp.eq.s32.totalorder %s21, 0
    %p245 = por %p243, %p244
    %p246 = scmp.ne.s32.totalorder %s232, %s233
    %p247 = scmp.eq.s32.totalorder %s22, 3
    %p248 = por %p246, %p247
    %p250 = scmp.ne.s32.totalorder %s233, %s249
    %p251 = scmp.eq.s32.totalorder %s22, 0
    %p252 = por %p250, %p251
    %s253 = ssub.s32 %s23, %s35
    %s254 = ssub.s32 %s24, %s31
    %s255 = sor.u32 %s253, %s254
    %p256 = scmp.eq.s32.totalorder %s255, 0
    %s258 = sadd.s32 %s257, 1
    %s259 = scalar_select %p256, %s257, %s258
    %p262 = pneg %p256
    %p263 = scmp.eq.s32.totalorder %s16, 3
    %p264 = por %p262, %p263
    %p265 = scmp.ne.s32.totalorder %s257, %s260
    %p266 = scmp.eq.s32.totalorder %s16, 0
    %p267 = por %p265, %p266
    %p268 = scmp.ne.s32.totalorder %s257, %s260
    %p269 = scmp.eq.s32.totalorder %s21, 3
    %p270 = por %p268, %p269
    %p271 = scmp.ne.s32.totalorder %s260, %s261
    %p272 = scmp.eq.s32.totalorder %s21, 0
    %p273 = por %p271, %p272
    %p274 = scmp.ne.s32.totalorder %s260, %s261
    %p275 = scmp.eq.s32.totalorder %s22, 3
    %p276 = por %p274, %p275
    %p278 = scmp.ne.s32.totalorder %s261, %s277
    %p279 = scmp.eq.s32.totalorder %s22, 0
    %p280 = por %p278, %p279
    %p281 = scmp.le.s32.totalorder 1, %s16
    %p282 = scmp.lt.s32.totalorder %s16, 5
    %p283 = pnand %p281, %p282
    %p284 = pneg %p283
    // Predicated region
    $region9: #{non_bottleneck_1d_pallas.4} parent=5 // pred_check
      _
    $region10: #{non_bottleneck_1d_pallas.4} parent=5 // pred_check_branch
      %286 = sbr.rel (%p283) target = $region12
    $region11: #{non_bottleneck_1d_pallas.4} parent=5 // pred_region
      %s287 = ssub.s32 %s16, 1
      // Predicated region
      $region13: #{non_bottleneck_1d_pallas.4} parent=11 // pred_check
        %p288 = pneg %p133
      $region14: #{non_bottleneck_1d_pallas.4} parent=11 // pred_check_branch
        %290 = sbr.rel (%p288) target = $region16
      $region15: #{non_bottleneck_1d_pallas.4} parent=11 // pred_region
        _
      $region16: #{non_bottleneck_1d_pallas.4} parent=11 // pred_fallthru
        _
      // Predicated region
      $region17: #{non_bottleneck_1d_pallas.4} parent=11 // pred_check
        %p291 = pneg %p154
      $region18: #{non_bottleneck_1d_pallas.4} parent=11 // pred_check_branch
        %293 = sbr.rel (%p291) target = $region20
      $region19: #{non_bottleneck_1d_pallas.4} parent=11 // pred_region
        _
      $region20: #{non_bottleneck_1d_pallas.4} parent=11 // pred_fallthru
        _
      // Predicated region
      $region21: #{non_bottleneck_1d_pallas.4} parent=11 // pred_check
        %p294 = pneg %p175
      $region22: #{non_bottleneck_1d_pallas.4} parent=11 // pred_check_branch
        %296 = sbr.rel (%p294) target = $region24
      $region23: #{non_bottleneck_1d_pallas.4} parent=11 // pred_region
        _
      $region24: #{non_bottleneck_1d_pallas.4} parent=11 // pred_fallthru
        _
      // Predicated region
      $region25: #{non_bottleneck_1d_pallas.4} parent=11 // pred_check
        %p297 = pneg %p196
      $region26: #{non_bottleneck_1d_pallas.4} parent=11 // pred_check_branch
        %299 = sbr.rel (%p297) target = $region28
      $region27: #{non_bottleneck_1d_pallas.4} parent=11 // pred_region
        _
      $region28: #{non_bottleneck_1d_pallas.4} parent=11 // pred_fallthru
        _
      // Predicated region
      $region29: #{non_bottleneck_1d_pallas.4} parent=11 // pred_check
        %p300 = pneg %p217
      $region30: #{non_bottleneck_1d_pallas.4} parent=11 // pred_check_branch
        %302 = sbr.rel (%p300) target = $region32
      $region31: #{non_bottleneck_1d_pallas.4} parent=11 // pred_region
        _
      $region32: #{non_bottleneck_1d_pallas.4} parent=11 // pred_fallthru
        _
    $region12: #{non_bottleneck_1d_pallas.4} parent=5 // pred_fallthru
      _
    %p303 = scmp.lt.s32.totalorder %s16, 4
    // Predicated region
    $region33: #{non_bottleneck_1d_pallas.4} parent=5 // pred_check
      %p304 = pneg %p303
    $region34: #{non_bottleneck_1d_pallas.4} parent=5 // pred_check_branch
      %306 = sbr.rel (%p304) target = $region36
    $region35: #{non_bottleneck_1d_pallas.4} parent=5 // pred_region
      // Predicated region
      $region37: #{non_bottleneck_1d_pallas.4} parent=35 // pred_check
        %p307 = pneg %p50
      $region38: #{non_bottleneck_1d_pallas.4} parent=35 // pred_check_branch
        %309 = sbr.rel (%p307) target = $region40
      $region39: #{non_bottleneck_1d_pallas.4} parent=35 // pred_region
        %s310 = smul.u32 8, %s24
        %p311 = scmp.lt.s32.totalorder %s23, 1
        %s312 = scalar_select %p311, %s23, 1
        %p313 = scmp.lt.s32.totalorder %s310, 15
        %s314 = scalar_select %p313, %s310, 15
        %s315 = smul.addr %s314, 2
        %s316 = smul.addr %s312, 32
        %s317 = sadd.s32 %s315, %s316
        %s318 = smul.addr %s317, 4
        %s319 = scalar_lea.vmem %s0, %s318
        %s320 = smul.u32 8, %s24
      $region40: #{non_bottleneck_1d_pallas.4} parent=35 // pred_fallthru
        _
      // Predicated region
      $region41: #{non_bottleneck_1d_pallas.4} parent=35 // pred_check
        %p321 = pneg %p78
      $region42: #{non_bottleneck_1d_pallas.4} parent=35 // pred_check_branch
        %323 = sbr.rel (%p321) target = $region44
      $region43: #{non_bottleneck_1d_pallas.4} parent=35 // pred_region
        %s324 = smul.u32 2, %s24
        %p325 = scmp.lt.s32.totalorder %s23, 1
        %s326 = scalar_select %p325, %s23, 1
        %p327 = scmp.lt.s32.totalorder %s324, 3
        %s328 = scalar_select %p327, %s324, 3
        %s329 = smul.addr %s328, 2
        %s330 = smul.addr %s326, 8
        %s331 = sadd.s32 %s329, %s330
        %s332 = smul.addr %s331, 4
        %s333 = scalar_lea.vmem %s1, %s332
        %s334 = smul.u32 2, %s24
      $region44: #{non_bottleneck_1d_pallas.4} parent=35 // pred_fallthru
        _
      // Predicated region
      $region45: #{non_bottleneck_1d_pallas.4} parent=35 // pred_check
        %p335 = pneg %p106
      $region46: #{non_bottleneck_1d_pallas.4} parent=35 // pred_check_branch
        %337 = sbr.rel (%p335) target = $region48
      $region47: #{non_bottleneck_1d_pallas.4} parent=35 // pred_region
        %s338 = smul.u32 2, %s24
        %p339 = scmp.lt.s32.totalorder %s23, 1
        %s340 = scalar_select %p339, %s23, 1
        %p341 = scmp.lt.s32.totalorder %s338, 3
        %s342 = scalar_select %p341, %s338, 3
        %s343 = smul.addr %s342, 2
        %s344 = smul.addr %s340, 8
        %s345 = sadd.s32 %s343, %s344
        %s346 = smul.addr %s345, 4
        %s347 = scalar_lea.vmem %s2, %s346
        %s348 = smul.u32 2, %s24
      $region48: #{non_bottleneck_1d_pallas.4} parent=35 // pred_fallthru
        _
    $region36: #{non_bottleneck_1d_pallas.4} parent=5 // pred_fallthru
      _
    %p349 = scmp.le.s32.totalorder 1, %s16
    %p350 = scmp.lt.s32.totalorder %s16, 5
    %p351 = pnand %p349, %p350
    %p352 = pneg %p351
    // Predicated region
    $region49: #{non_bottleneck_1d_pallas.4} parent=5 // pred_check
      _
    $region50: #{non_bottleneck_1d_pallas.4} parent=5 // pred_check_branch
      %354 = sbr.rel (%p351) target = $region52
    $region51: #{non_bottleneck_1d_pallas.4} parent=5 // pred_region
      %s355 = ssub.s32 %s16, 1
      %s356 = smul.u32 8, %s26
      %p357 = scmp.lt.s32.totalorder %s25, 1
      %s358 = scalar_select %p357, %s25, 1
      %p359 = scmp.lt.s32.totalorder %s356, 15
      %s360 = scalar_select %p359, %s356, 15
      %s361 = smul.addr %s360, 2
      %s362 = smul.addr %s358, 32
      %s363 = sadd.s32 %s361, %s362
      %s364 = smul.addr %s363, 4
      %s365 = scalar_lea.vmem %s0, %s364
      %p366 = pneg %p56
      %p367 = pneg %p53
      %s368 = smul.u32 2, %s26
      %p369 = scmp.lt.s32.totalorder %s25, 1
      %s370 = scalar_select %p369, %s25, 1
      %p371 = scmp.lt.s32.totalorder %s368, 3
      %s372 = scalar_select %p371, %s368, 3
      %s373 = smul.addr %s372, 2
      %s374 = smul.addr %s370, 8
      %s375 = sadd.s32 %s373, %s374
      %s376 = smul.addr %s375, 4
      %s377 = scalar_lea.vmem %s1, %s376
      %p378 = pneg %p84
      %p379 = pneg %p81
      %s380 = smul.u32 2, %s26
      %p381 = scmp.lt.s32.totalorder %s25, 1
      %s382 = scalar_select %p381, %s25, 1
      %p383 = scmp.lt.s32.totalorder %s380, 3
      %s384 = scalar_select %p383, %s380, 3
      %s385 = smul.addr %s384, 2
      %s386 = smul.addr %s382, 8
      %s387 = sadd.s32 %s385, %s386
      %s388 = smul.addr %s387, 4
      %s389 = scalar_lea.vmem %s2, %s388
      %p390 = pneg %p112
      %p391 = pneg %p109
      %p392 = pneg %p133
      %p393 = pneg %p130
      %p394 = pneg %p154
      %p395 = pneg %p151
      %p396 = pneg %p175
      %p397 = pneg %p172
      %p398 = pneg %p196
      %p399 = pneg %p193
      %p400 = pneg %p217
      %p401 = pneg %p214
      %p402 = pneg %p245
      %p403 = pneg %p242
      %s404 = smul.u32 8, %s26
      %p405 = scmp.lt.s32.totalorder %s25, 1
      %s406 = scalar_select %p405, %s25, 1
      %p407 = scmp.lt.s32.totalorder %s404, 15
      %s408 = scalar_select %p407, %s404, 15
      %s409 = smul.addr %s408, 2
      %s410 = smul.addr %s406, 32
      %s411 = sadd.s32 %s409, %s410
      %s412 = smul.addr %s411, 4
      %s413 = scalar_lea.vmem %s8, %s412
      %p414 = pneg %p273
      %p415 = pneg %p270
      %p416 = scmp.lt.s32.totalorder %s25, 1
      %s417 = scalar_select %p416, %s25, 1
      %p418 = scmp.lt.s32.totalorder %s26, 1
      %s419 = scalar_select %p418, %s26, 1
      %s420 = smul.addr %s417, 2
      %s421 = sadd.s32 %s419, %s420
      %s422 = smul.addr %s421, 2
      %s423 = scalar_lea.vmem %s9, %s422
      %s424 = smul.u32 8, %s26
      %p425 = scmp.lt.s32.totalorder %s25, 1
      %s426 = scalar_select %p425, %s25, 1
      %p427 = scmp.lt.s32.totalorder %s424, 15
      %s428 = scalar_select %p427, %s424, 15
      %s429 = smul.addr %s428, 2
      %s430 = smul.addr %s426, 32
      %s431 = sadd.s32 %s429, %s430
      %s432 = smul.addr %s431, 4
      %s433 = scalar_lea.vmem %s0, %s432
      %s434 = smul.u32 8, %s26
      %s435 = smul.u32 2, %s26
      %p436 = scmp.lt.s32.totalorder %s25, 1
      %s437 = scalar_select %p436, %s25, 1
      %p438 = scmp.lt.s32.totalorder %s435, 3
      %s439 = scalar_select %p438, %s435, 3
      %s440 = smul.addr %s439, 2
      %s441 = smul.addr %s437, 8
      %s442 = sadd.s32 %s440, %s441
      %s443 = smul.addr %s442, 4
      %s444 = scalar_lea.vmem %s1, %s443
      %s445 = smul.u32 2, %s26
      %s446 = smul.u32 2, %s26
      %p447 = scmp.lt.s32.totalorder %s25, 1
      %s448 = scalar_select %p447, %s25, 1
      %p449 = scmp.lt.s32.totalorder %s446, 3
      %s450 = scalar_select %p449, %s446, 3
      %s451 = smul.addr %s450, 2
      %s452 = smul.addr %s448, 8
      %s453 = sadd.s32 %s451, %s452
      %s454 = smul.addr %s453, 4
      %s455 = scalar_lea.vmem %s2, %s454
      %s456 = smul.u32 2, %s26
      %s457 = smul.u32 8, %s26
      %p458 = scmp.lt.s32.totalorder %s25, 1
      %s459 = scalar_select %p458, %s25, 1
      %p460 = scmp.lt.s32.totalorder %s457, 15
      %s461 = scalar_select %p460, %s457, 15
      %s462 = smul.addr %s461, 2
      %s463 = smul.addr %s459, 32
      %s464 = sadd.s32 %s462, %s463
      %s465 = smul.addr %s464, 4
      %s466 = scalar_lea.vmem %s8, %s465
      %s467 = smul.u32 8, %s26
      %p468 = scmp.lt.s32.totalorder %s25, 1
      %s469 = scalar_select %p468, %s25, 1
      %p470 = scmp.lt.s32.totalorder %s26, 1
      %s471 = scalar_select %p470, %s26, 1
      %s472 = smul.addr %s469, 2
      %s473 = sadd.s32 %s471, %s472
      %s474 = smul.addr %s473, 2
      %s475 = scalar_lea.vmem %s9, %s474
      %v477 = vld [vmem:[%s3] sm:$0x1]
      %v478 = vld [vmem:[%s4] sm:$0x1]
      %p479 = scmp.gt.s32.totalorder %s26, 0
      %s480 = scalar_select %p479, 1, 0
      %s481 = scvt.s32.f32 %s480
      %p482 = scmp.lt.s32.totalorder %s26, 1
      %s483 = scalar_select %p482, 1, 0
      %s484 = scvt.s32.f32 %s483
      %v485 = vld [vmem:[%s444] sm:$0xf]
      %v486 = vld [vmem:[%s444 + $0x4] sm:$0xf]
      %v487 = vld [vmem:[%s444 + $0x8] sm:$0xf]
      %v488 = vld [vmem:[%s444 + $0xc] sm:$0xf]
      %v489 = vunpack.c.l.bf16 %v485
      %v490 = vunpack.c.l.bf16 %v486
      %v491 = vunpack.c.l.bf16 %v487
      %v492 = vunpack.c.l.bf16 %v488
      %v494 = vlaneseq
      %v495 = vshrl.u32 %v494, 7
      %v496 = vsub.s32 0, %v495
      %v497 = vrot.slane %v477, %v496
      %v499 = vmul.f32 %v489, %v497
      %v500 = vmul.f32 %v490, %v497
      %v501 = vmul.f32 %v491, %v497
      %v502 = vmul.f32 %v492, %v497
      %v504 = vlaneseq
      %v505 = vshrl.u32 %v504, 7
      %v506 = vsub.s32 0, %v505
      %v507 = vrot.slane %v478, %v506
      %v509 = vadd.f32 %v499, %v507
      %v510 = vadd.f32 %v500, %v507
      %v511 = vadd.f32 %v501, %v507
      %v512 = vadd.f32 %v502, %v507
      %v513 = vmax.f32 %v509, 0.0
      %v514 = vmax.f32 %v510, 0.0
      %v515 = vmax.f32 %v511, 0.0
      %v516 = vmax.f32 %v512, 0.0
      %v517 = vstv %s481
      %v518 = vmul.f32 %v513, %v517
      %v519 = vmul.f32 %v514, %v517
      %v520 = vmul.f32 %v515, %v517
      %v521 = vmul.f32 %v516, %v517
      %v522 = vpack.c.bf16 %v519, %v518
      %v523 = vpack.c.bf16 %v521, %v520
      %v524 = vld [vmem:[%s455] sm:$0xf]
      %v525 = vld [vmem:[%s455 + $0x4] sm:$0xf]
      %v526 = vld [vmem:[%s455 + $0x8] sm:$0xf]
      %v527 = vld [vmem:[%s455 + $0xc] sm:$0xf]
      %v528 = vunpack.c.l.bf16 %v524
      %v529 = vunpack.c.l.bf16 %v525
      %v530 = vunpack.c.l.bf16 %v526
      %v531 = vunpack.c.l.bf16 %v527
      %v532 = vmul.f32 %v528, %v497
      %v533 = vmul.f32 %v529, %v497
      %v534 = vmul.f32 %v530, %v497
      %v535 = vmul.f32 %v531, %v497
      %v536 = vadd.f32 %v532, %v507
      %v537 = vadd.f32 %v533, %v507
      %v538 = vadd.f32 %v534, %v507
      %v539 = vadd.f32 %v535, %v507
      %v540 = vmax.f32 %v536, 0.0
      %v541 = vmax.f32 %v537, 0.0
      %v542 = vmax.f32 %v538, 0.0
      %v543 = vmax.f32 %v539, 0.0
      %v544 = vstv %s484
      %v545 = vmul.f32 %v540, %v544
      %v546 = vmul.f32 %v541, %v544
      %v547 = vmul.f32 %v542, %v544
      %v548 = vmul.f32 %v543, %v544
      %v549 = vpack.c.bf16 %v546, %v545
      %v550 = vpack.c.bf16 %v548, %v547
      %v551 = vld [vmem:[%s433] sm:$0xf]
      %v552 = vld [vmem:[%s433 + $0x4] sm:$0xf]
      %v553 = vld [vmem:[%s433 + $0x8] sm:$0xf]
      %v554 = vld [vmem:[%s433 + $0xc] sm:$0xf]
      %v555 = vld [vmem:[%s433 + $0x10] sm:$0xf]
      %v556 = vld [vmem:[%s433 + $0x14] sm:$0xf]
      %v557 = vld [vmem:[%s433 + $0x18] sm:$0xf]
      %v558 = vld [vmem:[%s433 + $0x1c] sm:$0xf]
      %v559 = vld [vmem:[%s433 + $0x20] sm:$0xf]
      %v560 = vld [vmem:[%s433 + $0x24] sm:$0xf]
      %v561 = vld [vmem:[%s433 + $0x28] sm:$0xf]
      %v562 = vld [vmem:[%s433 + $0x2c] sm:$0xf]
      %v563 = vld [vmem:[%s433 + $0x30] sm:$0xf]
      %v564 = vld [vmem:[%s433 + $0x34] sm:$0xf]
      %v565 = vld [vmem:[%s433 + $0x38] sm:$0xf]
      %v566 = vld [vmem:[%s433 + $0x3c] sm:$0xf]
      %v567 = vunpack.c.l.bf16 %v551
      %v568 = vunpack.c.l.bf16 %v552
      %v569 = vunpack.c.l.bf16 %v553
      %v570 = vunpack.c.l.bf16 %v554
      %v571 = vunpack.c.l.bf16 %v555
      %v572 = vunpack.c.l.bf16 %v556
      %v573 = vunpack.c.l.bf16 %v557
      %v574 = vunpack.c.l.bf16 %v558
      %v575 = vunpack.c.l.bf16 %v559
      %v576 = vunpack.c.l.bf16 %v560
      %v577 = vunpack.c.l.bf16 %v561
      %v578 = vunpack.c.l.bf16 %v562
      %v579 = vunpack.c.l.bf16 %v563
      %v580 = vunpack.c.l.bf16 %v564
      %v581 = vunpack.c.l.bf16 %v565
      %v582 = vunpack.c.l.bf16 %v566
      %v583 = vmul.f32 %v567, %v497
      %v584 = vmul.f32 %v568, %v497
      %v585 = vmul.f32 %v569, %v497
      %v586 = vmul.f32 %v570, %v497
      %v587 = vmul.f32 %v571, %v497
      %v588 = vmul.f32 %v572, %v497
      %v589 = vmul.f32 %v573, %v497
      %v590 = vmul.f32 %v574, %v497
      %v591 = vmul.f32 %v575, %v497
      %v592 = vmul.f32 %v576, %v497
      %v593 = vmul.f32 %v577, %v497
      %v594 = vmul.f32 %v578, %v497
      %v595 = vmul.f32 %v579, %v497
      %v596 = vmul.f32 %v580, %v497
      %v597 = vmul.f32 %v581, %v497
      %v598 = vmul.f32 %v582, %v497
      %v599 = vadd.f32 %v583, %v507
      %v600 = vadd.f32 %v584, %v507
      %v601 = vadd.f32 %v585, %v507
      %v602 = vadd.f32 %v586, %v507
      %v603 = vadd.f32 %v587, %v507
      %v604 = vadd.f32 %v588, %v507
      %v605 = vadd.f32 %v589, %v507
      %v606 = vadd.f32 %v590, %v507
      %v607 = vadd.f32 %v591, %v507
      %v608 = vadd.f32 %v592, %v507
      %v609 = vadd.f32 %v593, %v507
      %v610 = vadd.f32 %v594, %v507
      %v611 = vadd.f32 %v595, %v507
      %v612 = vadd.f32 %v596, %v507
      %v613 = vadd.f32 %v597, %v507
      %v614 = vadd.f32 %v598, %v507
      %v615 = vmax.f32 %v599, 0.0
      %v616 = vmax.f32 %v600, 0.0
      %v617 = vmax.f32 %v601, 0.0
      %v618 = vmax.f32 %v602, 0.0
      %v619 = vmax.f32 %v603, 0.0
      %v620 = vmax.f32 %v604, 0.0
      %v621 = vmax.f32 %v605, 0.0
      %v622 = vmax.f32 %v606, 0.0
      %v623 = vmax.f32 %v607, 0.0
      %v624 = vmax.f32 %v608, 0.0
      %v625 = vmax.f32 %v609, 0.0
      %v626 = vmax.f32 %v610, 0.0
      %v627 = vmax.f32 %v611, 0.0
      %v628 = vmax.f32 %v612, 0.0
      %v629 = vmax.f32 %v613, 0.0
      %v630 = vmax.f32 %v614, 0.0
      %v631 = vpack.c.bf16 %v616, %v615
      %v632 = vpack.c.bf16 %v618, %v617
      %v633 = vpack.c.bf16 %v620, %v619
      %v634 = vpack.c.bf16 %v622, %v621
      %v635 = vpack.c.bf16 %v624, %v623
      %v636 = vpack.c.bf16 %v626, %v625
      %v637 = vpack.c.bf16 %v628, %v627
      %v638 = vpack.c.bf16 %v630, %v629
      %v639 = vld [vmem:[%s5] sm:$0xf]
      %v640 = vld [vmem:[%s5 + $0x4] sm:$0xf]
      %v641 = vld [vmem:[%s5 + $0x8] sm:$0xf]
      %v642 = vld [vmem:[%s5 + $0xc] sm:$0xf]
      %v643 = vld [vmem:[%s5 + $0x10] sm:$0xf]
      %v644 = vld [vmem:[%s5 + $0x14] sm:$0xf]
      %v645 = vld [vmem:[%s5 + $0x18] sm:$0xf]
      %v646 = vld [vmem:[%s5 + $0x1c] sm:$0xf]
      %v647 = vld [vmem:[%s5 + $0x20] sm:$0xf]
      %v648 = vld [vmem:[%s5 + $0x24] sm:$0xf]
      %v649 = vld [vmem:[%s5 + $0x28] sm:$0xf]
      %v650 = vld [vmem:[%s5 + $0x2c] sm:$0xf]
      %v651 = vld [vmem:[%s5 + $0x30] sm:$0xf]
      %v652 = vld [vmem:[%s5 + $0x34] sm:$0xf]
      %v653 = vld [vmem:[%s5 + $0x38] sm:$0xf]
      %v654 = vld [vmem:[%s5 + $0x3c] sm:$0xf]
      %v655 = vld [vmem:[%s5 + $0x40] sm:$0xf]
      %v656 = vld [vmem:[%s5 + $0x44] sm:$0xf]
      %v657 = vld [vmem:[%s5 + $0x48] sm:$0xf]
      %v658 = vld [vmem:[%s5 + $0x4c] sm:$0xf]
      %v659 = vld [vmem:[%s5 + $0x50] sm:$0xf]
      %v660 = vld [vmem:[%s5 + $0x54] sm:$0xf]
      %v661 = vld [vmem:[%s5 + $0x58] sm:$0xf]
      %v662 = vld [vmem:[%s5 + $0x5c] sm:$0xf]
      %v663 = vld [vmem:[%s5 + $0x60] sm:$0xf]
      %v664 = vld [vmem:[%s5 + $0x64] sm:$0xf]
      %v665 = vld [vmem:[%s5 + $0x68] sm:$0xf]
      %v666 = vld [vmem:[%s5 + $0x6c] sm:$0xf]
      %v667 = vld [vmem:[%s5 + $0x70] sm:$0xf]
      %v668 = vld [vmem:[%s5 + $0x74] sm:$0xf]
      %v669 = vld [vmem:[%s5 + $0x78] sm:$0xf]
      %v670 = vld [vmem:[%s5 + $0x7c] sm:$0xf]
      %v671 = vld [vmem:[%s5 + $0x80] sm:$0xf]
      %v672 = vld [vmem:[%s5 + $0x84] sm:$0xf]
      %v673 = vld [vmem:[%s5 + $0x88] sm:$0xf]
      %v674 = vld [vmem:[%s5 + $0x8c] sm:$0xf]
      %v675 = vld [vmem:[%s5 + $0x90] sm:$0xf]
      %v676 = vld [vmem:[%s5 + $0x94] sm:$0xf]
      %v677 = vld [vmem:[%s5 + $0x98] sm:$0xf]
      %v678 = vld [vmem:[%s5 + $0x9c] sm:$0xf]
      %v679 = vld [vmem:[%s5 + $0xa0] sm:$0xf]
      %v680 = vld [vmem:[%s5 + $0xa4] sm:$0xf]
      %v681 = vld [vmem:[%s5 + $0xa8] sm:$0xf]
      %v682 = vld [vmem:[%s5 + $0xac] sm:$0xf]
      %v683 = vld [vmem:[%s5 + $0xb0] sm:$0xf]
      %v684 = vld [vmem:[%s5 + $0xb4] sm:$0xf]
      %v685 = vld [vmem:[%s5 + $0xb8] sm:$0xf]
      %v686 = vld [vmem:[%s5 + $0xbc] sm:$0xf]
      %v703 = vunpack.c.l.b16 %v655
      %v704 = vunpack.c.l.b16 %v656
      %v705 = vunpack.c.l.b16 %v657
      %v706 = vunpack.c.l.b16 %v658
      %v707 = vunpack.c.l.b16 %v659
      %v708 = vunpack.c.l.b16 %v660
      %v709 = vunpack.c.l.b16 %v661
      %v710 = vunpack.c.l.b16 %v662
      %v711 = vunpack.c.l.b16 %v663
      %v712 = vunpack.c.l.b16 %v664
      %v713 = vunpack.c.l.b16 %v665
      %v714 = vunpack.c.l.b16 %v666
      %v715 = vunpack.c.l.b16 %v667
      %v716 = vunpack.c.l.b16 %v668
      %v717 = vunpack.c.l.b16 %v669
      %v718 = vunpack.c.l.b16 %v670
      %v719 = vpack.c.b16 %v704, %v703
      %v720 = vpack.c.b16 %v706, %v705
      %v721 = vpack.c.b16 %v708, %v707
      %v722 = vpack.c.b16 %v710, %v709
      %v723 = vpack.c.b16 %v712, %v711
      %v724 = vpack.c.b16 %v714, %v713
      %v725 = vpack.c.b16 %v716, %v715
      %v726 = vpack.c.b16 %v718, %v717
      %735 = vmatprep.subr.bf16.mxu0 0
      %736 = vmatpush1.bf16.msra.mxu0 %v719
      %737 = vmatprep.subr.bf16.mxu0 0
      %738 = vmatpush1.bf16.msra.mxu0 %v720
      %739 = vmatprep.subr.bf16.mxu0 0
      %740 = vmatpush1.bf16.msra.mxu0 %v721
      %741 = vmatprep.subr.bf16.mxu0 0
      %742 = vmatpush1.bf16.msra.mxu0 %v722
      %743 = vmatprep.subr.bf16.mxu0 0
      %744 = vmatpush1.bf16.msra.mxu0 %v723
      %745 = vmatprep.subr.bf16.mxu0 0
      %746 = vmatpush1.bf16.msra.mxu0 %v724
      %747 = vmatprep.subr.bf16.mxu0 0
      %748 = vmatpush1.bf16.msra.mxu0 %v725
      %749 = vmatprep.subr.bf16.mxu0 0
      %750 = vmatpush1.bf16.msra.mxu0 %v726
      %751 = vmatprep.subr.bf16.mxu0 0
      %752 = vmatpush1.bf16.msra.mxu0 0
      %753 = vmatprep.subr.bf16.mxu0 0
      %754 = vmatpush1.bf16.msra.mxu0 0
      %755 = vmatprep.subr.bf16.mxu0 0
      %756 = vmatpush1.bf16.msra.mxu0 0
      %757 = vmatprep.subr.bf16.mxu0 0
      %758 = vmatpush1.bf16.msra.mxu0 0
      %759 = vmatprep.subr.bf16.mxu0 0
      %760 = vmatpush1.bf16.msra.mxu0 0
      %761 = vmatprep.subr.bf16.mxu0 0
      %762 = vmatpush1.bf16.msra.mxu0 0
      %763 = vmatprep.subr.bf16.mxu0 0
      %764 = vmatpush1.bf16.msra.mxu0 0
      %765 = vmatprep.subr.bf16.mxu0 0
      %766 = vmatpush1.bf16.msra.mxu0 0
      %767 = vmatprep.mubr.bf16.mxu0 0
      %768 = vmatmul.mubr.bf16.gmra.mrb[0].mxu0 %v631
      %v769 = vpop.f32.mrb[0].mxu0
      %v770 = vadd.f32 0.0, %v769
      %v771 = vpop.f32.mrb[0].mxu0
      %v772 = vpop.f32.mrb[0].mxu0
      %v773 = vadd.f32 0.0, %v772
      %v774 = vpop.f32.mrb[0].mxu0
      %775 = vmatprep.mubr.bf16.mxu0 0
      %776 = vmatmul.mubr.bf16.gmra.mrb[0].mxu0 %v632
      %v777 = vpop.f32.mrb[0].mxu0
      %v778 = vadd.f32 0.0, %v777
      %v779 = vpop.f32.mrb[0].mxu0
      %v780 = vpop.f32.mrb[0].mxu0
      %v781 = vadd.f32 0.0, %v780
      %v782 = vpop.f32.mrb[0].mxu0
      %783 = vmatprep.mubr.bf16.mxu0 0
      %784 = vmatmul.mubr.bf16.gmra.mrb[0].mxu0 %v633
      %v785 = vpop.f32.mrb[0].mxu0
      %v786 = vadd.f32 0.0, %v785
      %v787 = vpop.f32.mrb[0].mxu0
      %v788 = vpop.f32.mrb[0].mxu0
      %v789 = vadd.f32 0.0, %v788
      %v790 = vpop.f32.mrb[0].mxu0
      %791 = vmatprep.mubr.bf16.mxu0 0
      %792 = vmatmul.mubr.bf16.gmra.mrb[0].mxu0 %v634
      %v793 = vpop.f32.mrb[0].mxu0
      %v794 = vadd.f32 0.0, %v793
      %v795 = vpop.f32.mrb[0].mxu0
      %v796 = vpop.f32.mrb[0].mxu0
      %v797 = vadd.f32 0.0, %v796
      %v798 = vpop.f32.mrb[0].mxu0
      %799 = vmatprep.mubr.bf16.mxu0 0
      %800 = vmatmul.mubr.bf16.gmra.mrb[0].mxu0 %v635
      %v801 = vpop.f32.mrb[0].mxu0
      %v802 = vadd.f32 0.0, %v801
      %v803 = vpop.f32.mrb[0].mxu0
      %v804 = vpop.f32.mrb[0].mxu0
      %v805 = vadd.f32 0.0, %v804
      %v806 = vpop.f32.mrb[0].mxu0
      %807 = vmatprep.mubr.bf16.mxu0 0
      %808 = vmatmul.mubr.bf16.gmra.mrb[0].mxu0 %v636
      %v809 = vpop.f32.mrb[0].mxu0
      %v810 = vadd.f32 0.0, %v809
      %v811 = vpop.f32.mrb[0].mxu0
      %v812 = vpop.f32.mrb[0].mxu0
      %v813 = vadd.f32 0.0, %v812
      %v814 = vpop.f32.mrb[0].mxu0
      %815 = vmatprep.mubr.bf16.mxu0 0
      %816 = vmatmul.mubr.bf16.gmra.mrb[0].mxu0 %v637
      %v817 = vpop.f32.mrb[0].mxu0
      %v818 = vadd.f32 0.0, %v817
      %v819 = vpop.f32.mrb[0].mxu0
      %v820 = vpop.f32.mrb[0].mxu0
      %v821 = vadd.f32 0.0, %v820
      %v822 = vpop.f32.mrb[0].mxu0
      %823 = vmatprep.mubr.bf16.mxu0 0
      %824 = vmatmul.mubr.bf16.gmra.mrb[0].mxu0 %v638
      %v825 = vpop.f32.mrb[0].mxu0
      %v826 = vadd.f32 0.0, %v825
      %v827 = vpop.f32.mrb[0].mxu0
      %v828 = vpop.f32.mrb[0].mxu0
      %v829 = vadd.f32 0.0, %v828
      %v830 = vpop.f32.mrb[0].mxu0
      %831 = vdwg.mxu0
      %v848 = vunpack.c.l.b16 %v639
      %v849 = vunpack.c.l.b16 %v640
      %v850 = vunpack.c.l.b16 %v641
      %v851 = vunpack.c.l.b16 %v642
      %v852 = vunpack.c.l.b16 %v643
      %v853 = vunpack.c.l.b16 %v644
      %v854 = vunpack.c.l.b16 %v645
      %v855 = vunpack.c.l.b16 %v646
      %v856 = vunpack.c.l.b16 %v647
      %v857 = vunpack.c.l.b16 %v648
      %v858 = vunpack.c.l.b16 %v649
      %v859 = vunpack.c.l.b16 %v650
      %v860 = vunpack.c.l.b16 %v651
      %v861 = vunpack.c.l.b16 %v652
      %v862 = vunpack.c.l.b16 %v653
      %v863 = vunpack.c.l.b16 %v654
      %v864 = vpack.c.b16 %v849, %v848
      %v865 = vpack.c.b16 %v851, %v850
      %v866 = vpack.c.b16 %v853, %v852
      %v867 = vpack.c.b16 %v855, %v854
      %v868 = vpack.c.b16 %v857, %v856
      %v869 = vpack.c.b16 %v859, %v858
      %v870 = vpack.c.b16 %v861, %v860
      %v871 = vpack.c.b16 %v863, %v862
      %880 = vmatprep.subr.bf16.mxu0 0
      %881 = vmatpush1.bf16.msra.mxu0 %v864
      %882 = vmatprep.subr.bf16.mxu0 0
      %883 = vmatpush1.bf16.msra.mxu0 %v865
      %884 = vmatprep.subr.bf16.mxu0 0
      %885 = vmatpush1.bf16.msra.mxu0 %v866
      %886 = vmatprep.subr.bf16.mxu0 0
      %887 = vmatpush1.bf16.msra.mxu0 %v867
      %888 = vmatprep.subr.bf16.mxu0 0
      %889 = vmatpush1.bf16.msra.mxu0 %v868
      %890 = vmatprep.subr.bf16.mxu0 0
      %891 = vmatpush1.bf16.msra.mxu0 %v869
      %892 = vmatprep.subr.bf16.mxu0 0
      %893 = vmatpush1.bf16.msra.mxu0 %v870
      %894 = vmatprep.subr.bf16.mxu0 0
      %895 = vmatpush1.bf16.msra.mxu0 %v871
      %896 = vmatprep.subr.bf16.mxu0 0
      %897 = vmatpush1.bf16.msra.mxu0 0
      %898 = vmatprep.subr.bf16.mxu0 0
      %899 = vmatpush1.bf16.msra.mxu0 0
      %900 = vmatprep.subr.bf16.mxu0 0
      %901 = vmatpush1.bf16.msra.mxu0 0
      %902 = vmatprep.subr.bf16.mxu0 0
      %903 = vmatpush1.bf16.msra.mxu0 0
      %904 = vmatprep.subr.bf16.mxu0 0
      %905 = vmatpush1.bf16.msra.mxu0 0
      %906 = vmatprep.subr.bf16.mxu0 0
      %907 = vmatpush1.bf16.msra.mxu0 0
      %908 = vmatprep.subr.bf16.mxu0 0
      %909 = vmatpush1.bf16.msra.mxu0 0
      %910 = vmatprep.subr.bf16.mxu0 0
      %911 = vmatpush1.bf16.msra.mxu0 0
      %912 = vmatprep.mubr.bf16.mxu0 0
      %913 = vmatmul.mubr.bf16.gmra.mrb[0].mxu0 %v522
      %v914 = vpop.f32.mrb[0].mxu0
      %v915 = vadd.f32 %v770, %v914
      %v916 = vpop.f32.mrb[0].mxu0
      %v917 = vpop.f32.mrb[0].mxu0
      %v918 = vadd.f32 %v773, %v917
      %v919 = vpop.f32.mrb[0].mxu0
      %920 = vmatprep.mubr.bf16.mxu0 0
      %921 = vmatmul.mubr.bf16.gmra.mrb[0].mxu0 %v523
      %v922 = vpop.f32.mrb[0].mxu0
      %v923 = vadd.f32 %v778, %v922
      %v924 = vpop.f32.mrb[0].mxu0
      %v925 = vpop.f32.mrb[0].mxu0
      %v926 = vadd.f32 %v781, %v925
      %v927 = vpop.f32.mrb[0].mxu0
      %928 = vmatprep.mubr.bf16.mxu0 0
      %929 = vmatmul.mubr.bf16.gmra.mrb[0].mxu0 %v631
      %v930 = vpop.f32.mrb[0].mxu0
      %v931 = vadd.f32 %v786, %v930
      %v932 = vpop.f32.mrb[0].mxu0
      %v933 = vpop.f32.mrb[0].mxu0
      %v934 = vadd.f32 %v789, %v933
      %v935 = vpop.f32.mrb[0].mxu0
      %936 = vmatprep.mubr.bf16.mxu0 0
      %937 = vmatmul.mubr.bf16.gmra.mrb[0].mxu0 %v632
      %v938 = vpop.f32.mrb[0].mxu0
      %v939 = vadd.f32 %v794, %v938
      %v940 = vpop.f32.mrb[0].mxu0
      %v941 = vpop.f32.mrb[0].mxu0
      %v942 = vadd.f32 %v797, %v941
      %v943 = vpop.f32.mrb[0].mxu0
      %944 = vmatprep.mubr.bf16.mxu0 0
      %945 = vmatmul.mubr.bf16.gmra.mrb[0].mxu0 %v633
      %v946 = vpop.f32.mrb[0].mxu0
      %v947 = vadd.f32 %v802, %v946
      %v948 = vpop.f32.mrb[0].mxu0
      %v949 = vpop.f32.mrb[0].mxu0
      %v950 = vadd.f32 %v805, %v949
      %v951 = vpop.f32.mrb[0].mxu0
      %952 = vmatprep.mubr.bf16.mxu0 0
      %953 = vmatmul.mubr.bf16.gmra.mrb[0].mxu0 %v634
      %v954 = vpop.f32.mrb[0].mxu0
      %v955 = vadd.f32 %v810, %v954
      %v956 = vpop.f32.mrb[0].mxu0
      %v957 = vpop.f32.mrb[0].mxu0
      %v958 = vadd.f32 %v813, %v957
      %v959 = vpop.f32.mrb[0].mxu0
      %960 = vmatprep.mubr.bf16.mxu0 0
      %961 = vmatmul.mubr.bf16.gmra.mrb[0].mxu0 %v635
      %v962 = vpop.f32.mrb[0].mxu0
      %v963 = vadd.f32 %v818, %v962
      %v964 = vpop.f32.mrb[0].mxu0
      %v965 = vpop.f32.mrb[0].mxu0
      %v966 = vadd.f32 %v821, %v965
      %v967 = vpop.f32.mrb[0].mxu0
      %968 = vmatprep.mubr.bf16.mxu0 0
      %969 = vmatmul.mubr.bf16.gmra.mrb[0].mxu0 %v636
      %v970 = vpop.f32.mrb[0].mxu0
      %v971 = vadd.f32 %v826, %v970
      %v972 = vpop.f32.mrb[0].mxu0
      %v973 = vpop.f32.mrb[0].mxu0
      %v974 = vadd.f32 %v829, %v973
      %v975 = vpop.f32.mrb[0].mxu0
      %976 = vdwg.mxu0
      %v993 = vunpack.c.l.b16 %v671
      %v994 = vunpack.c.l.b16 %v672
      %v995 = vunpack.c.l.b16 %v673
      %v996 = vunpack.c.l.b16 %v674
      %v997 = vunpack.c.l.b16 %v675
      %v998 = vunpack.c.l.b16 %v676
      %v999 = vunpack.c.l.b16 %v677
      %v1000 = vunpack.c.l.b16 %v678
      %v1001 = vunpack.c.l.b16 %v679
      %v1002 = vunpack.c.l.b16 %v680
      %v1003 = vunpack.c.l.b16 %v681
      %v1004 = vunpack.c.l.b16 %v682
      %v1005 = vunpack.c.l.b16 %v683
      %v1006 = vunpack.c.l.b16 %v684
      %v1007 = vunpack.c.l.b16 %v685
      %v1008 = vunpack.c.l.b16 %v686
      %v1009 = vpack.c.b16 %v994, %v993
      %v1010 = vpack.c.b16 %v996, %v995
      %v1011 = vpack.c.b16 %v998, %v997
      %v1012 = vpack.c.b16 %v1000, %v999
      %v1013 = vpack.c.b16 %v1002, %v1001
      %v1014 = vpack.c.b16 %v1004, %v1003
      %v1015 = vpack.c.b16 %v1006, %v1005
      %v1016 = vpack.c.b16 %v1008, %v1007
      %1025 = vmatprep.subr.bf16.mxu0 0
      %1026 = vmatpush1.bf16.msra.mxu0 %v1009
      %1027 = vmatprep.subr.bf16.mxu0 0
      %1028 = vmatpush1.bf16.msra.mxu0 %v1010
      %1029 = vmatprep.subr.bf16.mxu0 0
      %1030 = vmatpush1.bf16.msra.mxu0 %v1011
      %1031 = vmatprep.subr.bf16.mxu0 0
      %1032 = vmatpush1.bf16.msra.mxu0 %v1012
      %1033 = vmatprep.subr.bf16.mxu0 0
      %1034 = vmatpush1.bf16.msra.mxu0 %v1013
      %1035 = vmatprep.subr.bf16.mxu0 0
      %1036 = vmatpush1.bf16.msra.mxu0 %v1014
      %1037 = vmatprep.subr.bf16.mxu0 0
      %1038 = vmatpush1.bf16.msra.mxu0 %v1015
      %1039 = vmatprep.subr.bf16.mxu0 0
      %1040 = vmatpush1.bf16.msra.mxu0 %v1016
      %1041 = vmatprep.subr.bf16.mxu0 0
      %1042 = vmatpush1.bf16.msra.mxu0 0
      %1043 = vmatprep.subr.bf16.mxu0 0
      %1044 = vmatpush1.bf16.msra.mxu0 0
      %1045 = vmatprep.subr.bf16.mxu0 0
      %1046 = vmatpush1.bf16.msra.mxu0 0
      %1047 = vmatprep.subr.bf16.mxu0 0
      %1048 = vmatpush1.bf16.msra.mxu0 0
      %1049 = vmatprep.subr.bf16.mxu0 0
      %1050 = vmatpush1.bf16.msra.mxu0 0
      %1051 = vmatprep.subr.bf16.mxu0 0
      %1052 = vmatpush1.bf16.msra.mxu0 0
      %1053 = vmatprep.subr.bf16.mxu0 0
      %1054 = vmatpush1.bf16.msra.mxu0 0
      %1055 = vmatprep.subr.bf16.mxu0 0
      %1056 = vmatpush1.bf16.msra.mxu0 0
      %1057 = vmatprep.mubr.bf16.mxu0 0
      %1058 = vmatmul.mubr.bf16.gmra.mrb[0].mxu0 %v633
      %v1059 = vpop.f32.mrb[0].mxu0
      %v1060 = vadd.f32 0.0, %v1059
      %v1061 = vpop.f32.mrb[0].mxu0
      %v1062 = vpop.f32.mrb[0].mxu0
      %v1063 = vadd.f32 0.0, %v1062
      %v1064 = vpop.f32.mrb[0].mxu0
      %1065 = vmatprep.mubr.bf16.mxu0 0
      %1066 = vmatmul.mubr.bf16.gmra.mrb[0].mxu0 %v634
      %v1067 = vpop.f32.mrb[0].mxu0
      %v1068 = vadd.f32 0.0, %v1067
      %v1069 = vpop.f32.mrb[0].mxu0
      %v1070 = vpop.f32.mrb[0].mxu0
      %v1071 = vadd.f32 0.0, %v1070
      %v1072 = vpop.f32.mrb[0].mxu0
      %1073 = vmatprep.mubr.bf16.mxu0 0
      %1074 = vmatmul.mubr.bf16.gmra.mrb[0].mxu0 %v635
      %v1075 = vpop.f32.mrb[0].mxu0
      %v1076 = vadd.f32 0.0, %v1075
      %v1077 = vpop.f32.mrb[0].mxu0
      %v1078 = vpop.f32.mrb[0].mxu0
      %v1079 = vadd.f32 0.0, %v1078
      %v1080 = vpop.f32.mrb[0].mxu0
      %1081 = vmatprep.mubr.bf16.mxu0 0
      %1082 = vmatmul.mubr.bf16.gmra.mrb[0].mxu0 %v636
      %v1083 = vpop.f32.mrb[0].mxu0
      %v1084 = vadd.f32 0.0, %v1083
      %v1085 = vpop.f32.mrb[0].mxu0
      %v1086 = vpop.f32.mrb[0].mxu0
      %v1087 = vadd.f32 0.0, %v1086
      %v1088 = vpop.f32.mrb[0].mxu0
      %1089 = vmatprep.mubr.bf16.mxu0 0
      %1090 = vmatmul.mubr.bf16.gmra.mrb[0].mxu0 %v637
      %v1091 = vpop.f32.mrb[0].mxu0
      %v1092 = vadd.f32 0.0, %v1091
      %v1093 = vpop.f32.mrb[0].mxu0
      %v1094 = vpop.f32.mrb[0].mxu0
      %v1095 = vadd.f32 0.0, %v1094
      %v1096 = vpop.f32.mrb[0].mxu0
      %1097 = vmatprep.mubr.bf16.mxu0 0
      %1098 = vmatmul.mubr.bf16.gmra.mrb[0].mxu0 %v638
      %v1099 = vpop.f32.mrb[0].mxu0
      %v1100 = vadd.f32 0.0, %v1099
      %v1101 = vpop.f32.mrb[0].mxu0
      %v1102 = vpop.f32.mrb[0].mxu0
      %v1103 = vadd.f32 0.0, %v1102
      %v1104 = vpop.f32.mrb[0].mxu0
      %1105 = vmatprep.mubr.bf16.mxu0 0
      %1106 = vmatmul.mubr.bf16.gmra.mrb[0].mxu0 %v549
      %v1107 = vpop.f32.mrb[0].mxu0
      %v1108 = vadd.f32 0.0, %v1107
      %v1109 = vpop.f32.mrb[0].mxu0
      %v1110 = vpop.f32.mrb[0].mxu0
      %v1111 = vadd.f32 0.0, %v1110
      %v1112 = vpop.f32.mrb[0].mxu0
      %1113 = vmatprep.mubr.bf16.mxu0 0
      %1114 = vmatmul.mubr.bf16.gmra.mrb[0].mxu0 %v550
      %v1115 = vpop.f32.mrb[0].mxu0
      %v1116 = vadd.f32 0.0, %v1115
      %v1117 = vpop.f32.mrb[0].mxu0
      %v1118 = vpop.f32.mrb[0].mxu0
      %v1119 = vadd.f32 0.0, %v1118
      %v1120 = vpop.f32.mrb[0].mxu0
      %1121 = vdwg.mxu0
      %v1122 = vadd.f32 %v915, %v1060
      %v1123 = vadd.f32 %v918, %v1063
      %v1124 = vadd.f32 %v923, %v1068
      %v1125 = vadd.f32 %v926, %v1071
      %v1126 = vadd.f32 %v931, %v1076
      %v1127 = vadd.f32 %v934, %v1079
      %v1128 = vadd.f32 %v939, %v1084
      %v1129 = vadd.f32 %v942, %v1087
      %v1130 = vadd.f32 %v947, %v1092
      %v1131 = vadd.f32 %v950, %v1095
      %v1132 = vadd.f32 %v955, %v1100
      %v1133 = vadd.f32 %v958, %v1103
      %v1134 = vadd.f32 %v963, %v1108
      %v1135 = vadd.f32 %v966, %v1111
      %v1136 = vadd.f32 %v971, %v1116
      %v1137 = vadd.f32 %v974, %v1119
      %v1138 = vld [vmem:[%s6] sm:$0x1]
      %v1140 = vlaneseq
      %v1141 = vshrl.u32 %v1140, 7
      %v1142 = vsub.s32 0, %v1141
      %v1143 = vrot.slane %v1138, %v1142
      %v1145 = vadd.f32 %v1122, %v1143
      %v1146 = vadd.f32 %v1123, %v1143
      %v1147 = vadd.f32 %v1124, %v1143
      %v1148 = vadd.f32 %v1125, %v1143
      %v1149 = vadd.f32 %v1126, %v1143
      %v1150 = vadd.f32 %v1127, %v1143
      %v1151 = vadd.f32 %v1128, %v1143
      %v1152 = vadd.f32 %v1129, %v1143
      %v1153 = vadd.f32 %v1130, %v1143
      %v1154 = vadd.f32 %v1131, %v1143
      %v1155 = vadd.f32 %v1132, %v1143
      %v1156 = vadd.f32 %v1133, %v1143
      %v1157 = vadd.f32 %v1134, %v1143
      %v1158 = vadd.f32 %v1135, %v1143
      %v1159 = vadd.f32 %v1136, %v1143
      %v1160 = vadd.f32 %v1137, %v1143
      %v1161 = vmax.f32 %v1145, 0.0
      %v1162 = vmax.f32 %v1146, 0.0
      %v1163 = vmax.f32 %v1147, 0.0
      %v1164 = vmax.f32 %v1148, 0.0
      %v1165 = vmax.f32 %v1149, 0.0
      %v1166 = vmax.f32 %v1150, 0.0
      %v1167 = vmax.f32 %v1151, 0.0
      %v1168 = vmax.f32 %v1152, 0.0
      %v1169 = vmax.f32 %v1153, 0.0
      %v1170 = vmax.f32 %v1154, 0.0
      %v1171 = vmax.f32 %v1155, 0.0
      %v1172 = vmax.f32 %v1156, 0.0
      %v1173 = vmax.f32 %v1157, 0.0
      %v1174 = vmax.f32 %v1158, 0.0
      %v1175 = vmax.f32 %v1159, 0.0
      %v1176 = vmax.f32 %v1160, 0.0
      %v1177 = vld [vmem:[%s7] sm:$0xf]
      %v1178 = vld [vmem:[%s7 + $0x4] sm:$0xf]
      %v1179 = vld [vmem:[%s7 + $0x8] sm:$0xf]
      %v1180 = vld [vmem:[%s7 + $0xc] sm:$0xf]
      %v1181 = vld [vmem:[%s7 + $0x10] sm:$0xf]
      %v1182 = vld [vmem:[%s7 + $0x14] sm:$0xf]
      %v1183 = vld [vmem:[%s7 + $0x18] sm:$0xf]
      %v1184 = vld [vmem:[%s7 + $0x1c] sm:$0xf]
      %v1185 = vld [vmem:[%s7 + $0x20] sm:$0xf]
      %v1186 = vld [vmem:[%s7 + $0x24] sm:$0xf]
      %v1187 = vld [vmem:[%s7 + $0x28] sm:$0xf]
      %v1188 = vld [vmem:[%s7 + $0x2c] sm:$0xf]
      %v1189 = vld [vmem:[%s7 + $0x30] sm:$0xf]
      %v1190 = vld [vmem:[%s7 + $0x34] sm:$0xf]
      %v1191 = vld [vmem:[%s7 + $0x38] sm:$0xf]
      %v1192 = vld [vmem:[%s7 + $0x3c] sm:$0xf]
      %v1193 = vld [vmem:[%s7 + $0x40] sm:$0xf]
      %v1194 = vld [vmem:[%s7 + $0x44] sm:$0xf]
      %v1195 = vld [vmem:[%s7 + $0x48] sm:$0xf]
      %v1196 = vld [vmem:[%s7 + $0x4c] sm:$0xf]
      %v1197 = vld [vmem:[%s7 + $0x50] sm:$0xf]
      %v1198 = vld [vmem:[%s7 + $0x54] sm:$0xf]
      %v1199 = vld [vmem:[%s7 + $0x58] sm:$0xf]
      %v1200 = vld [vmem:[%s7 + $0x5c] sm:$0xf]
      %v1201 = vld [vmem:[%s7 + $0x60] sm:$0xf]
      %v1202 = vld [vmem:[%s7 + $0x64] sm:$0xf]
      %v1203 = vld [vmem:[%s7 + $0x68] sm:$0xf]
      %v1204 = vld [vmem:[%s7 + $0x6c] sm:$0xf]
      %v1205 = vld [vmem:[%s7 + $0x70] sm:$0xf]
      %v1206 = vld [vmem:[%s7 + $0x74] sm:$0xf]
      %v1207 = vld [vmem:[%s7 + $0x78] sm:$0xf]
      %v1208 = vld [vmem:[%s7 + $0x7c] sm:$0xf]
      %v1209 = vld [vmem:[%s7 + $0x80] sm:$0xf]
      %v1210 = vld [vmem:[%s7 + $0x84] sm:$0xf]
      %v1211 = vld [vmem:[%s7 + $0x88] sm:$0xf]
      %v1212 = vld [vmem:[%s7 + $0x8c] sm:$0xf]
      %v1213 = vld [vmem:[%s7 + $0x90] sm:$0xf]
      %v1214 = vld [vmem:[%s7 + $0x94] sm:$0xf]
      %v1215 = vld [vmem:[%s7 + $0x98] sm:$0xf]
      %v1216 = vld [vmem:[%s7 + $0x9c] sm:$0xf]
      %v1217 = vld [vmem:[%s7 + $0xa0] sm:$0xf]
      %v1218 = vld [vmem:[%s7 + $0xa4] sm:$0xf]
      %v1219 = vld [vmem:[%s7 + $0xa8] sm:$0xf]
      %v1220 = vld [vmem:[%s7 + $0xac] sm:$0xf]
      %v1221 = vld [vmem:[%s7 + $0xb0] sm:$0xf]
      %v1222 = vld [vmem:[%s7 + $0xb4] sm:$0xf]
      %v1223 = vld [vmem:[%s7 + $0xb8] sm:$0xf]
      %v1224 = vld [vmem:[%s7 + $0xbc] sm:$0xf]
      %v1225 = vpack.c.bf16 %v1162, %v1161
      %v1226 = vpack.c.bf16 %v1164, %v1163
      %v1227 = vpack.c.bf16 %v1166, %v1165
      %v1228 = vpack.c.bf16 %v1168, %v1167
      %v1229 = vpack.c.bf16 %v1170, %v1169
      %v1230 = vpack.c.bf16 %v1172, %v1171
      %v1231 = vpack.c.bf16 %v1174, %v1173
      %v1232 = vpack.c.bf16 %v1176, %v1175
      %v1241 = vrot.slane %v1225, 7
      %v1242 = vrot.slane %v1226, 7
      %v1243 = vrot.slane %v1227, 7
      %v1244 = vrot.slane %v1228, 7
      %v1245 = vrot.slane %v1229, 7
      %v1246 = vrot.slane %v1230, 7
      %v1247 = vrot.slane %v1231, 7
      %v1248 = vrot.slane %v1232, 7
      %vm1249 = vcmask 1040384
      %v1252 = vsel %vm1249, 0, %v1241
      %v1255 = vsel %vm1249, 0, %v1242
      %v1258 = vsel %vm1249, 0, %v1243
      %v1261 = vsel %vm1249, 0, %v1244
      %v1264 = vsel %vm1249, 0, %v1245
      %v1267 = vsel %vm1249, 0, %v1246
      %v1270 = vsel %vm1249, 0, %v1247
      %v1273 = vsel %vm1249, 0, %v1248
      %v1275 = vrot.slane %v1225, 1
      %v1276 = vrot.slane %v1226, 1
      %v1277 = vrot.slane %v1227, 1
      %v1278 = vrot.slane %v1228, 1
      %v1279 = vrot.slane %v1229, 1
      %v1280 = vrot.slane %v1230, 1
      %v1281 = vrot.slane %v1231, 1
      %v1282 = vrot.slane %v1232, 1
      %vm1283 = vcmask 1046528
      %v1285 = vsel %vm1283, %v1275, 0
      %v1288 = vsel %vm1283, %v1276, 0
      %v1291 = vsel %vm1283, %v1277, 0
      %v1294 = vsel %vm1283, %v1278, 0
      %v1297 = vsel %vm1283, %v1279, 0
      %v1300 = vsel %vm1283, %v1280, 0
      %v1303 = vsel %vm1283, %v1281, 0
      %v1306 = vsel %vm1283, %v1282, 0
      %v1324 = vunpack.c.l.b16 %v1193
      %v1325 = vunpack.c.l.b16 %v1194
      %v1326 = vunpack.c.l.b16 %v1195
      %v1327 = vunpack.c.l.b16 %v1196
      %v1328 = vunpack.c.l.b16 %v1197
      %v1329 = vunpack.c.l.b16 %v1198
      %v1330 = vunpack.c.l.b16 %v1199
      %v1331 = vunpack.c.l.b16 %v1200
      %v1332 = vunpack.c.l.b16 %v1201
      %v1333 = vunpack.c.l.b16 %v1202
      %v1334 = vunpack.c.l.b16 %v1203
      %v1335 = vunpack.c.l.b16 %v1204
      %v1336 = vunpack.c.l.b16 %v1205
      %v1337 = vunpack.c.l.b16 %v1206
      %v1338 = vunpack.c.l.b16 %v1207
      %v1339 = vunpack.c.l.b16 %v1208
      %v1340 = vpack.c.b16 %v1325, %v1324
      %v1341 = vpack.c.b16 %v1327, %v1326
      %v1342 = vpack.c.b16 %v1329, %v1328
      %v1343 = vpack.c.b16 %v1331, %v1330
      %v1344 = vpack.c.b16 %v1333, %v1332
      %v1345 = vpack.c.b16 %v1335, %v1334
      %v1346 = vpack.c.b16 %v1337, %v1336
      %v1347 = vpack.c.b16 %v1339, %v1338
      %1356 = vmatprep.subr.bf16.mxu0 0
      %1357 = vmatpush1.bf16.msra.mxu0 %v1340
      %1358 = vmatprep.subr.bf16.mxu0 0
      %1359 = vmatpush1.bf16.msra.mxu0 %v1341
      %1360 = vmatprep.subr.bf16.mxu0 0
      %1361 = vmatpush1.bf16.msra.mxu0 %v1342
      %1362 = vmatprep.subr.bf16.mxu0 0
      %1363 = vmatpush1.bf16.msra.mxu0 %v1343
      %1364 = vmatprep.subr.bf16.mxu0 0
      %1365 = vmatpush1.bf16.msra.mxu0 %v1344
      %1366 = vmatprep.subr.bf16.mxu0 0
      %1367 = vmatpush1.bf16.msra.mxu0 %v1345
      %1368 = vmatprep.subr.bf16.mxu0 0
      %1369 = vmatpush1.bf16.msra.mxu0 %v1346
      %1370 = vmatprep.subr.bf16.mxu0 0
      %1371 = vmatpush1.bf16.msra.mxu0 %v1347
      %1372 = vmatprep.subr.bf16.mxu0 0
      %1373 = vmatpush1.bf16.msra.mxu0 0
      %1374 = vmatprep.subr.bf16.mxu0 0
      %1375 = vmatpush1.bf16.msra.mxu0 0
      %1376 = vmatprep.subr.bf16.mxu0 0
      %1377 = vmatpush1.bf16.msra.mxu0 0
      %1378 = vmatprep.subr.bf16.mxu0 0
      %1379 = vmatpush1.bf16.msra.mxu0 0
      %1380 = vmatprep.subr.bf16.mxu0 0
      %1381 = vmatpush1.bf16.msra.mxu0 0
      %1382 = vmatprep.subr.bf16.mxu0 0
      %1383 = vmatpush1.bf16.msra.mxu0 0
      %1384 = vmatprep.subr.bf16.mxu0 0
      %1385 = vmatpush1.bf16.msra.mxu0 0
      %1386 = vmatprep.subr.bf16.mxu0 0
      %1387 = vmatpush1.bf16.msra.mxu0 0
      %1388 = vmatprep.mubr.bf16.mxu0 0
      %1389 = vmatmul.mubr.bf16.gmra.mrb[0].mxu0 %v1225
      %v1390 = vpop.f32.mrb[0].mxu0
      %v1391 = vadd.f32 0.0, %v1390
      %v1392 = vpop.f32.mrb[0].mxu0
      %v1393 = vpop.f32.mrb[0].mxu0
      %v1394 = vadd.f32 0.0, %v1393
      %v1395 = vpop.f32.mrb[0].mxu0
      %1396 = vmatprep.mubr.bf16.mxu0 0
      %1397 = vmatmul.mubr.bf16.gmra.mrb[0].mxu0 %v1226
      %v1398 = vpop.f32.mrb[0].mxu0
      %v1399 = vadd.f32 0.0, %v1398
      %v1400 = vpop.f32.mrb[0].mxu0
      %v1401 = vpop.f32.mrb[0].mxu0
      %v1402 = vadd.f32 0.0, %v1401
      %v1403 = vpop.f32.mrb[0].mxu0
      %1404 = vmatprep.mubr.bf16.mxu0 0
      %1405 = vmatmul.mubr.bf16.gmra.mrb[0].mxu0 %v1227
      %v1406 = vpop.f32.mrb[0].mxu0
      %v1407 = vadd.f32 0.0, %v1406
      %v1408 = vpop.f32.mrb[0].mxu0
      %v1409 = vpop.f32.mrb[0].mxu0
      %v1410 = vadd.f32 0.0, %v1409
      %v1411 = vpop.f32.mrb[0].mxu0
      %1412 = vmatprep.mubr.bf16.mxu0 0
      %1413 = vmatmul.mubr.bf16.gmra.mrb[0].mxu0 %v1228
      %v1414 = vpop.f32.mrb[0].mxu0
      %v1415 = vadd.f32 0.0, %v1414
      %v1416 = vpop.f32.mrb[0].mxu0
      %v1417 = vpop.f32.mrb[0].mxu0
      %v1418 = vadd.f32 0.0, %v1417
      %v1419 = vpop.f32.mrb[0].mxu0
      %1420 = vmatprep.mubr.bf16.mxu0 0
      %1421 = vmatmul.mubr.bf16.gmra.mrb[0].mxu0 %v1229
      %v1422 = vpop.f32.mrb[0].mxu0
      %v1423 = vadd.f32 0.0, %v1422
      %v1424 = vpop.f32.mrb[0].mxu0
      %v1425 = vpop.f32.mrb[0].mxu0
      %v1426 = vadd.f32 0.0, %v1425
      %v1427 = vpop.f32.mrb[0].mxu0
      %1428 = vmatprep.mubr.bf16.mxu0 0
      %1429 = vmatmul.mubr.bf16.gmra.mrb[0].mxu0 %v1230
      %v1430 = vpop.f32.mrb[0].mxu0
      %v1431 = vadd.f32 0.0, %v1430
      %v1432 = vpop.f32.mrb[0].mxu0
      %v1433 = vpop.f32.mrb[0].mxu0
      %v1434 = vadd.f32 0.0, %v1433
      %v1435 = vpop.f32.mrb[0].mxu0
      %1436 = vmatprep.mubr.bf16.mxu0 0
      %1437 = vmatmul.mubr.bf16.gmra.mrb[0].mxu0 %v1231
      %v1438 = vpop.f32.mrb[0].mxu0
      %v1439 = vadd.f32 0.0, %v1438
      %v1440 = vpop.f32.mrb[0].mxu0
      %v1441 = vpop.f32.mrb[0].mxu0
      %v1442 = vadd.f32 0.0, %v1441
      %v1443 = vpop.f32.mrb[0].mxu0
      %1444 = vmatprep.mubr.bf16.mxu0 0
      %1445 = vmatmul.mubr.bf16.gmra.mrb[0].mxu0 %v1232
      %v1446 = vpop.f32.mrb[0].mxu0
      %v1447 = vadd.f32 0.0, %v1446
      %v1448 = vpop.f32.mrb[0].mxu0
      %v1449 = vpop.f32.mrb[0].mxu0
      %v1450 = vadd.f32 0.0, %v1449
      %v1451 = vpop.f32.mrb[0].mxu0
      %1452 = vdwg.mxu0
      %v1469 = vunpack.c.l.b16 %v1177
      %v1470 = vunpack.c.l.b16 %v1178
      %v1471 = vunpack.c.l.b16 %v1179
      %v1472 = vunpack.c.l.b16 %v1180
      %v1473 = vunpack.c.l.b16 %v1181
      %v1474 = vunpack.c.l.b16 %v1182
      %v1475 = vunpack.c.l.b16 %v1183
      %v1476 = vunpack.c.l.b16 %v1184
      %v1477 = vunpack.c.l.b16 %v1185
      %v1478 = vunpack.c.l.b16 %v1186
      %v1479 = vunpack.c.l.b16 %v1187
      %v1480 = vunpack.c.l.b16 %v1188
      %v1481 = vunpack.c.l.b16 %v1189
      %v1482 = vunpack.c.l.b16 %v1190
      %v1483 = vunpack.c.l.b16 %v1191
      %v1484 = vunpack.c.l.b16 %v1192
      %v1485 = vpack.c.b16 %v1470, %v1469
      %v1486 = vpack.c.b16 %v1472, %v1471
      %v1487 = vpack.c.b16 %v1474, %v1473
      %v1488 = vpack.c.b16 %v1476, %v1475
      %v1489 = vpack.c.b16 %v1478, %v1477
      %v1490 = vpack.c.b16 %v1480, %v1479
      %v1491 = vpack.c.b16 %v1482, %v1481
      %v1492 = vpack.c.b16 %v1484, %v1483
      %1501 = vmatprep.subr.bf16.mxu0 0
      %1502 = vmatpush1.bf16.msra.mxu0 %v1485
      %1503 = vmatprep.subr.bf16.mxu0 0
      %1504 = vmatpush1.bf16.msra.mxu0 %v1486
      %1505 = vmatprep.subr.bf16.mxu0 0
      %1506 = vmatpush1.bf16.msra.mxu0 %v1487
      %1507 = vmatprep.subr.bf16.mxu0 0
      %1508 = vmatpush1.bf16.msra.mxu0 %v1488
      %1509 = vmatprep.subr.bf16.mxu0 0
      %1510 = vmatpush1.bf16.msra.mxu0 %v1489
      %1511 = vmatprep.subr.bf16.mxu0 0
      %1512 = vmatpush1.bf16.msra.mxu0 %v1490
      %1513 = vmatprep.subr.bf16.mxu0 0
      %1514 = vmatpush1.bf16.msra.mxu0 %v1491
      %1515 = vmatprep.subr.bf16.mxu0 0
      %1516 = vmatpush1.bf16.msra.mxu0 %v1492
      %1517 = vmatprep.subr.bf16.mxu0 0
      %1518 = vmatpush1.bf16.msra.mxu0 0
      %1519 = vmatprep.subr.bf16.mxu0 0
      %1520 = vmatpush1.bf16.msra.mxu0 0
      %1521 = vmatprep.subr.bf16.mxu0 0
      %1522 = vmatpush1.bf16.msra.mxu0 0
      %1523 = vmatprep.subr.bf16.mxu0 0
      %1524 = vmatpush1.bf16.msra.mxu0 0
      %1525 = vmatprep.subr.bf16.mxu0 0
      %1526 = vmatpush1.bf16.msra.mxu0 0
      %1527 = vmatprep.subr.bf16.mxu0 0
      %1528 = vmatpush1.bf16.msra.mxu0 0
      %1529 = vmatprep.subr.bf16.mxu0 0
      %1530 = vmatpush1.bf16.msra.mxu0 0
      %1531 = vmatprep.subr.bf16.mxu0 0
      %1532 = vmatpush1.bf16.msra.mxu0 0
      %1533 = vmatprep.mubr.bf16.mxu0 0
      %1534 = vmatmul.mubr.bf16.gmra.mrb[0].mxu0 %v1252
      %v1535 = vpop.f32.mrb[0].mxu0
      %v1536 = vadd.f32 %v1391, %v1535
      %v1537 = vpop.f32.mrb[0].mxu0
      %v1538 = vpop.f32.mrb[0].mxu0
      %v1539 = vadd.f32 %v1394, %v1538
      %v1540 = vpop.f32.mrb[0].mxu0
      %1541 = vmatprep.mubr.bf16.mxu0 0
      %1542 = vmatmul.mubr.bf16.gmra.mrb[0].mxu0 %v1255
      %v1543 = vpop.f32.mrb[0].mxu0
      %v1544 = vadd.f32 %v1399, %v1543
      %v1545 = vpop.f32.mrb[0].mxu0
      %v1546 = vpop.f32.mrb[0].mxu0
      %v1547 = vadd.f32 %v1402, %v1546
      %v1548 = vpop.f32.mrb[0].mxu0
      %1549 = vmatprep.mubr.bf16.mxu0 0
      %1550 = vmatmul.mubr.bf16.gmra.mrb[0].mxu0 %v1258
      %v1551 = vpop.f32.mrb[0].mxu0
      %v1552 = vadd.f32 %v1407, %v1551
      %v1553 = vpop.f32.mrb[0].mxu0
      %v1554 = vpop.f32.mrb[0].mxu0
      %v1555 = vadd.f32 %v1410, %v1554
      %v1556 = vpop.f32.mrb[0].mxu0
      %1557 = vmatprep.mubr.bf16.mxu0 0
      %1558 = vmatmul.mubr.bf16.gmra.mrb[0].mxu0 %v1261
      %v1559 = vpop.f32.mrb[0].mxu0
      %v1560 = vadd.f32 %v1415, %v1559
      %v1561 = vpop.f32.mrb[0].mxu0
      %v1562 = vpop.f32.mrb[0].mxu0
      %v1563 = vadd.f32 %v1418, %v1562
      %v1564 = vpop.f32.mrb[0].mxu0
      %1565 = vmatprep.mubr.bf16.mxu0 0
      %1566 = vmatmul.mubr.bf16.gmra.mrb[0].mxu0 %v1264
      %v1567 = vpop.f32.mrb[0].mxu0
      %v1568 = vadd.f32 %v1423, %v1567
      %v1569 = vpop.f32.mrb[0].mxu0
      %v1570 = vpop.f32.mrb[0].mxu0
      %v1571 = vadd.f32 %v1426, %v1570
      %v1572 = vpop.f32.mrb[0].mxu0
      %1573 = vmatprep.mubr.bf16.mxu0 0
      %1574 = vmatmul.mubr.bf16.gmra.mrb[0].mxu0 %v1267
      %v1575 = vpop.f32.mrb[0].mxu0
      %v1576 = vadd.f32 %v1431, %v1575
      %v1577 = vpop.f32.mrb[0].mxu0
      %v1578 = vpop.f32.mrb[0].mxu0
      %v1579 = vadd.f32 %v1434, %v1578
      %v1580 = vpop.f32.mrb[0].mxu0
      %1581 = vmatprep.mubr.bf16.mxu0 0
      %1582 = vmatmul.mubr.bf16.gmra.mrb[0].mxu0 %v1270
      %v1583 = vpop.f32.mrb[0].mxu0
      %v1584 = vadd.f32 %v1439, %v1583
      %v1585 = vpop.f32.mrb[0].mxu0
      %v1586 = vpop.f32.mrb[0].mxu0
      %v1587 = vadd.f32 %v1442, %v1586
      %v1588 = vpop.f32.mrb[0].mxu0
      %1589 = vmatprep.mubr.bf16.mxu0 0
      %1590 = vmatmul.mubr.bf16.gmra.mrb[0].mxu0 %v1273
      %v1591 = vpop.f32.mrb[0].mxu0
      %v1592 = vadd.f32 %v1447, %v1591
      %v1593 = vpop.f32.mrb[0].mxu0
      %v1594 = vpop.f32.mrb[0].mxu0
      %v1595 = vadd.f32 %v1450, %v1594
      %v1596 = vpop.f32.mrb[0].mxu0
      %1597 = vdwg.mxu0
      %v1614 = vunpack.c.l.b16 %v1209
      %v1615 = vunpack.c.l.b16 %v1210
      %v1616 = vunpack.c.l.b16 %v1211
      %v1617 = vunpack.c.l.b16 %v1212
      %v1618 = vunpack.c.l.b16 %v1213
      %v1619 = vunpack.c.l.b16 %v1214
      %v1620 = vunpack.c.l.b16 %v1215
      %v1621 = vunpack.c.l.b16 %v1216
      %v1622 = vunpack.c.l.b16 %v1217
      %v1623 = vunpack.c.l.b16 %v1218
      %v1624 = vunpack.c.l.b16 %v1219
      %v1625 = vunpack.c.l.b16 %v1220
      %v1626 = vunpack.c.l.b16 %v1221
      %v1627 = vunpack.c.l.b16 %v1222
      %v1628 = vunpack.c.l.b16 %v1223
      %v1629 = vunpack.c.l.b16 %v1224
      %v1630 = vpack.c.b16 %v1615, %v1614
      %v1631 = vpack.c.b16 %v1617, %v1616
      %v1632 = vpack.c.b16 %v1619, %v1618
      %v1633 = vpack.c.b16 %v1621, %v1620
      %v1634 = vpack.c.b16 %v1623, %v1622
      %v1635 = vpack.c.b16 %v1625, %v1624
      %v1636 = vpack.c.b16 %v1627, %v1626
      %v1637 = vpack.c.b16 %v1629, %v1628
      %1646 = vmatprep.subr.bf16.mxu0 0
      %1647 = vmatpush1.bf16.msra.mxu0 %v1630
      %1648 = vmatprep.subr.bf16.mxu0 0
      %1649 = vmatpush1.bf16.msra.mxu0 %v1631
      %1650 = vmatprep.subr.bf16.mxu0 0
      %1651 = vmatpush1.bf16.msra.mxu0 %v1632
      %1652 = vmatprep.subr.bf16.mxu0 0
      %1653 = vmatpush1.bf16.msra.mxu0 %v1633
      %1654 = vmatprep.subr.bf16.mxu0 0
      %1655 = vmatpush1.bf16.msra.mxu0 %v1634
      %1656 = vmatprep.subr.bf16.mxu0 0
      %1657 = vmatpush1.bf16.msra.mxu0 %v1635
      %1658 = vmatprep.subr.bf16.mxu0 0
      %1659 = vmatpush1.bf16.msra.mxu0 %v1636
      %1660 = vmatprep.subr.bf16.mxu0 0
      %1661 = vmatpush1.bf16.msra.mxu0 %v1637
      %1662 = vmatprep.subr.bf16.mxu0 0
      %1663 = vmatpush1.bf16.msra.mxu0 0
      %1664 = vmatprep.subr.bf16.mxu0 0
      %1665 = vmatpush1.bf16.msra.mxu0 0
      %1666 = vmatprep.subr.bf16.mxu0 0
      %1667 = vmatpush1.bf16.msra.mxu0 0
      %1668 = vmatprep.subr.bf16.mxu0 0
      %1669 = vmatpush1.bf16.msra.mxu0 0
      %1670 = vmatprep.subr.bf16.mxu0 0
      %1671 = vmatpush1.bf16.msra.mxu0 0
      %1672 = vmatprep.subr.bf16.mxu0 0
      %1673 = vmatpush1.bf16.msra.mxu0 0
      %1674 = vmatprep.subr.bf16.mxu0 0
      %1675 = vmatpush1.bf16.msra.mxu0 0
      %1676 = vmatprep.subr.bf16.mxu0 0
      %1677 = vmatpush1.bf16.msra.mxu0 0
      %1678 = vmatprep.mubr.bf16.mxu0 0
      %1679 = vmatmul.mubr.bf16.gmra.mrb[0].mxu0 %v1285
      %v1680 = vpop.f32.mrb[0].mxu0
      %v1681 = vadd.f32 0.0, %v1680
      %v1682 = vpop.f32.mrb[0].mxu0
      %v1683 = vpop.f32.mrb[0].mxu0
      %v1684 = vadd.f32 0.0, %v1683
      %v1685 = vpop.f32.mrb[0].mxu0
      %1686 = vmatprep.mubr.bf16.mxu0 0
      %1687 = vmatmul.mubr.bf16.gmra.mrb[0].mxu0 %v1288
      %v1688 = vpop.f32.mrb[0].mxu0
      %v1689 = vadd.f32 0.0, %v1688
      %v1690 = vpop.f32.mrb[0].mxu0
      %v1691 = vpop.f32.mrb[0].mxu0
      %v1692 = vadd.f32 0.0, %v1691
      %v1693 = vpop.f32.mrb[0].mxu0
      %1694 = vmatprep.mubr.bf16.mxu0 0
      %1695 = vmatmul.mubr.bf16.gmra.mrb[0].mxu0 %v1291
      %v1696 = vpop.f32.mrb[0].mxu0
      %v1697 = vadd.f32 0.0, %v1696
      %v1698 = vpop.f32.mrb[0].mxu0
      %v1699 = vpop.f32.mrb[0].mxu0
      %v1700 = vadd.f32 0.0, %v1699
      %v1701 = vpop.f32.mrb[0].mxu0
      %1702 = vmatprep.mubr.bf16.mxu0 0
      %1703 = vmatmul.mubr.bf16.gmra.mrb[0].mxu0 %v1294
      %v1704 = vpop.f32.mrb[0].mxu0
      %v1705 = vadd.f32 0.0, %v1704
      %v1706 = vpop.f32.mrb[0].mxu0
      %v1707 = vpop.f32.mrb[0].mxu0
      %v1708 = vadd.f32 0.0, %v1707
      %v1709 = vpop.f32.mrb[0].mxu0
      %1710 = vmatprep.mubr.bf16.mxu0 0
      %1711 = vmatmul.mubr.bf16.gmra.mrb[0].mxu0 %v1297
      %v1712 = vpop.f32.mrb[0].mxu0
      %v1713 = vadd.f32 0.0, %v1712
      %v1714 = vpop.f32.mrb[0].mxu0
      %v1715 = vpop.f32.mrb[0].mxu0
      %v1716 = vadd.f32 0.0, %v1715
      %v1717 = vpop.f32.mrb[0].mxu0
      %1718 = vmatprep.mubr.bf16.mxu0 0
      %1719 = vmatmul.mubr.bf16.gmra.mrb[0].mxu0 %v1300
      %v1720 = vpop.f32.mrb[0].mxu0
      %v1721 = vadd.f32 0.0, %v1720
      %v1722 = vpop.f32.mrb[0].mxu0
      %v1723 = vpop.f32.mrb[0].mxu0
      %v1724 = vadd.f32 0.0, %v1723
      %v1725 = vpop.f32.mrb[0].mxu0
      %1726 = vmatprep.mubr.bf16.mxu0 0
      %1727 = vmatmul.mubr.bf16.gmra.mrb[0].mxu0 %v1303
      %v1728 = vpop.f32.mrb[0].mxu0
      %v1729 = vadd.f32 0.0, %v1728
      %v1730 = vpop.f32.mrb[0].mxu0
      %v1731 = vpop.f32.mrb[0].mxu0
      %v1732 = vadd.f32 0.0, %v1731
      %v1733 = vpop.f32.mrb[0].mxu0
      %1734 = vmatprep.mubr.bf16.mxu0 0
      %1735 = vmatmul.mubr.bf16.gmra.mrb[0].mxu0 %v1306
      %v1736 = vpop.f32.mrb[0].mxu0
      %v1737 = vadd.f32 0.0, %v1736
      %v1738 = vpop.f32.mrb[0].mxu0
      %v1739 = vpop.f32.mrb[0].mxu0
      %v1740 = vadd.f32 0.0, %v1739
      %v1741 = vpop.f32.mrb[0].mxu0
      %1742 = vdwg.mxu0
      %v1743 = vadd.f32 %v1536, %v1681
      %v1744 = vadd.f32 %v1539, %v1684
      %v1745 = vadd.f32 %v1544, %v1689
      %v1746 = vadd.f32 %v1547, %v1692
      %v1747 = vadd.f32 %v1552, %v1697
      %v1748 = vadd.f32 %v1555, %v1700
      %v1749 = vadd.f32 %v1560, %v1705
      %v1750 = vadd.f32 %v1563, %v1708
      %v1751 = vadd.f32 %v1568, %v1713
      %v1752 = vadd.f32 %v1571, %v1716
      %v1753 = vadd.f32 %v1576, %v1721
      %v1754 = vadd.f32 %v1579, %v1724
      %v1755 = vadd.f32 %v1584, %v1729
      %v1756 = vadd.f32 %v1587, %v1732
      %v1757 = vadd.f32 %v1592, %v1737
      %v1758 = vadd.f32 %v1595, %v1740
      %v1759 = vpack.c.bf16 %v1744, %v1743
      %v1760 = vpack.c.bf16 %v1746, %v1745
      %v1761 = vpack.c.bf16 %v1748, %v1747
      %v1762 = vpack.c.bf16 %v1750, %v1749
      %v1763 = vpack.c.bf16 %v1752, %v1751
      %v1764 = vpack.c.bf16 %v1754, %v1753
      %v1765 = vpack.c.bf16 %v1756, %v1755
      %v1766 = vpack.c.bf16 %v1758, %v1757
      %v1775 = vunpack.c.l.b16 %v1759
      %v1776 = vunpack.c.h.b16 %v1759
      %v1777 = vunpack.c.l.b16 %v1760
      %v1778 = vunpack.c.h.b16 %v1760
      %v1779 = vunpack.c.l.b16 %v1761
      %v1780 = vunpack.c.h.b16 %v1761
      %v1781 = vunpack.c.l.b16 %v1762
      %v1782 = vunpack.c.h.b16 %v1762
      %v1783 = vunpack.c.l.b16 %v1763
      %v1784 = vunpack.c.h.b16 %v1763
      %v1785 = vunpack.c.l.b16 %v1764
      %v1786 = vunpack.c.h.b16 %v1764
      %v1787 = vunpack.c.l.b16 %v1765
      %v1788 = vunpack.c.h.b16 %v1765
      %v1789 = vunpack.c.l.b16 %v1766
      %v1790 = vunpack.c.h.b16 %v1766
      %v1791 = vpack.c.b16 %v1775, %v1775
      %v1792 = vpack.c.b16 %v1776, %v1776
      %v1793 = vpack.c.b16 %v1777, %v1777
      %v1794 = vpack.c.b16 %v1778, %v1778
      %v1795 = vpack.c.b16 %v1779, %v1779
      %v1796 = vpack.c.b16 %v1780, %v1780
      %v1797 = vpack.c.b16 %v1781, %v1781
      %v1798 = vpack.c.b16 %v1782, %v1782
      %v1799 = vpack.c.b16 %v1783, %v1783
      %v1800 = vpack.c.b16 %v1784, %v1784
      %v1801 = vpack.c.b16 %v1785, %v1785
      %v1802 = vpack.c.b16 %v1786, %v1786
      %v1803 = vpack.c.b16 %v1787, %v1787
      %v1804 = vpack.c.b16 %v1788, %v1788
      %v1805 = vpack.c.b16 %v1789, %v1789
      %v1806 = vpack.c.b16 %v1790, %v1790
      %1823 = vst [vmem:[%s466] sm:$0xf] %v1791
      %1824 = vst [vmem:[%s466 + $0x4] sm:$0xf] %v1792
      %1825 = vst [vmem:[%s466 + $0x8] sm:$0xf] %v1793
      %1826 = vst [vmem:[%s466 + $0xc] sm:$0xf] %v1794
      %1827 = vst [vmem:[%s466 + $0x10] sm:$0xf] %v1795
      %1828 = vst [vmem:[%s466 + $0x14] sm:$0xf] %v1796
      %1829 = vst [vmem:[%s466 + $0x18] sm:$0xf] %v1797
      %1830 = vst [vmem:[%s466 + $0x1c] sm:$0xf] %v1798
      %1831 = vst [vmem:[%s466 + $0x20] sm:$0xf] %v1799
      %1832 = vst [vmem:[%s466 + $0x24] sm:$0xf] %v1800
      %1833 = vst [vmem:[%s466 + $0x28] sm:$0xf] %v1801
      %1834 = vst [vmem:[%s466 + $0x2c] sm:$0xf] %v1802
      %1835 = vst [vmem:[%s466 + $0x30] sm:$0xf] %v1803
      %1836 = vst [vmem:[%s466 + $0x34] sm:$0xf] %v1804
      %1837 = vst [vmem:[%s466 + $0x38] sm:$0xf] %v1805
      %1838 = vst [vmem:[%s466 + $0x3c] sm:$0xf] %v1806
      %v1839 = vadd.f32 %v1743, %v1744
      %v1840 = vadd.f32 %v1839, %v1745
      %v1841 = vadd.f32 %v1840, %v1746
      %v1842 = vadd.f32 %v1841, %v1747
      %v1843 = vadd.f32 %v1842, %v1748
      %v1844 = vadd.f32 %v1843, %v1749
      %v1845 = vadd.f32 %v1844, %v1750
      %v1846 = vadd.f32 %v1845, %v1751
      %v1847 = vadd.f32 %v1846, %v1752
      %v1848 = vadd.f32 %v1847, %v1753
      %v1849 = vadd.f32 %v1848, %v1754
      %v1850 = vadd.f32 %v1849, %v1755
      %v1851 = vadd.f32 %v1850, %v1756
      %v1852 = vadd.f32 %v1851, %v1757
      %v1853 = vadd.f32 %v1852, %v1758
      %v1854 = vrot.slane %v1853, 4
      %v1855 = vadd.f32 %v1853, %v1854
      %v1856 = vrot.slane %v1855, 2
      %v1857 = vadd.f32 %v1855, %v1856
      %v1858 = vrot.slane %v1857, 1
      %v1859 = vadd.f32 %v1857, %v1858
      %v1860 = vmul.f32 %v1743, %v1743
      %v1861 = vmul.f32 %v1744, %v1744
      %v1862 = vmul.f32 %v1745, %v1745
      %v1863 = vmul.f32 %v1746, %v1746
      %v1864 = vmul.f32 %v1747, %v1747
      %v1865 = vmul.f32 %v1748, %v1748
      %v1866 = vmul.f32 %v1749, %v1749
      %v1867 = vmul.f32 %v1750, %v1750
      %v1868 = vmul.f32 %v1751, %v1751
      %v1869 = vmul.f32 %v1752, %v1752
      %v1870 = vmul.f32 %v1753, %v1753
      %v1871 = vmul.f32 %v1754, %v1754
      %v1872 = vmul.f32 %v1755, %v1755
      %v1873 = vmul.f32 %v1756, %v1756
      %v1874 = vmul.f32 %v1757, %v1757
      %v1875 = vmul.f32 %v1758, %v1758
      %v1876 = vadd.f32 %v1860, %v1861
      %v1877 = vadd.f32 %v1876, %v1862
      %v1878 = vadd.f32 %v1877, %v1863
      %v1879 = vadd.f32 %v1878, %v1864
      %v1880 = vadd.f32 %v1879, %v1865
      %v1881 = vadd.f32 %v1880, %v1866
      %v1882 = vadd.f32 %v1881, %v1867
      %v1883 = vadd.f32 %v1882, %v1868
      %v1884 = vadd.f32 %v1883, %v1869
      %v1885 = vadd.f32 %v1884, %v1870
      %v1886 = vadd.f32 %v1885, %v1871
      %v1887 = vadd.f32 %v1886, %v1872
      %v1888 = vadd.f32 %v1887, %v1873
      %v1889 = vadd.f32 %v1888, %v1874
      %v1890 = vadd.f32 %v1889, %v1875
      %v1891 = vrot.slane %v1890, 4
      %v1892 = vadd.f32 %v1890, %v1891
      %v1893 = vrot.slane %v1892, 2
      %v1894 = vadd.f32 %v1892, %v1893
      %v1895 = vrot.slane %v1894, 1
      %v1896 = vadd.f32 %v1894, %v1895
      %v1897 = vsel %vm1249, %v1859, %v1896
      %1898 = vst [vmem:[%s475] sm:$0x3] %v1897
      %s1899 = smul.u32 8, %s26
      %p1900 = scmp.lt.s32.totalorder %s25, 1
      %s1901 = scalar_select %p1900, %s25, 1
      %p1902 = scmp.lt.s32.totalorder %s1899, 15
      %s1903 = scalar_select %p1902, %s1899, 15
      %s1904 = smul.addr %s1903, 2
      %s1905 = smul.addr %s1901, 32
      %s1906 = sadd.s32 %s1904, %s1905
      %s1907 = smul.addr %s1906, 4
      %s1908 = scalar_lea.vmem %s8, %s1907
      %p1909 = scmp.lt.s32.totalorder %s25, 1
      %s1910 = scalar_select %p1909, %s25, 1
      %p1911 = scmp.lt.s32.totalorder %s26, 1
      %s1912 = scalar_select %p1911, %s26, 1
      %s1913 = smul.addr %s1910, 2
      %s1914 = sadd.s32 %s1912, %s1913
      %s1915 = smul.addr %s1914, 2
      %s1916 = scalar_lea.vmem %s9, %s1915
      // Predicated region
      $region53: #{non_bottleneck_1d_pallas.4} parent=51 // pred_check
        %p1917 = pneg %p242
      $region54: #{non_bottleneck_1d_pallas.4} parent=51 // pred_check_branch
        %1919 = sbr.rel (%p1917) target = $region56
      $region55: #{non_bottleneck_1d_pallas.4} parent=51 // pred_region
        %s1920 = smul.u32 8, %s26
      $region56: #{non_bottleneck_1d_pallas.4} parent=51 // pred_fallthru
        _
      // Predicated region
      $region57: #{non_bottleneck_1d_pallas.4} parent=51 // pred_check
        %p1921 = pneg %p270
      $region58: #{non_bottleneck_1d_pallas.4} parent=51 // pred_check_branch
        %1923 = sbr.rel (%p1921) target = $region60
      $region59: #{non_bottleneck_1d_pallas.4} parent=51 // pred_region
        _
      $region60: #{non_bottleneck_1d_pallas.4} parent=51 // pred_fallthru
        _
    $region52: #{non_bottleneck_1d_pallas.4} parent=5 // pred_fallthru
      _
    %p1924 = scmp.le.s32.totalorder 2, %s16
    // Predicated region
    $region61: #{non_bottleneck_1d_pallas.4} parent=5 // pred_check
      %p1925 = pneg %p1924
    $region62: #{non_bottleneck_1d_pallas.4} parent=5 // pred_check_branch
      %1927 = sbr.rel (%p1925) target = $region64
    $region63: #{non_bottleneck_1d_pallas.4} parent=5 // pred_region
      %s1928 = ssub.s32 %s16, 2
      // Predicated region
      $region65: #{non_bottleneck_1d_pallas.4} parent=63 // pred_check
        %p1929 = pneg %p248
      $region66: #{non_bottleneck_1d_pallas.4} parent=63 // pred_check_branch
        %1931 = sbr.rel (%p1929) target = $region68
      $region67: #{non_bottleneck_1d_pallas.4} parent=63 // pred_region
        %s1932 = smul.u32 8, %s28
        %p1933 = scmp.lt.s32.totalorder %s27, 1
        %s1934 = scalar_select %p1933, %s27, 1
        %p1935 = scmp.lt.s32.totalorder %s1932, 15
        %s1936 = scalar_select %p1935, %s1932, 15
        %s1937 = smul.addr %s1936, 2
        %s1938 = smul.addr %s1934, 32
        %s1939 = sadd.s32 %s1937, %s1938
        %s1940 = smul.addr %s1939, 4
        %s1941 = scalar_lea.vmem %s8, %s1940
      $region68: #{non_bottleneck_1d_pallas.4} parent=63 // pred_fallthru
        _
      // Predicated region
      $region69: #{non_bottleneck_1d_pallas.4} parent=63 // pred_check
        %p1942 = pneg %p276
      $region70: #{non_bottleneck_1d_pallas.4} parent=63 // pred_check_branch
        %1944 = sbr.rel (%p1942) target = $region72
      $region71: #{non_bottleneck_1d_pallas.4} parent=63 // pred_region
        %p1945 = scmp.lt.s32.totalorder %s27, 1
        %s1946 = scalar_select %p1945, %s27, 1
        %p1947 = scmp.lt.s32.totalorder %s28, 1
        %s1948 = scalar_select %p1947, %s28, 1
        %s1949 = smul.addr %s1946, 2
        %s1950 = sadd.s32 %s1948, %s1949
        %s1951 = smul.addr %s1950, 2
        %s1952 = scalar_lea.vmem %s9, %s1951
      $region72: #{non_bottleneck_1d_pallas.4} parent=63 // pred_fallthru
        _
    $region64: #{non_bottleneck_1d_pallas.4} parent=5 // pred_fallthru
      _
  $region6: #{non_bottleneck_1d_pallas.4} parent=0 // loop_footer
    %s20 = sadd.s32 1, %s16
  $region7: #{non_bottleneck_1d_pallas.4} parent=0 // loop_footer_branch
    %15 = sbr.rel target = $region3
  $region8: #{non_bottleneck_1d_pallas.4} parent=0 // loop_exit
    _

</llo_original>
